<compile_context>
chip_gen: v6e
topology: v6e:2x2x1
jax: 0.10.0
libtpu: 0.0.40
codegen_flags: <defaults>
</compile_context>

<pallas_src>
import functools

import jax
import jax.numpy as jnp
from jax import lax
from jax.experimental import pallas as pl
from jax.experimental.pallas import tpu as pltpu


HALO = 8  # halo rows per side: one 8-row block (sublane aligned, > 3-row conv reach)


def _round_up(x, m):
    return ((x + m - 1) // m) * m


# ----------------------------- kernel helpers ------------------------------

def _shift_rows(v, oy, zrow):
    """tap[h, :] = v[h + oy, :]; rows shifted past the slab edge become zero.

    The zeroed slab-edge rows live in the HALO margin and never reach the
    interior output rows (corruption depth of 3 chained 3x3 convs is 3 < HALO).
    """
    if oy == 0:
        return v
    if oy > 0:
        return jnp.concatenate([v[oy:, :], zrow], axis=0)
    return jnp.concatenate([zrow, v[:oy, :]], axis=0)


def _shift_cols(v, ox, zcol):
    """tap[:, w] = v[:, w + ox]; columns shifted past the edge become zero."""
    if ox == 0:
        return v
    if ox > 0:
        return jnp.concatenate([v[:, ox:], zcol], axis=1)
    return jnp.concatenate([zcol, v[:, :ox]], axis=1)


def _conv3x3(slabs, w_ref, b_ref, zrow, zcol):
    """3x3 'same' cross-correlation (PyTorch Conv2d) over (slab_h, w_pad) slabs.

    w_ref: flat SMEM weights in (co, ci, ky, kx) row-major order; b_ref: SMEM bias.
    The 9 shifted taps are built once per input channel and reused across all
    output channels; each accumulator is updated once per (co, ci).
    """
    cin = cout = len(slabs)
    # Hoist every SMEM scalar read out of the accumulation loops.
    w = [[[[w_ref[((co * cin + ci) * 3 + ky) * 3 + kx] for kx in range(3)]
           for ky in range(3)] for ci in range(cin)] for co in range(cout)]
    acc = [jnp.full_like(slabs[0], b_ref[co]) for co in range(cout)]
    for ci in range(cin):
        x = slabs[ci]
        cols = [_shift_cols(x, kx - 1, zcol) for kx in range(3)]          # kx = 0,1,2
        taps = [[_shift_rows(cols[kx], ky - 1, zrow) for kx in range(3)]  # ky = 0,1,2
                for ky in range(3)]
        for co in range(cout):
            wci = w[co][ci]
            contrib = taps[0][0] * wci[0][0]
            for ky in range(3):
                for kx in range(3):
                    if ky == 0 and kx == 0:
                        continue
                    contrib = contrib + taps[ky][kx] * wci[ky][kx]
            acc[co] = acc[co] + contrib    # single accumulator RMW per (co, ci)
    return acc


# --------------------------------- kernel ----------------------------------

def sci_kernel(xp_ref, xc_ref, xn_ref,
               w_in_ref, b_in_ref, w_blk_ref, b_blk_ref,
               bn_scale_ref, bn_shift_ref, w_out_ref, b_out_ref,
               illu_ref, r_ref, *, tile_h, img_h, img_w):
    i = pl.program_id(0)
    C = xc_ref.shape[0]
    w_pad = xc_ref.shape[2]
    slab_h = tile_h + 2 * HALO

    # Validity mask: positions inside the real image.  Rows outside the image
    # (clamped prev/next halo blocks at the borders, bottom padding of the last
    # tile) and the lane-padding columns must act as zero 'SAME' padding, and
    # must be re-zeroed after each conv stage (bias makes them nonzero).
    row = lax.broadcasted_iota(jnp.int32, (slab_h, w_pad), 0)
    col = lax.broadcasted_iota(jnp.int32, (slab_h, w_pad), 1)
    img_row = i * tile_h + row - HALO
    valid = (img_row >= 0) & (img_row < img_h) & (col < img_w)

    zrow = jnp.zeros((1, w_pad), jnp.float32)
    zcol = jnp.zeros((slab_h, 1), jnp.float32)

    # Assemble the (slab_h, w_pad) halo slab per channel: 8-aligned offsets
    # (prev 8 rows | current tile_h rows | next 8 rows).
    x = []
    for c in range(C):
        slab = jnp.concatenate([xp_ref[c], xc_ref[c], xn_ref[c]], axis=0)
        x.append(jnp.where(valid, slab, 0.0))

    # in_conv: Conv2d + ReLU  (re-mask so out-of-image positions stay zero when
    # read back as neighbours by conv #2).
    fea = _conv3x3(x, w_in_ref, b_in_ref, zrow, zcol)
    fea = [jnp.where(valid, jnp.maximum(v, 0.0), 0.0) for v in fea]

    # block: Conv2d + BatchNorm2d (eval mode, folded to scale/shift) + ReLU, residual.
    blk = _conv3x3(fea, w_blk_ref, b_blk_ref, zrow, zcol)
    fea = [jnp.where(valid,
                     fea[c] + jnp.maximum(blk[c] * bn_scale_ref[c] + bn_shift_ref[c], 0.0),
                     0.0)
           for c in range(C)]

    # out_conv: Conv2d + Sigmoid; illu = clamp(out + x, 1e-4, 1); r = clamp(x / illu, 0, 1).
    out = _conv3x3(fea, w_out_ref, b_out_ref, zrow, zcol)
    for c in range(C):
        o = out[c][HALO:HALO + tile_h, :]               # 8-aligned interior slice
        sig = 1.0 / (1.0 + jnp.exp(-o))                 # exact sigmoid (EUP exp)
        xc = xc_ref[c]
        illu = jnp.clip(sig + xc, 1e-4, 1.0)
        illu_ref[c] = illu
        r_ref[c] = jnp.clip(xc / illu, 0.0, 1.0)        # exact divide (correctness)


# -------------------------------- wrapper -----------------------------------

def sci_enhance(x_chw, params, *, tile_h=64):
    """x_chw: (3, H, W) float32 in [0, 1]. Returns (illumination i, reflectance r)."""
    C, H, W = x_chw.shape
    tile_h = _round_up(max(8, min(tile_h, _round_up(H, 8))), 8)
    nt = pl.cdiv(H, tile_h)
    h_t = nt * tile_h
    w_pad = _round_up(W, 128)            # lane-dense blocks -> unmasked vector stores
    x_pad = jnp.pad(x_chw.astype(jnp.float32),
                    ((0, 0), (0, h_t - H), (0, w_pad - W)))

    nb = tile_h // HALO                  # 8-row blocks per tile
    n8 = h_t // HALO                     # total 8-row blocks in the padded image

    w_in, b_in, w_blk, b_blk, bn_scale, bn_shift, w_out, b_out = params
    smem = pl.BlockSpec(memory_space=pltpu.MemorySpace.SMEM)

    kern = functools.partial(sci_kernel, tile_h=tile_h, img_h=H, img_w=W)
    illu, r = pl.pallas_call(
        kern,
        grid=(nt,),
        in_specs=[
            # 8-row halo blocks (not full tiles): cuts input DMA from ~3x to ~1.25x.
            pl.BlockSpec((C, HALO, w_pad),
                         lambda i: (0, jnp.maximum(i * nb - 1, 0), 0)),          # top halo
            pl.BlockSpec((C, tile_h, w_pad), lambda i: (0, i, 0)),               # current tile
            pl.BlockSpec((C, HALO, w_pad),
                         lambda i: (0, jnp.minimum((i + 1) * nb, n8 - 1), 0)),   # bottom halo
            smem, smem, smem, smem, smem, smem, smem, smem,
        ],
        out_specs=(pl.BlockSpec((C, tile_h, w_pad), lambda i: (0, i, 0)),
                   pl.BlockSpec((C, tile_h, w_pad), lambda i: (0, i, 0))),
        out_shape=(jax.ShapeDtypeStruct((C, h_t, w_pad), jnp.float32),
                   jax.ShapeDtypeStruct((C, h_t, w_pad), jnp.float32)),
        compiler_params=pltpu.CompilerParams(
            dimension_semantics=("parallel",),        # row tiles shard across TCs on v7x
            vmem_limit_bytes=48 * 1024 * 1024),       # fits v7x's 64 MiB VMEM budget
    )(x_pad, x_pad, x_pad,
      w_in.reshape(-1), b_in, w_blk.reshape(-1), b_blk,
      bn_scale, bn_shift, w_out.reshape(-1), b_out)
    return illu[:, :H, :W], r[:, :H, :W]


# --------------------------- pure-JAX reference ------------------------------

def sci_reference(x, params):
    w_in, b_in, w_blk, b_blk, bn_scale, bn_shift, w_out, b_out = params

    def conv(v, w, b):
        out = jax.lax.conv_general_dilated(
            v[None], w, (1, 1), 'SAME',
            dimension_numbers=('NCHW', 'OIHW', 'NCHW'))[0]
        return out + b[:, None, None]

    fea = jnp.maximum(conv(x, w_in, b_in), 0.0)
    blk = conv(fea, w_blk, b_blk)
    blk = jnp.maximum(blk * bn_scale[:, None, None] + bn_shift[:, None, None], 0.0)
    fea = fea + blk
    o = 1.0 / (1.0 + jnp.exp(-conv(fea, w_out, b_out)))
    illu = jnp.clip(o + x, 1e-4, 1.0)
    rr = jnp.clip(x / illu, 0.0, 1.0)
    return illu, rr


# ----------------------------------- main ------------------------------------

if __name__ == "__main__":
    key = jax.random.PRNGKey(0)
    ks = jax.random.split(key, 10)
    C = 3

    # Deterministic synthetic SCI (EnhanceNetwork) parameters — no checkpoint load.
    scale = 0.2
    w_in   = scale * jax.random.normal(ks[1], (C, C, 3, 3), jnp.float32)
    b_in   = scale * jax.random.normal(ks[2], (C,), jnp.float32)
    w_blk  = scale * jax.random.normal(ks[3], (C, C, 3, 3), jnp.float32)
    b_blk  = scale * jax.random.normal(ks[4], (C,), jnp.float32)
    gamma  = 1.0 + 0.1 * jax.random.normal(ks[5], (C,), jnp.float32)
    beta   = 0.1 * jax.random.normal(ks[6], (C,), jnp.float32)
    r_mean = 0.1 * jax.random.normal(ks[7], (C,), jnp.float32)
    r_var  = 1.0 + jnp.abs(0.1 * jax.random.normal(ks[8], (C,), jnp.float32))
    w_out  = scale * jax.random.normal(ks[9], (C, C, 3, 3), jnp.float32)
    b_out  = jnp.zeros((C,), jnp.float32)

    # Fold eval-mode BatchNorm2d into per-channel scale/shift (standard SCI deployment).
    eps = 1e-5
    bn_scale = gamma / jnp.sqrt(r_var + eps)
    bn_shift = beta - r_mean * bn_scale
    params = (w_in, b_in, w_blk, b_blk, bn_scale, bn_shift, w_out, b_out)

    # Two small configs: exact tiles (16x16, nt=2) and a ragged one (20x20, nt=3
    # with a partial bottom tile) to exercise halo clamping and masking paths.
    for (H, W, th) in ((16, 16, 8), (20, 20, 8)):
        # Synthetic HWC uint8 image (what SCIYOLO.forward receives).
        x_u8 = jax.random.randint(ks[0], (H, W, C), 0, 256,
                                  dtype=jnp.int32).astype(jnp.uint8)
        # torchvision ToTensor(): uint8 HWC -> float32 CHW in [0, 1]  (host glue).
        x_chw = jnp.transpose(x_u8.astype(jnp.float32) / 255.0, (2, 0, 1))

        illu, refl = sci_enhance(x_chw, params, tile_h=th)
        jax.block_until_ready((illu, refl))

        illu_ref, refl_ref = sci_reference(x_chw, params)
        assert illu.shape == (C, H, W) and refl.shape == (C, H, W)
        assert jnp.allclose(illu, illu_ref, atol=1e-3, rtol=1e-3), \
            float(jnp.max(jnp.abs(illu - illu_ref)))
        assert jnp.allclose(refl, refl_ref, atol=1e-3, rtol=1e-3), \
            float(jnp.max(jnp.abs(refl - refl_ref)))

    print("KERNEL_OK")
</pallas_src>

<mosaic_0001>
module attributes {stable_mosaic.version = 11 : i64} {
  func.func @sci_kernel(%arg0: i32, %arg1: memref<3x8x128xf32, #tpu.memory_space<vmem>>, %arg2: memref<3x8x128xf32, #tpu.memory_space<vmem>>, %arg3: memref<3x8x128xf32, #tpu.memory_space<vmem>>, %arg4: memref<81xf32, #tpu.memory_space<smem>>, %arg5: memref<3xf32, #tpu.memory_space<smem>>, %arg6: memref<81xf32, #tpu.memory_space<smem>>, %arg7: memref<3xf32, #tpu.memory_space<smem>>, %arg8: memref<3xf32, #tpu.memory_space<smem>>, %arg9: memref<3xf32, #tpu.memory_space<smem>>, %arg10: memref<81xf32, #tpu.memory_space<smem>>, %arg11: memref<3xf32, #tpu.memory_space<smem>>, %arg12: memref<3x8x128xf32, #tpu.memory_space<vmem>>, %arg13: memref<3x8x128xf32, #tpu.memory_space<vmem>>) attributes {dimension_semantics = [#tpu.dimension_semantics<parallel>], iteration_bounds = array<i64: 2>, scalar_prefetch = 0 : i64, scratch_operands = 0 : i64, tpu.core_type = #tpu.core_type<tc>, window_params = [{transform_indices = @transform_0, window_bounds = array<i64: 3, 8, 128>}, {transform_indices = @transform_1, window_bounds = array<i64: 3, 8, 128>}, {transform_indices = @transform_2, window_bounds = array<i64: 3, 8, 128>}, {transform_indices = @transform_3, window_bounds = array<i64: 81>}, {transform_indices = @transform_4, window_bounds = array<i64: 3>}, {transform_indices = @transform_5, window_bounds = array<i64: 81>}, {transform_indices = @transform_6, window_bounds = array<i64: 3>}, {transform_indices = @transform_7, window_bounds = array<i64: 3>}, {transform_indices = @transform_8, window_bounds = array<i64: 3>}, {transform_indices = @transform_9, window_bounds = array<i64: 81>}, {transform_indices = @transform_10, window_bounds = array<i64: 3>}, {transform_indices = @transform_11, window_bounds = array<i64: 3, 8, 128>}, {transform_indices = @transform_12, window_bounds = array<i64: 3, 8, 128>}]} {
    %0 = tpu.iota {dimensions = array<i32: 0>} : vector<24x128xi32>
    %1 = tpu.iota {dimensions = array<i32: 1>} : vector<24x128xi32>
    %c8_i32 = arith.constant 8 : i32
    %2 = arith.muli %arg0, %c8_i32 : i32
    %3 = vector.broadcast %2 : i32 to vector<24x128xi32>
    %4 = arith.addi %3, %0 : vector<24x128xi32>
    %c8_i32_0 = arith.constant 8 : i32
    %5 = vector.broadcast %c8_i32_0 : i32 to vector<24x128xi32>
    %6 = arith.subi %4, %5 : vector<24x128xi32>
    %c0_i32 = arith.constant 0 : i32
    %7 = vector.broadcast %c0_i32 : i32 to vector<24x128xi32>
    %8 = arith.cmpi sge, %6, %7 : vector<24x128xi32>
    %c16_i32 = arith.constant 16 : i32
    %9 = vector.broadcast %c16_i32 : i32 to vector<24x128xi32>
    %10 = arith.cmpi slt, %6, %9 : vector<24x128xi32>
    %11 = arith.andi %8, %10 : vector<24x128xi1>
    %c16_i32_1 = arith.constant 16 : i32
    %12 = vector.broadcast %c16_i32_1 : i32 to vector<24x128xi32>
    %13 = arith.cmpi slt, %1, %12 : vector<24x128xi32>
    %14 = arith.andi %11, %13 : vector<24x128xi1>
    %cst = arith.constant 0.000000e+00 : f32
    %15 = vector.broadcast %cst : f32 to vector<1x128xf32>
    %cst_2 = arith.constant 0.000000e+00 : f32
    %16 = vector.broadcast %cst_2 : f32 to vector<24x1xf32>
    %c0 = arith.constant 0 : index
    %c0_3 = arith.constant 0 : index
    %c0_4 = arith.constant 0 : index
    %17 = vector.load %arg1[%c0, %c0_3, %c0_4] : memref<3x8x128xf32, #tpu.memory_space<vmem>>, vector<1x8x128xf32>
    %18 = vector.shape_cast %17 : vector<1x8x128xf32> to vector<8x128xf32>
    %c0_5 = arith.constant 0 : index
    %c0_6 = arith.constant 0 : index
    %c0_7 = arith.constant 0 : index
    %19 = vector.load %arg2[%c0_5, %c0_6, %c0_7] : memref<3x8x128xf32, #tpu.memory_space<vmem>>, vector<1x8x128xf32>
    %20 = vector.shape_cast %19 : vector<1x8x128xf32> to vector<8x128xf32>
    %c0_8 = arith.constant 0 : index
    %c0_9 = arith.constant 0 : index
    %c0_10 = arith.constant 0 : index
    %21 = vector.load %arg3[%c0_8, %c0_9, %c0_10] : memref<3x8x128xf32, #tpu.memory_space<vmem>>, vector<1x8x128xf32>
    %22 = vector.shape_cast %21 : vector<1x8x128xf32> to vector<8x128xf32>
    %23 = tpu.concatenate %18, %20, %22 in 0 : vector<8x128xf32>, vector<8x128xf32>, vector<8x128xf32> -> vector<24x128xf32>
    %cst_11 = arith.constant 0.000000e+00 : f32
    %24 = vector.broadcast %cst_11 : f32 to vector<24x128xf32>
    %25 = arith.select %14, %23, %24 : vector<24x128xi1>, vector<24x128xf32>
    %c1 = arith.constant 1 : index
    %c0_12 = arith.constant 0 : index
    %c0_13 = arith.constant 0 : index
    %26 = vector.load %arg1[%c1, %c0_12, %c0_13] : memref<3x8x128xf32, #tpu.memory_space<vmem>>, vector<1x8x128xf32>
    %27 = vector.shape_cast %26 : vector<1x8x128xf32> to vector<8x128xf32>
    %c1_14 = arith.constant 1 : index
    %c0_15 = arith.constant 0 : index
    %c0_16 = arith.constant 0 : index
    %28 = vector.load %arg2[%c1_14, %c0_15, %c0_16] : memref<3x8x128xf32, #tpu.memory_space<vmem>>, vector<1x8x128xf32>
    %29 = vector.shape_cast %28 : vector<1x8x128xf32> to vector<8x128xf32>
    %c1_17 = arith.constant 1 : index
    %c0_18 = arith.constant 0 : index
    %c0_19 = arith.constant 0 : index
    %30 = vector.load %arg3[%c1_17, %c0_18, %c0_19] : memref<3x8x128xf32, #tpu.memory_space<vmem>>, vector<1x8x128xf32>
    %31 = vector.shape_cast %30 : vector<1x8x128xf32> to vector<8x128xf32>
    %32 = tpu.concatenate %27, %29, %31 in 0 : vector<8x128xf32>, vector<8x128xf32>, vector<8x128xf32> -> vector<24x128xf32>
    %cst_20 = arith.constant 0.000000e+00 : f32
    %33 = vector.broadcast %cst_20 : f32 to vector<24x128xf32>
    %34 = arith.select %14, %32, %33 : vector<24x128xi1>, vector<24x128xf32>
    %c2 = arith.constant 2 : index
    %c0_21 = arith.constant 0 : index
    %c0_22 = arith.constant 0 : index
    %35 = vector.load %arg1[%c2, %c0_21, %c0_22] : memref<3x8x128xf32, #tpu.memory_space<vmem>>, vector<1x8x128xf32>
    %36 = vector.shape_cast %35 : vector<1x8x128xf32> to vector<8x128xf32>
    %c2_23 = arith.constant 2 : index
    %c0_24 = arith.constant 0 : index
    %c0_25 = arith.constant 0 : index
    %37 = vector.load %arg2[%c2_23, %c0_24, %c0_25] : memref<3x8x128xf32, #tpu.memory_space<vmem>>, vector<1x8x128xf32>
    %38 = vector.shape_cast %37 : vector<1x8x128xf32> to vector<8x128xf32>
    %c2_26 = arith.constant 2 : index
    %c0_27 = arith.constant 0 : index
    %c0_28 = arith.constant 0 : index
    %39 = vector.load %arg3[%c2_26, %c0_27, %c0_28] : memref<3x8x128xf32, #tpu.memory_space<vmem>>, vector<1x8x128xf32>
    %40 = vector.shape_cast %39 : vector<1x8x128xf32> to vector<8x128xf32>
    %41 = tpu.concatenate %36, %38, %40 in 0 : vector<8x128xf32>, vector<8x128xf32>, vector<8x128xf32> -> vector<24x128xf32>
    %cst_29 = arith.constant 0.000000e+00 : f32
    %42 = vector.broadcast %cst_29 : f32 to vector<24x128xf32>
    %43 = arith.select %14, %41, %42 : vector<24x128xi1>, vector<24x128xf32>
    %c0_30 = arith.constant 0 : index
    %44 = memref.load %arg4[%c0_30] : memref<81xf32, #tpu.memory_space<smem>>
    %c1_31 = arith.constant 1 : index
    %45 = memref.load %arg4[%c1_31] : memref<81xf32, #tpu.memory_space<smem>>
    %c2_32 = arith.constant 2 : index
    %46 = memref.load %arg4[%c2_32] : memref<81xf32, #tpu.memory_space<smem>>
    %c3 = arith.constant 3 : index
    %47 = memref.load %arg4[%c3] : memref<81xf32, #tpu.memory_space<smem>>
    %c4 = arith.constant 4 : index
    %48 = memref.load %arg4[%c4] : memref<81xf32, #tpu.memory_space<smem>>
    %c5 = arith.constant 5 : index
    %49 = memref.load %arg4[%c5] : memref<81xf32, #tpu.memory_space<smem>>
    %c6 = arith.constant 6 : index
    %50 = memref.load %arg4[%c6] : memref<81xf32, #tpu.memory_space<smem>>
    %c7 = arith.constant 7 : index
    %51 = memref.load %arg4[%c7] : memref<81xf32, #tpu.memory_space<smem>>
    %c8 = arith.constant 8 : index
    %52 = memref.load %arg4[%c8] : memref<81xf32, #tpu.memory_space<smem>>
    %c9 = arith.constant 9 : index
    %53 = memref.load %arg4[%c9] : memref<81xf32, #tpu.memory_space<smem>>
    %c10 = arith.constant 10 : index
    %54 = memref.load %arg4[%c10] : memref<81xf32, #tpu.memory_space<smem>>
    %c11 = arith.constant 11 : index
    %55 = memref.load %arg4[%c11] : memref<81xf32, #tpu.memory_space<smem>>
    %c12 = arith.constant 12 : index
    %56 = memref.load %arg4[%c12] : memref<81xf32, #tpu.memory_space<smem>>
    %c13 = arith.constant 13 : index
    %57 = memref.load %arg4[%c13] : memref<81xf32, #tpu.memory_space<smem>>
    %c14 = arith.constant 14 : index
    %58 = memref.load %arg4[%c14] : memref<81xf32, #tpu.memory_space<smem>>
    %c15 = arith.constant 15 : index
    %59 = memref.load %arg4[%c15] : memref<81xf32, #tpu.memory_space<smem>>
    %c16 = arith.constant 16 : index
    %60 = memref.load %arg4[%c16] : memref<81xf32, #tpu.memory_space<smem>>
    %c17 = arith.constant 17 : index
    %61 = memref.load %arg4[%c17] : memref<81xf32, #tpu.memory_space<smem>>
    %c18 = arith.constant 18 : index
    %62 = memref.load %arg4[%c18] : memref<81xf32, #tpu.memory_space<smem>>
    %c19 = arith.constant 19 : index
    %63 = memref.load %arg4[%c19] : memref<81xf32, #tpu.memory_space<smem>>
    %c20 = arith.constant 20 : index
    %64 = memref.load %arg4[%c20] : memref<81xf32, #tpu.memory_space<smem>>
    %c21 = arith.constant 21 : index
    %65 = memref.load %arg4[%c21] : memref<81xf32, #tpu.memory_space<smem>>
    %c22 = arith.constant 22 : index
    %66 = memref.load %arg4[%c22] : memref<81xf32, #tpu.memory_space<smem>>
    %c23 = arith.constant 23 : index
    %67 = memref.load %arg4[%c23] : memref<81xf32, #tpu.memory_space<smem>>
    %c24 = arith.constant 24 : index
    %68 = memref.load %arg4[%c24] : memref<81xf32, #tpu.memory_space<smem>>
    %c25 = arith.constant 25 : index
    %69 = memref.load %arg4[%c25] : memref<81xf32, #tpu.memory_space<smem>>
    %c26 = arith.constant 26 : index
    %70 = memref.load %arg4[%c26] : memref<81xf32, #tpu.memory_space<smem>>
    %c27 = arith.constant 27 : index
    %71 = memref.load %arg4[%c27] : memref<81xf32, #tpu.memory_space<smem>>
    %c28 = arith.constant 28 : index
    %72 = memref.load %arg4[%c28] : memref<81xf32, #tpu.memory_space<smem>>
    %c29 = arith.constant 29 : index
    %73 = memref.load %arg4[%c29] : memref<81xf32, #tpu.memory_space<smem>>
    %c30 = arith.constant 30 : index
    %74 = memref.load %arg4[%c30] : memref<81xf32, #tpu.memory_space<smem>>
    %c31 = arith.constant 31 : index
    %75 = memref.load %arg4[%c31] : memref<81xf32, #tpu.memory_space<smem>>
    %c32 = arith.constant 32 : index
    %76 = memref.load %arg4[%c32] : memref<81xf32, #tpu.memory_space<smem>>
    %c33 = arith.constant 33 : index
    %77 = memref.load %arg4[%c33] : memref<81xf32, #tpu.memory_space<smem>>
    %c34 = arith.constant 34 : index
    %78 = memref.load %arg4[%c34] : memref<81xf32, #tpu.memory_space<smem>>
    %c35 = arith.constant 35 : index
    %79 = memref.load %arg4[%c35] : memref<81xf32, #tpu.memory_space<smem>>
    %c36 = arith.constant 36 : index
    %80 = memref.load %arg4[%c36] : memref<81xf32, #tpu.memory_space<smem>>
    %c37 = arith.constant 37 : index
    %81 = memref.load %arg4[%c37] : memref<81xf32, #tpu.memory_space<smem>>
    %c38 = arith.constant 38 : index
    %82 = memref.load %arg4[%c38] : memref<81xf32, #tpu.memory_space<smem>>
    %c39 = arith.constant 39 : index
    %83 = memref.load %arg4[%c39] : memref<81xf32, #tpu.memory_space<smem>>
    %c40 = arith.constant 40 : index
    %84 = memref.load %arg4[%c40] : memref<81xf32, #tpu.memory_space<smem>>
    %c41 = arith.constant 41 : index
    %85 = memref.load %arg4[%c41] : memref<81xf32, #tpu.memory_space<smem>>
    %c42 = arith.constant 42 : index
    %86 = memref.load %arg4[%c42] : memref<81xf32, #tpu.memory_space<smem>>
    %c43 = arith.constant 43 : index
    %87 = memref.load %arg4[%c43] : memref<81xf32, #tpu.memory_space<smem>>
    %c44 = arith.constant 44 : index
    %88 = memref.load %arg4[%c44] : memref<81xf32, #tpu.memory_space<smem>>
    %c45 = arith.constant 45 : index
    %89 = memref.load %arg4[%c45] : memref<81xf32, #tpu.memory_space<smem>>
    %c46 = arith.constant 46 : index
    %90 = memref.load %arg4[%c46] : memref<81xf32, #tpu.memory_space<smem>>
    %c47 = arith.constant 47 : index
    %91 = memref.load %arg4[%c47] : memref<81xf32, #tpu.memory_space<smem>>
    %c48 = arith.constant 48 : index
    %92 = memref.load %arg4[%c48] : memref<81xf32, #tpu.memory_space<smem>>
    %c49 = arith.constant 49 : index
    %93 = memref.load %arg4[%c49] : memref<81xf32, #tpu.memory_space<smem>>
    %c50 = arith.constant 50 : index
    %94 = memref.load %arg4[%c50] : memref<81xf32, #tpu.memory_space<smem>>
    %c51 = arith.constant 51 : index
    %95 = memref.load %arg4[%c51] : memref<81xf32, #tpu.memory_space<smem>>
    %c52 = arith.constant 52 : index
    %96 = memref.load %arg4[%c52] : memref<81xf32, #tpu.memory_space<smem>>
    %c53 = arith.constant 53 : index
    %97 = memref.load %arg4[%c53] : memref<81xf32, #tpu.memory_space<smem>>
    %c54 = arith.constant 54 : index
    %98 = memref.load %arg4[%c54] : memref<81xf32, #tpu.memory_space<smem>>
    %c55 = arith.constant 55 : index
    %99 = memref.load %arg4[%c55] : memref<81xf32, #tpu.memory_space<smem>>
    %c56 = arith.constant 56 : index
    %100 = memref.load %arg4[%c56] : memref<81xf32, #tpu.memory_space<smem>>
    %c57 = arith.constant 57 : index
    %101 = memref.load %arg4[%c57] : memref<81xf32, #tpu.memory_space<smem>>
    %c58 = arith.constant 58 : index
    %102 = memref.load %arg4[%c58] : memref<81xf32, #tpu.memory_space<smem>>
    %c59 = arith.constant 59 : index
    %103 = memref.load %arg4[%c59] : memref<81xf32, #tpu.memory_space<smem>>
    %c60 = arith.constant 60 : index
    %104 = memref.load %arg4[%c60] : memref<81xf32, #tpu.memory_space<smem>>
    %c61 = arith.constant 61 : index
    %105 = memref.load %arg4[%c61] : memref<81xf32, #tpu.memory_space<smem>>
    %c62 = arith.constant 62 : index
    %106 = memref.load %arg4[%c62] : memref<81xf32, #tpu.memory_space<smem>>
    %c63 = arith.constant 63 : index
    %107 = memref.load %arg4[%c63] : memref<81xf32, #tpu.memory_space<smem>>
    %c64 = arith.constant 64 : index
    %108 = memref.load %arg4[%c64] : memref<81xf32, #tpu.memory_space<smem>>
    %c65 = arith.constant 65 : index
    %109 = memref.load %arg4[%c65] : memref<81xf32, #tpu.memory_space<smem>>
    %c66 = arith.constant 66 : index
    %110 = memref.load %arg4[%c66] : memref<81xf32, #tpu.memory_space<smem>>
    %c67 = arith.constant 67 : index
    %111 = memref.load %arg4[%c67] : memref<81xf32, #tpu.memory_space<smem>>
    %c68 = arith.constant 68 : index
    %112 = memref.load %arg4[%c68] : memref<81xf32, #tpu.memory_space<smem>>
    %c69 = arith.constant 69 : index
    %113 = memref.load %arg4[%c69] : memref<81xf32, #tpu.memory_space<smem>>
    %c70 = arith.constant 70 : index
    %114 = memref.load %arg4[%c70] : memref<81xf32, #tpu.memory_space<smem>>
    %c71 = arith.constant 71 : index
    %115 = memref.load %arg4[%c71] : memref<81xf32, #tpu.memory_space<smem>>
    %c72 = arith.constant 72 : index
    %116 = memref.load %arg4[%c72] : memref<81xf32, #tpu.memory_space<smem>>
    %c73 = arith.constant 73 : index
    %117 = memref.load %arg4[%c73] : memref<81xf32, #tpu.memory_space<smem>>
    %c74 = arith.constant 74 : index
    %118 = memref.load %arg4[%c74] : memref<81xf32, #tpu.memory_space<smem>>
    %c75 = arith.constant 75 : index
    %119 = memref.load %arg4[%c75] : memref<81xf32, #tpu.memory_space<smem>>
    %c76 = arith.constant 76 : index
    %120 = memref.load %arg4[%c76] : memref<81xf32, #tpu.memory_space<smem>>
    %c77 = arith.constant 77 : index
    %121 = memref.load %arg4[%c77] : memref<81xf32, #tpu.memory_space<smem>>
    %c78 = arith.constant 78 : index
    %122 = memref.load %arg4[%c78] : memref<81xf32, #tpu.memory_space<smem>>
    %c79 = arith.constant 79 : index
    %123 = memref.load %arg4[%c79] : memref<81xf32, #tpu.memory_space<smem>>
    %c80 = arith.constant 80 : index
    %124 = memref.load %arg4[%c80] : memref<81xf32, #tpu.memory_space<smem>>
    %c0_33 = arith.constant 0 : index
    %125 = memref.load %arg5[%c0_33] : memref<3xf32, #tpu.memory_space<smem>>
    %126 = vector.broadcast %125 : f32 to vector<24x128xf32>
    %c1_34 = arith.constant 1 : index
    %127 = memref.load %arg5[%c1_34] : memref<3xf32, #tpu.memory_space<smem>>
    %128 = vector.broadcast %127 : f32 to vector<24x128xf32>
    %c2_35 = arith.constant 2 : index
    %129 = memref.load %arg5[%c2_35] : memref<3xf32, #tpu.memory_space<smem>>
    %130 = vector.broadcast %129 : f32 to vector<24x128xf32>
    %131 = vector.extract_strided_slice %25 {offsets = [0, 0], sizes = [24, 127], strides = [1, 1]} : vector<24x128xf32> to vector<24x127xf32>
    %132 = tpu.concatenate %16, %131 in 1 : vector<24x1xf32>, vector<24x127xf32> -> vector<24x128xf32>
    %133 = vector.extract_strided_slice %25 {offsets = [0, 1], sizes = [24, 127], strides = [1, 1]} : vector<24x128xf32> to vector<24x127xf32>
    %134 = tpu.concatenate %133, %16 in 1 : vector<24x127xf32>, vector<24x1xf32> -> vector<24x128xf32>
    %135 = vector.extract_strided_slice %132 {offsets = [0, 0], sizes = [23, 128], strides = [1, 1]} : vector<24x128xf32> to vector<23x128xf32>
    %136 = tpu.concatenate %15, %135 in 0 : vector<1x128xf32>, vector<23x128xf32> -> vector<24x128xf32>
    %137 = vector.extract_strided_slice %25 {offsets = [0, 0], sizes = [23, 128], strides = [1, 1]} : vector<24x128xf32> to vector<23x128xf32>
    %138 = tpu.concatenate %15, %137 in 0 : vector<1x128xf32>, vector<23x128xf32> -> vector<24x128xf32>
    %139 = vector.extract_strided_slice %134 {offsets = [0, 0], sizes = [23, 128], strides = [1, 1]} : vector<24x128xf32> to vector<23x128xf32>
    %140 = tpu.concatenate %15, %139 in 0 : vector<1x128xf32>, vector<23x128xf32> -> vector<24x128xf32>
    %141 = vector.extract_strided_slice %132 {offsets = [1, 0], sizes = [23, 128], strides = [1, 1]} : vector<24x128xf32> to vector<23x128xf32>
    %142 = tpu.concatenate %141, %15 in 0 : vector<23x128xf32>, vector<1x128xf32> -> vector<24x128xf32>
    %143 = vector.extract_strided_slice %25 {offsets = [1, 0], sizes = [23, 128], strides = [1, 1]} : vector<24x128xf32> to vector<23x128xf32>
    %144 = tpu.concatenate %143, %15 in 0 : vector<23x128xf32>, vector<1x128xf32> -> vector<24x128xf32>
    %145 = vector.extract_strided_slice %134 {offsets = [1, 0], sizes = [23, 128], strides = [1, 1]} : vector<24x128xf32> to vector<23x128xf32>
    %146 = tpu.concatenate %145, %15 in 0 : vector<23x128xf32>, vector<1x128xf32> -> vector<24x128xf32>
    %147 = vector.broadcast %44 : f32 to vector<24x128xf32>
    %148 = arith.mulf %136, %147 : vector<24x128xf32>
    %149 = vector.broadcast %45 : f32 to vector<24x128xf32>
    %150 = arith.mulf %138, %149 : vector<24x128xf32>
    %151 = arith.addf %148, %150 : vector<24x128xf32>
    %152 = vector.broadcast %46 : f32 to vector<24x128xf32>
    %153 = arith.mulf %140, %152 : vector<24x128xf32>
    %154 = arith.addf %151, %153 : vector<24x128xf32>
    %155 = vector.broadcast %47 : f32 to vector<24x128xf32>
    %156 = arith.mulf %132, %155 : vector<24x128xf32>
    %157 = arith.addf %154, %156 : vector<24x128xf32>
    %158 = vector.broadcast %48 : f32 to vector<24x128xf32>
    %159 = arith.mulf %25, %158 : vector<24x128xf32>
    %160 = arith.addf %157, %159 : vector<24x128xf32>
    %161 = vector.broadcast %49 : f32 to vector<24x128xf32>
    %162 = arith.mulf %134, %161 : vector<24x128xf32>
    %163 = arith.addf %160, %162 : vector<24x128xf32>
    %164 = vector.broadcast %50 : f32 to vector<24x128xf32>
    %165 = arith.mulf %142, %164 : vector<24x128xf32>
    %166 = arith.addf %163, %165 : vector<24x128xf32>
    %167 = vector.broadcast %51 : f32 to vector<24x128xf32>
    %168 = arith.mulf %144, %167 : vector<24x128xf32>
    %169 = arith.addf %166, %168 : vector<24x128xf32>
    %170 = vector.broadcast %52 : f32 to vector<24x128xf32>
    %171 = arith.mulf %146, %170 : vector<24x128xf32>
    %172 = arith.addf %169, %171 : vector<24x128xf32>
    %173 = arith.addf %126, %172 : vector<24x128xf32>
    %174 = vector.broadcast %71 : f32 to vector<24x128xf32>
    %175 = arith.mulf %136, %174 : vector<24x128xf32>
    %176 = vector.broadcast %72 : f32 to vector<24x128xf32>
    %177 = arith.mulf %138, %176 : vector<24x128xf32>
    %178 = arith.addf %175, %177 : vector<24x128xf32>
    %179 = vector.broadcast %73 : f32 to vector<24x128xf32>
    %180 = arith.mulf %140, %179 : vector<24x128xf32>
    %181 = arith.addf %178, %180 : vector<24x128xf32>
    %182 = vector.broadcast %74 : f32 to vector<24x128xf32>
    %183 = arith.mulf %132, %182 : vector<24x128xf32>
    %184 = arith.addf %181, %183 : vector<24x128xf32>
    %185 = vector.broadcast %75 : f32 to vector<24x128xf32>
    %186 = arith.mulf %25, %185 : vector<24x128xf32>
    %187 = arith.addf %184, %186 : vector<24x128xf32>
    %188 = vector.broadcast %76 : f32 to vector<24x128xf32>
    %189 = arith.mulf %134, %188 : vector<24x128xf32>
    %190 = arith.addf %187, %189 : vector<24x128xf32>
    %191 = vector.broadcast %77 : f32 to vector<24x128xf32>
    %192 = arith.mulf %142, %191 : vector<24x128xf32>
    %193 = arith.addf %190, %192 : vector<24x128xf32>
    %194 = vector.broadcast %78 : f32 to vector<24x128xf32>
    %195 = arith.mulf %144, %194 : vector<24x128xf32>
    %196 = arith.addf %193, %195 : vector<24x128xf32>
    %197 = vector.broadcast %79 : f32 to vector<24x128xf32>
    %198 = arith.mulf %146, %197 : vector<24x128xf32>
    %199 = arith.addf %196, %198 : vector<24x128xf32>
    %200 = arith.addf %128, %199 : vector<24x128xf32>
    %201 = vector.broadcast %98 : f32 to vector<24x128xf32>
    %202 = arith.mulf %136, %201 : vector<24x128xf32>
    %203 = vector.broadcast %99 : f32 to vector<24x128xf32>
    %204 = arith.mulf %138, %203 : vector<24x128xf32>
    %205 = arith.addf %202, %204 : vector<24x128xf32>
    %206 = vector.broadcast %100 : f32 to vector<24x128xf32>
    %207 = arith.mulf %140, %206 : vector<24x128xf32>
    %208 = arith.addf %205, %207 : vector<24x128xf32>
    %209 = vector.broadcast %101 : f32 to vector<24x128xf32>
    %210 = arith.mulf %132, %209 : vector<24x128xf32>
    %211 = arith.addf %208, %210 : vector<24x128xf32>
    %212 = vector.broadcast %102 : f32 to vector<24x128xf32>
    %213 = arith.mulf %25, %212 : vector<24x128xf32>
    %214 = arith.addf %211, %213 : vector<24x128xf32>
    %215 = vector.broadcast %103 : f32 to vector<24x128xf32>
    %216 = arith.mulf %134, %215 : vector<24x128xf32>
    %217 = arith.addf %214, %216 : vector<24x128xf32>
    %218 = vector.broadcast %104 : f32 to vector<24x128xf32>
    %219 = arith.mulf %142, %218 : vector<24x128xf32>
    %220 = arith.addf %217, %219 : vector<24x128xf32>
    %221 = vector.broadcast %105 : f32 to vector<24x128xf32>
    %222 = arith.mulf %144, %221 : vector<24x128xf32>
    %223 = arith.addf %220, %222 : vector<24x128xf32>
    %224 = vector.broadcast %106 : f32 to vector<24x128xf32>
    %225 = arith.mulf %146, %224 : vector<24x128xf32>
    %226 = arith.addf %223, %225 : vector<24x128xf32>
    %227 = arith.addf %130, %226 : vector<24x128xf32>
    %228 = vector.extract_strided_slice %34 {offsets = [0, 0], sizes = [24, 127], strides = [1, 1]} : vector<24x128xf32> to vector<24x127xf32>
    %229 = tpu.concatenate %16, %228 in 1 : vector<24x1xf32>, vector<24x127xf32> -> vector<24x128xf32>
    %230 = vector.extract_strided_slice %34 {offsets = [0, 1], sizes = [24, 127], strides = [1, 1]} : vector<24x128xf32> to vector<24x127xf32>
    %231 = tpu.concatenate %230, %16 in 1 : vector<24x127xf32>, vector<24x1xf32> -> vector<24x128xf32>
    %232 = vector.extract_strided_slice %229 {offsets = [0, 0], sizes = [23, 128], strides = [1, 1]} : vector<24x128xf32> to vector<23x128xf32>
    %233 = tpu.concatenate %15, %232 in 0 : vector<1x128xf32>, vector<23x128xf32> -> vector<24x128xf32>
    %234 = vector.extract_strided_slice %34 {offsets = [0, 0], sizes = [23, 128], strides = [1, 1]} : vector<24x128xf32> to vector<23x128xf32>
    %235 = tpu.concatenate %15, %234 in 0 : vector<1x128xf32>, vector<23x128xf32> -> vector<24x128xf32>
    %236 = vector.extract_strided_slice %231 {offsets = [0, 0], sizes = [23, 128], strides = [1, 1]} : vector<24x128xf32> to vector<23x128xf32>
    %237 = tpu.concatenate %15, %236 in 0 : vector<1x128xf32>, vector<23x128xf32> -> vector<24x128xf32>
    %238 = vector.extract_strided_slice %229 {offsets = [1, 0], sizes = [23, 128], strides = [1, 1]} : vector<24x128xf32> to vector<23x128xf32>
    %239 = tpu.concatenate %238, %15 in 0 : vector<23x128xf32>, vector<1x128xf32> -> vector<24x128xf32>
    %240 = vector.extract_strided_slice %34 {offsets = [1, 0], sizes = [23, 128], strides = [1, 1]} : vector<24x128xf32> to vector<23x128xf32>
    %241 = tpu.concatenate %240, %15 in 0 : vector<23x128xf32>, vector<1x128xf32> -> vector<24x128xf32>
    %242 = vector.extract_strided_slice %231 {offsets = [1, 0], sizes = [23, 128], strides = [1, 1]} : vector<24x128xf32> to vector<23x128xf32>
    %243 = tpu.concatenate %242, %15 in 0 : vector<23x128xf32>, vector<1x128xf32> -> vector<24x128xf32>
    %244 = vector.broadcast %53 : f32 to vector<24x128xf32>
    %245 = arith.mulf %233, %244 : vector<24x128xf32>
    %246 = vector.broadcast %54 : f32 to vector<24x128xf32>
    %247 = arith.mulf %235, %246 : vector<24x128xf32>
    %248 = arith.addf %245, %247 : vector<24x128xf32>
    %249 = vector.broadcast %55 : f32 to vector<24x128xf32>
    %250 = arith.mulf %237, %249 : vector<24x128xf32>
    %251 = arith.addf %248, %250 : vector<24x128xf32>
    %252 = vector.broadcast %56 : f32 to vector<24x128xf32>
    %253 = arith.mulf %229, %252 : vector<24x128xf32>
    %254 = arith.addf %251, %253 : vector<24x128xf32>
    %255 = vector.broadcast %57 : f32 to vector<24x128xf32>
    %256 = arith.mulf %34, %255 : vector<24x128xf32>
    %257 = arith.addf %254, %256 : vector<24x128xf32>
    %258 = vector.broadcast %58 : f32 to vector<24x128xf32>
    %259 = arith.mulf %231, %258 : vector<24x128xf32>
    %260 = arith.addf %257, %259 : vector<24x128xf32>
    %261 = vector.broadcast %59 : f32 to vector<24x128xf32>
    %262 = arith.mulf %239, %261 : vector<24x128xf32>
    %263 = arith.addf %260, %262 : vector<24x128xf32>
    %264 = vector.broadcast %60 : f32 to vector<24x128xf32>
    %265 = arith.mulf %241, %264 : vector<24x128xf32>
    %266 = arith.addf %263, %265 : vector<24x128xf32>
    %267 = vector.broadcast %61 : f32 to vector<24x128xf32>
    %268 = arith.mulf %243, %267 : vector<24x128xf32>
    %269 = arith.addf %266, %268 : vector<24x128xf32>
    %270 = arith.addf %173, %269 : vector<24x128xf32>
    %271 = vector.broadcast %80 : f32 to vector<24x128xf32>
    %272 = arith.mulf %233, %271 : vector<24x128xf32>
    %273 = vector.broadcast %81 : f32 to vector<24x128xf32>
    %274 = arith.mulf %235, %273 : vector<24x128xf32>
    %275 = arith.addf %272, %274 : vector<24x128xf32>
    %276 = vector.broadcast %82 : f32 to vector<24x128xf32>
    %277 = arith.mulf %237, %276 : vector<24x128xf32>
    %278 = arith.addf %275, %277 : vector<24x128xf32>
    %279 = vector.broadcast %83 : f32 to vector<24x128xf32>
    %280 = arith.mulf %229, %279 : vector<24x128xf32>
    %281 = arith.addf %278, %280 : vector<24x128xf32>
    %282 = vector.broadcast %84 : f32 to vector<24x128xf32>
    %283 = arith.mulf %34, %282 : vector<24x128xf32>
    %284 = arith.addf %281, %283 : vector<24x128xf32>
    %285 = vector.broadcast %85 : f32 to vector<24x128xf32>
    %286 = arith.mulf %231, %285 : vector<24x128xf32>
    %287 = arith.addf %284, %286 : vector<24x128xf32>
    %288 = vector.broadcast %86 : f32 to vector<24x128xf32>
    %289 = arith.mulf %239, %288 : vector<24x128xf32>
    %290 = arith.addf %287, %289 : vector<24x128xf32>
    %291 = vector.broadcast %87 : f32 to vector<24x128xf32>
    %292 = arith.mulf %241, %291 : vector<24x128xf32>
    %293 = arith.addf %290, %292 : vector<24x128xf32>
    %294 = vector.broadcast %88 : f32 to vector<24x128xf32>
    %295 = arith.mulf %243, %294 : vector<24x128xf32>
    %296 = arith.addf %293, %295 : vector<24x128xf32>
    %297 = arith.addf %200, %296 : vector<24x128xf32>
    %298 = vector.broadcast %107 : f32 to vector<24x128xf32>
    %299 = arith.mulf %233, %298 : vector<24x128xf32>
    %300 = vector.broadcast %108 : f32 to vector<24x128xf32>
    %301 = arith.mulf %235, %300 : vector<24x128xf32>
    %302 = arith.addf %299, %301 : vector<24x128xf32>
    %303 = vector.broadcast %109 : f32 to vector<24x128xf32>
    %304 = arith.mulf %237, %303 : vector<24x128xf32>
    %305 = arith.addf %302, %304 : vector<24x128xf32>
    %306 = vector.broadcast %110 : f32 to vector<24x128xf32>
    %307 = arith.mulf %229, %306 : vector<24x128xf32>
    %308 = arith.addf %305, %307 : vector<24x128xf32>
    %309 = vector.broadcast %111 : f32 to vector<24x128xf32>
    %310 = arith.mulf %34, %309 : vector<24x128xf32>
    %311 = arith.addf %308, %310 : vector<24x128xf32>
    %312 = vector.broadcast %112 : f32 to vector<24x128xf32>
    %313 = arith.mulf %231, %312 : vector<24x128xf32>
    %314 = arith.addf %311, %313 : vector<24x128xf32>
    %315 = vector.broadcast %113 : f32 to vector<24x128xf32>
    %316 = arith.mulf %239, %315 : vector<24x128xf32>
    %317 = arith.addf %314, %316 : vector<24x128xf32>
    %318 = vector.broadcast %114 : f32 to vector<24x128xf32>
    %319 = arith.mulf %241, %318 : vector<24x128xf32>
    %320 = arith.addf %317, %319 : vector<24x128xf32>
    %321 = vector.broadcast %115 : f32 to vector<24x128xf32>
    %322 = arith.mulf %243, %321 : vector<24x128xf32>
    %323 = arith.addf %320, %322 : vector<24x128xf32>
    %324 = arith.addf %227, %323 : vector<24x128xf32>
    %325 = vector.extract_strided_slice %43 {offsets = [0, 0], sizes = [24, 127], strides = [1, 1]} : vector<24x128xf32> to vector<24x127xf32>
    %326 = tpu.concatenate %16, %325 in 1 : vector<24x1xf32>, vector<24x127xf32> -> vector<24x128xf32>
    %327 = vector.extract_strided_slice %43 {offsets = [0, 1], sizes = [24, 127], strides = [1, 1]} : vector<24x128xf32> to vector<24x127xf32>
    %328 = tpu.concatenate %327, %16 in 1 : vector<24x127xf32>, vector<24x1xf32> -> vector<24x128xf32>
    %329 = vector.extract_strided_slice %326 {offsets = [0, 0], sizes = [23, 128], strides = [1, 1]} : vector<24x128xf32> to vector<23x128xf32>
    %330 = tpu.concatenate %15, %329 in 0 : vector<1x128xf32>, vector<23x128xf32> -> vector<24x128xf32>
    %331 = vector.extract_strided_slice %43 {offsets = [0, 0], sizes = [23, 128], strides = [1, 1]} : vector<24x128xf32> to vector<23x128xf32>
    %332 = tpu.concatenate %15, %331 in 0 : vector<1x128xf32>, vector<23x128xf32> -> vector<24x128xf32>
    %333 = vector.extract_strided_slice %328 {offsets = [0, 0], sizes = [23, 128], strides = [1, 1]} : vector<24x128xf32> to vector<23x128xf32>
    %334 = tpu.concatenate %15, %333 in 0 : vector<1x128xf32>, vector<23x128xf32> -> vector<24x128xf32>
    %335 = vector.extract_strided_slice %326 {offsets = [1, 0], sizes = [23, 128], strides = [1, 1]} : vector<24x128xf32> to vector<23x128xf32>
    %336 = tpu.concatenate %335, %15 in 0 : vector<23x128xf32>, vector<1x128xf32> -> vector<24x128xf32>
    %337 = vector.extract_strided_slice %43 {offsets = [1, 0], sizes = [23, 128], strides = [1, 1]} : vector<24x128xf32> to vector<23x128xf32>
    %338 = tpu.concatenate %337, %15 in 0 : vector<23x128xf32>, vector<1x128xf32> -> vector<24x128xf32>
    %339 = vector.extract_strided_slice %328 {offsets = [1, 0], sizes = [23, 128], strides = [1, 1]} : vector<24x128xf32> to vector<23x128xf32>
    %340 = tpu.concatenate %339, %15 in 0 : vector<23x128xf32>, vector<1x128xf32> -> vector<24x128xf32>
    %341 = vector.broadcast %62 : f32 to vector<24x128xf32>
    %342 = arith.mulf %330, %341 : vector<24x128xf32>
    %343 = vector.broadcast %63 : f32 to vector<24x128xf32>
    %344 = arith.mulf %332, %343 : vector<24x128xf32>
    %345 = arith.addf %342, %344 : vector<24x128xf32>
    %346 = vector.broadcast %64 : f32 to vector<24x128xf32>
    %347 = arith.mulf %334, %346 : vector<24x128xf32>
    %348 = arith.addf %345, %347 : vector<24x128xf32>
    %349 = vector.broadcast %65 : f32 to vector<24x128xf32>
    %350 = arith.mulf %326, %349 : vector<24x128xf32>
    %351 = arith.addf %348, %350 : vector<24x128xf32>
    %352 = vector.broadcast %66 : f32 to vector<24x128xf32>
    %353 = arith.mulf %43, %352 : vector<24x128xf32>
    %354 = arith.addf %351, %353 : vector<24x128xf32>
    %355 = vector.broadcast %67 : f32 to vector<24x128xf32>
    %356 = arith.mulf %328, %355 : vector<24x128xf32>
    %357 = arith.addf %354, %356 : vector<24x128xf32>
    %358 = vector.broadcast %68 : f32 to vector<24x128xf32>
    %359 = arith.mulf %336, %358 : vector<24x128xf32>
    %360 = arith.addf %357, %359 : vector<24x128xf32>
    %361 = vector.broadcast %69 : f32 to vector<24x128xf32>
    %362 = arith.mulf %338, %361 : vector<24x128xf32>
    %363 = arith.addf %360, %362 : vector<24x128xf32>
    %364 = vector.broadcast %70 : f32 to vector<24x128xf32>
    %365 = arith.mulf %340, %364 : vector<24x128xf32>
    %366 = arith.addf %363, %365 : vector<24x128xf32>
    %367 = arith.addf %270, %366 : vector<24x128xf32>
    %368 = vector.broadcast %89 : f32 to vector<24x128xf32>
    %369 = arith.mulf %330, %368 : vector<24x128xf32>
    %370 = vector.broadcast %90 : f32 to vector<24x128xf32>
    %371 = arith.mulf %332, %370 : vector<24x128xf32>
    %372 = arith.addf %369, %371 : vector<24x128xf32>
    %373 = vector.broadcast %91 : f32 to vector<24x128xf32>
    %374 = arith.mulf %334, %373 : vector<24x128xf32>
    %375 = arith.addf %372, %374 : vector<24x128xf32>
    %376 = vector.broadcast %92 : f32 to vector<24x128xf32>
    %377 = arith.mulf %326, %376 : vector<24x128xf32>
    %378 = arith.addf %375, %377 : vector<24x128xf32>
    %379 = vector.broadcast %93 : f32 to vector<24x128xf32>
    %380 = arith.mulf %43, %379 : vector<24x128xf32>
    %381 = arith.addf %378, %380 : vector<24x128xf32>
    %382 = vector.broadcast %94 : f32 to vector<24x128xf32>
    %383 = arith.mulf %328, %382 : vector<24x128xf32>
    %384 = arith.addf %381, %383 : vector<24x128xf32>
    %385 = vector.broadcast %95 : f32 to vector<24x128xf32>
    %386 = arith.mulf %336, %385 : vector<24x128xf32>
    %387 = arith.addf %384, %386 : vector<24x128xf32>
    %388 = vector.broadcast %96 : f32 to vector<24x128xf32>
    %389 = arith.mulf %338, %388 : vector<24x128xf32>
    %390 = arith.addf %387, %389 : vector<24x128xf32>
    %391 = vector.broadcast %97 : f32 to vector<24x128xf32>
    %392 = arith.mulf %340, %391 : vector<24x128xf32>
    %393 = arith.addf %390, %392 : vector<24x128xf32>
    %394 = arith.addf %297, %393 : vector<24x128xf32>
    %395 = vector.broadcast %116 : f32 to vector<24x128xf32>
    %396 = arith.mulf %330, %395 : vector<24x128xf32>
    %397 = vector.broadcast %117 : f32 to vector<24x128xf32>
    %398 = arith.mulf %332, %397 : vector<24x128xf32>
    %399 = arith.addf %396, %398 : vector<24x128xf32>
    %400 = vector.broadcast %118 : f32 to vector<24x128xf32>
    %401 = arith.mulf %334, %400 : vector<24x128xf32>
    %402 = arith.addf %399, %401 : vector<24x128xf32>
    %403 = vector.broadcast %119 : f32 to vector<24x128xf32>
    %404 = arith.mulf %326, %403 : vector<24x128xf32>
    %405 = arith.addf %402, %404 : vector<24x128xf32>
    %406 = vector.broadcast %120 : f32 to vector<24x128xf32>
    %407 = arith.mulf %43, %406 : vector<24x128xf32>
    %408 = arith.addf %405, %407 : vector<24x128xf32>
    %409 = vector.broadcast %121 : f32 to vector<24x128xf32>
    %410 = arith.mulf %328, %409 : vector<24x128xf32>
    %411 = arith.addf %408, %410 : vector<24x128xf32>
    %412 = vector.broadcast %122 : f32 to vector<24x128xf32>
    %413 = arith.mulf %336, %412 : vector<24x128xf32>
    %414 = arith.addf %411, %413 : vector<24x128xf32>
    %415 = vector.broadcast %123 : f32 to vector<24x128xf32>
    %416 = arith.mulf %338, %415 : vector<24x128xf32>
    %417 = arith.addf %414, %416 : vector<24x128xf32>
    %418 = vector.broadcast %124 : f32 to vector<24x128xf32>
    %419 = arith.mulf %340, %418 : vector<24x128xf32>
    %420 = arith.addf %417, %419 : vector<24x128xf32>
    %421 = arith.addf %324, %420 : vector<24x128xf32>
    %cst_36 = arith.constant 0.000000e+00 : f32
    %422 = vector.broadcast %cst_36 : f32 to vector<24x128xf32>
    %423 = arith.maximumf %367, %422 : vector<24x128xf32>
    %cst_37 = arith.constant 0.000000e+00 : f32
    %424 = vector.broadcast %cst_37 : f32 to vector<24x128xf32>
    %425 = arith.select %14, %423, %424 : vector<24x128xi1>, vector<24x128xf32>
    %cst_38 = arith.constant 0.000000e+00 : f32
    %426 = vector.broadcast %cst_38 : f32 to vector<24x128xf32>
    %427 = arith.maximumf %394, %426 : vector<24x128xf32>
    %cst_39 = arith.constant 0.000000e+00 : f32
    %428 = vector.broadcast %cst_39 : f32 to vector<24x128xf32>
    %429 = arith.select %14, %427, %428 : vector<24x128xi1>, vector<24x128xf32>
    %cst_40 = arith.constant 0.000000e+00 : f32
    %430 = vector.broadcast %cst_40 : f32 to vector<24x128xf32>
    %431 = arith.maximumf %421, %430 : vector<24x128xf32>
    %cst_41 = arith.constant 0.000000e+00 : f32
    %432 = vector.broadcast %cst_41 : f32 to vector<24x128xf32>
    %433 = arith.select %14, %431, %432 : vector<24x128xi1>, vector<24x128xf32>
    %c0_42 = arith.constant 0 : index
    %434 = memref.load %arg6[%c0_42] : memref<81xf32, #tpu.memory_space<smem>>
    %c1_43 = arith.constant 1 : index
    %435 = memref.load %arg6[%c1_43] : memref<81xf32, #tpu.memory_space<smem>>
    %c2_44 = arith.constant 2 : index
    %436 = memref.load %arg6[%c2_44] : memref<81xf32, #tpu.memory_space<smem>>
    %c3_45 = arith.constant 3 : index
    %437 = memref.load %arg6[%c3_45] : memref<81xf32, #tpu.memory_space<smem>>
    %c4_46 = arith.constant 4 : index
    %438 = memref.load %arg6[%c4_46] : memref<81xf32, #tpu.memory_space<smem>>
    %c5_47 = arith.constant 5 : index
    %439 = memref.load %arg6[%c5_47] : memref<81xf32, #tpu.memory_space<smem>>
    %c6_48 = arith.constant 6 : index
    %440 = memref.load %arg6[%c6_48] : memref<81xf32, #tpu.memory_space<smem>>
    %c7_49 = arith.constant 7 : index
    %441 = memref.load %arg6[%c7_49] : memref<81xf32, #tpu.memory_space<smem>>
    %c8_50 = arith.constant 8 : index
    %442 = memref.load %arg6[%c8_50] : memref<81xf32, #tpu.memory_space<smem>>
    %c9_51 = arith.constant 9 : index
    %443 = memref.load %arg6[%c9_51] : memref<81xf32, #tpu.memory_space<smem>>
    %c10_52 = arith.constant 10 : index
    %444 = memref.load %arg6[%c10_52] : memref<81xf32, #tpu.memory_space<smem>>
    %c11_53 = arith.constant 11 : index
    %445 = memref.load %arg6[%c11_53] : memref<81xf32, #tpu.memory_space<smem>>
    %c12_54 = arith.constant 12 : index
    %446 = memref.load %arg6[%c12_54] : memref<81xf32, #tpu.memory_space<smem>>
    %c13_55 = arith.constant 13 : index
    %447 = memref.load %arg6[%c13_55] : memref<81xf32, #tpu.memory_space<smem>>
    %c14_56 = arith.constant 14 : index
    %448 = memref.load %arg6[%c14_56] : memref<81xf32, #tpu.memory_space<smem>>
    %c15_57 = arith.constant 15 : index
    %449 = memref.load %arg6[%c15_57] : memref<81xf32, #tpu.memory_space<smem>>
    %c16_58 = arith.constant 16 : index
    %450 = memref.load %arg6[%c16_58] : memref<81xf32, #tpu.memory_space<smem>>
    %c17_59 = arith.constant 17 : index
    %451 = memref.load %arg6[%c17_59] : memref<81xf32, #tpu.memory_space<smem>>
    %c18_60 = arith.constant 18 : index
    %452 = memref.load %arg6[%c18_60] : memref<81xf32, #tpu.memory_space<smem>>
    %c19_61 = arith.constant 19 : index
    %453 = memref.load %arg6[%c19_61] : memref<81xf32, #tpu.memory_space<smem>>
    %c20_62 = arith.constant 20 : index
    %454 = memref.load %arg6[%c20_62] : memref<81xf32, #tpu.memory_space<smem>>
    %c21_63 = arith.constant 21 : index
    %455 = memref.load %arg6[%c21_63] : memref<81xf32, #tpu.memory_space<smem>>
    %c22_64 = arith.constant 22 : index
    %456 = memref.load %arg6[%c22_64] : memref<81xf32, #tpu.memory_space<smem>>
    %c23_65 = arith.constant 23 : index
    %457 = memref.load %arg6[%c23_65] : memref<81xf32, #tpu.memory_space<smem>>
    %c24_66 = arith.constant 24 : index
    %458 = memref.load %arg6[%c24_66] : memref<81xf32, #tpu.memory_space<smem>>
    %c25_67 = arith.constant 25 : index
    %459 = memref.load %arg6[%c25_67] : memref<81xf32, #tpu.memory_space<smem>>
    %c26_68 = arith.constant 26 : index
    %460 = memref.load %arg6[%c26_68] : memref<81xf32, #tpu.memory_space<smem>>
    %c27_69 = arith.constant 27 : index
    %461 = memref.load %arg6[%c27_69] : memref<81xf32, #tpu.memory_space<smem>>
    %c28_70 = arith.constant 28 : index
    %462 = memref.load %arg6[%c28_70] : memref<81xf32, #tpu.memory_space<smem>>
    %c29_71 = arith.constant 29 : index
    %463 = memref.load %arg6[%c29_71] : memref<81xf32, #tpu.memory_space<smem>>
    %c30_72 = arith.constant 30 : index
    %464 = memref.load %arg6[%c30_72] : memref<81xf32, #tpu.memory_space<smem>>
    %c31_73 = arith.constant 31 : index
    %465 = memref.load %arg6[%c31_73] : memref<81xf32, #tpu.memory_space<smem>>
    %c32_74 = arith.constant 32 : index
    %466 = memref.load %arg6[%c32_74] : memref<81xf32, #tpu.memory_space<smem>>
    %c33_75 = arith.constant 33 : index
    %467 = memref.load %arg6[%c33_75] : memref<81xf32, #tpu.memory_space<smem>>
    %c34_76 = arith.constant 34 : index
    %468 = memref.load %arg6[%c34_76] : memref<81xf32, #tpu.memory_space<smem>>
    %c35_77 = arith.constant 35 : index
    %469 = memref.load %arg6[%c35_77] : memref<81xf32, #tpu.memory_space<smem>>
    %c36_78 = arith.constant 36 : index
    %470 = memref.load %arg6[%c36_78] : memref<81xf32, #tpu.memory_space<smem>>
    %c37_79 = arith.constant 37 : index
    %471 = memref.load %arg6[%c37_79] : memref<81xf32, #tpu.memory_space<smem>>
    %c38_80 = arith.constant 38 : index
    %472 = memref.load %arg6[%c38_80] : memref<81xf32, #tpu.memory_space<smem>>
    %c39_81 = arith.constant 39 : index
    %473 = memref.load %arg6[%c39_81] : memref<81xf32, #tpu.memory_space<smem>>
    %c40_82 = arith.constant 40 : index
    %474 = memref.load %arg6[%c40_82] : memref<81xf32, #tpu.memory_space<smem>>
    %c41_83 = arith.constant 41 : index
    %475 = memref.load %arg6[%c41_83] : memref<81xf32, #tpu.memory_space<smem>>
    %c42_84 = arith.constant 42 : index
    %476 = memref.load %arg6[%c42_84] : memref<81xf32, #tpu.memory_space<smem>>
    %c43_85 = arith.constant 43 : index
    %477 = memref.load %arg6[%c43_85] : memref<81xf32, #tpu.memory_space<smem>>
    %c44_86 = arith.constant 44 : index
    %478 = memref.load %arg6[%c44_86] : memref<81xf32, #tpu.memory_space<smem>>
    %c45_87 = arith.constant 45 : index
    %479 = memref.load %arg6[%c45_87] : memref<81xf32, #tpu.memory_space<smem>>
    %c46_88 = arith.constant 46 : index
    %480 = memref.load %arg6[%c46_88] : memref<81xf32, #tpu.memory_space<smem>>
    %c47_89 = arith.constant 47 : index
    %481 = memref.load %arg6[%c47_89] : memref<81xf32, #tpu.memory_space<smem>>
    %c48_90 = arith.constant 48 : index
    %482 = memref.load %arg6[%c48_90] : memref<81xf32, #tpu.memory_space<smem>>
    %c49_91 = arith.constant 49 : index
    %483 = memref.load %arg6[%c49_91] : memref<81xf32, #tpu.memory_space<smem>>
    %c50_92 = arith.constant 50 : index
    %484 = memref.load %arg6[%c50_92] : memref<81xf32, #tpu.memory_space<smem>>
    %c51_93 = arith.constant 51 : index
    %485 = memref.load %arg6[%c51_93] : memref<81xf32, #tpu.memory_space<smem>>
    %c52_94 = arith.constant 52 : index
    %486 = memref.load %arg6[%c52_94] : memref<81xf32, #tpu.memory_space<smem>>
    %c53_95 = arith.constant 53 : index
    %487 = memref.load %arg6[%c53_95] : memref<81xf32, #tpu.memory_space<smem>>
    %c54_96 = arith.constant 54 : index
    %488 = memref.load %arg6[%c54_96] : memref<81xf32, #tpu.memory_space<smem>>
    %c55_97 = arith.constant 55 : index
    %489 = memref.load %arg6[%c55_97] : memref<81xf32, #tpu.memory_space<smem>>
    %c56_98 = arith.constant 56 : index
    %490 = memref.load %arg6[%c56_98] : memref<81xf32, #tpu.memory_space<smem>>
    %c57_99 = arith.constant 57 : index
    %491 = memref.load %arg6[%c57_99] : memref<81xf32, #tpu.memory_space<smem>>
    %c58_100 = arith.constant 58 : index
    %492 = memref.load %arg6[%c58_100] : memref<81xf32, #tpu.memory_space<smem>>
    %c59_101 = arith.constant 59 : index
    %493 = memref.load %arg6[%c59_101] : memref<81xf32, #tpu.memory_space<smem>>
    %c60_102 = arith.constant 60 : index
    %494 = memref.load %arg6[%c60_102] : memref<81xf32, #tpu.memory_space<smem>>
    %c61_103 = arith.constant 61 : index
    %495 = memref.load %arg6[%c61_103] : memref<81xf32, #tpu.memory_space<smem>>
    %c62_104 = arith.constant 62 : index
    %496 = memref.load %arg6[%c62_104] : memref<81xf32, #tpu.memory_space<smem>>
    %c63_105 = arith.constant 63 : index
    %497 = memref.load %arg6[%c63_105] : memref<81xf32, #tpu.memory_space<smem>>
    %c64_106 = arith.constant 64 : index
    %498 = memref.load %arg6[%c64_106] : memref<81xf32, #tpu.memory_space<smem>>
    %c65_107 = arith.constant 65 : index
    %499 = memref.load %arg6[%c65_107] : memref<81xf32, #tpu.memory_space<smem>>
    %c66_108 = arith.constant 66 : index
    %500 = memref.load %arg6[%c66_108] : memref<81xf32, #tpu.memory_space<smem>>
    %c67_109 = arith.constant 67 : index
    %501 = memref.load %arg6[%c67_109] : memref<81xf32, #tpu.memory_space<smem>>
    %c68_110 = arith.constant 68 : index
    %502 = memref.load %arg6[%c68_110] : memref<81xf32, #tpu.memory_space<smem>>
    %c69_111 = arith.constant 69 : index
    %503 = memref.load %arg6[%c69_111] : memref<81xf32, #tpu.memory_space<smem>>
    %c70_112 = arith.constant 70 : index
    %504 = memref.load %arg6[%c70_112] : memref<81xf32, #tpu.memory_space<smem>>
    %c71_113 = arith.constant 71 : index
    %505 = memref.load %arg6[%c71_113] : memref<81xf32, #tpu.memory_space<smem>>
    %c72_114 = arith.constant 72 : index
    %506 = memref.load %arg6[%c72_114] : memref<81xf32, #tpu.memory_space<smem>>
    %c73_115 = arith.constant 73 : index
    %507 = memref.load %arg6[%c73_115] : memref<81xf32, #tpu.memory_space<smem>>
    %c74_116 = arith.constant 74 : index
    %508 = memref.load %arg6[%c74_116] : memref<81xf32, #tpu.memory_space<smem>>
    %c75_117 = arith.constant 75 : index
    %509 = memref.load %arg6[%c75_117] : memref<81xf32, #tpu.memory_space<smem>>
    %c76_118 = arith.constant 76 : index
    %510 = memref.load %arg6[%c76_118] : memref<81xf32, #tpu.memory_space<smem>>
    %c77_119 = arith.constant 77 : index
    %511 = memref.load %arg6[%c77_119] : memref<81xf32, #tpu.memory_space<smem>>
    %c78_120 = arith.constant 78 : index
    %512 = memref.load %arg6[%c78_120] : memref<81xf32, #tpu.memory_space<smem>>
    %c79_121 = arith.constant 79 : index
    %513 = memref.load %arg6[%c79_121] : memref<81xf32, #tpu.memory_space<smem>>
    %c80_122 = arith.constant 80 : index
    %514 = memref.load %arg6[%c80_122] : memref<81xf32, #tpu.memory_space<smem>>
    %c0_123 = arith.constant 0 : index
    %515 = memref.load %arg7[%c0_123] : memref<3xf32, #tpu.memory_space<smem>>
    %516 = vector.broadcast %515 : f32 to vector<24x128xf32>
    %c1_124 = arith.constant 1 : index
    %517 = memref.load %arg7[%c1_124] : memref<3xf32, #tpu.memory_space<smem>>
    %518 = vector.broadcast %517 : f32 to vector<24x128xf32>
    %c2_125 = arith.constant 2 : index
    %519 = memref.load %arg7[%c2_125] : memref<3xf32, #tpu.memory_space<smem>>
    %520 = vector.broadcast %519 : f32 to vector<24x128xf32>
    %521 = vector.extract_strided_slice %425 {offsets = [0, 0], sizes = [24, 127], strides = [1, 1]} : vector<24x128xf32> to vector<24x127xf32>
    %522 = tpu.concatenate %16, %521 in 1 : vector<24x1xf32>, vector<24x127xf32> -> vector<24x128xf32>
    %523 = vector.extract_strided_slice %425 {offsets = [0, 1], sizes = [24, 127], strides = [1, 1]} : vector<24x128xf32> to vector<24x127xf32>
    %524 = tpu.concatenate %523, %16 in 1 : vector<24x127xf32>, vector<24x1xf32> -> vector<24x128xf32>
    %525 = vector.extract_strided_slice %522 {offsets = [0, 0], sizes = [23, 128], strides = [1, 1]} : vector<24x128xf32> to vector<23x128xf32>
    %526 = tpu.concatenate %15, %525 in 0 : vector<1x128xf32>, vector<23x128xf32> -> vector<24x128xf32>
    %527 = vector.extract_strided_slice %425 {offsets = [0, 0], sizes = [23, 128], strides = [1, 1]} : vector<24x128xf32> to vector<23x128xf32>
    %528 = tpu.concatenate %15, %527 in 0 : vector<1x128xf32>, vector<23x128xf32> -> vector<24x128xf32>
    %529 = vector.extract_strided_slice %524 {offsets = [0, 0], sizes = [23, 128], strides = [1, 1]} : vector<24x128xf32> to vector<23x128xf32>
    %530 = tpu.concatenate %15, %529 in 0 : vector<1x128xf32>, vector<23x128xf32> -> vector<24x128xf32>
    %531 = vector.extract_strided_slice %522 {offsets = [1, 0], sizes = [23, 128], strides = [1, 1]} : vector<24x128xf32> to vector<23x128xf32>
    %532 = tpu.concatenate %531, %15 in 0 : vector<23x128xf32>, vector<1x128xf32> -> vector<24x128xf32>
    %533 = vector.extract_strided_slice %425 {offsets = [1, 0], sizes = [23, 128], strides = [1, 1]} : vector<24x128xf32> to vector<23x128xf32>
    %534 = tpu.concatenate %533, %15 in 0 : vector<23x128xf32>, vector<1x128xf32> -> vector<24x128xf32>
    %535 = vector.extract_strided_slice %524 {offsets = [1, 0], sizes = [23, 128], strides = [1, 1]} : vector<24x128xf32> to vector<23x128xf32>
    %536 = tpu.concatenate %535, %15 in 0 : vector<23x128xf32>, vector<1x128xf32> -> vector<24x128xf32>
    %537 = vector.broadcast %434 : f32 to vector<24x128xf32>
    %538 = arith.mulf %526, %537 : vector<24x128xf32>
    %539 = vector.broadcast %435 : f32 to vector<24x128xf32>
    %540 = arith.mulf %528, %539 : vector<24x128xf32>
    %541 = arith.addf %538, %540 : vector<24x128xf32>
    %542 = vector.broadcast %436 : f32 to vector<24x128xf32>
    %543 = arith.mulf %530, %542 : vector<24x128xf32>
    %544 = arith.addf %541, %543 : vector<24x128xf32>
    %545 = vector.broadcast %437 : f32 to vector<24x128xf32>
    %546 = arith.mulf %522, %545 : vector<24x128xf32>
    %547 = arith.addf %544, %546 : vector<24x128xf32>
    %548 = vector.broadcast %438 : f32 to vector<24x128xf32>
    %549 = arith.mulf %425, %548 : vector<24x128xf32>
    %550 = arith.addf %547, %549 : vector<24x128xf32>
    %551 = vector.broadcast %439 : f32 to vector<24x128xf32>
    %552 = arith.mulf %524, %551 : vector<24x128xf32>
    %553 = arith.addf %550, %552 : vector<24x128xf32>
    %554 = vector.broadcast %440 : f32 to vector<24x128xf32>
    %555 = arith.mulf %532, %554 : vector<24x128xf32>
    %556 = arith.addf %553, %555 : vector<24x128xf32>
    %557 = vector.broadcast %441 : f32 to vector<24x128xf32>
    %558 = arith.mulf %534, %557 : vector<24x128xf32>
    %559 = arith.addf %556, %558 : vector<24x128xf32>
    %560 = vector.broadcast %442 : f32 to vector<24x128xf32>
    %561 = arith.mulf %536, %560 : vector<24x128xf32>
    %562 = arith.addf %559, %561 : vector<24x128xf32>
    %563 = arith.addf %516, %562 : vector<24x128xf32>
    %564 = vector.broadcast %461 : f32 to vector<24x128xf32>
    %565 = arith.mulf %526, %564 : vector<24x128xf32>
    %566 = vector.broadcast %462 : f32 to vector<24x128xf32>
    %567 = arith.mulf %528, %566 : vector<24x128xf32>
    %568 = arith.addf %565, %567 : vector<24x128xf32>
    %569 = vector.broadcast %463 : f32 to vector<24x128xf32>
    %570 = arith.mulf %530, %569 : vector<24x128xf32>
    %571 = arith.addf %568, %570 : vector<24x128xf32>
    %572 = vector.broadcast %464 : f32 to vector<24x128xf32>
    %573 = arith.mulf %522, %572 : vector<24x128xf32>
    %574 = arith.addf %571, %573 : vector<24x128xf32>
    %575 = vector.broadcast %465 : f32 to vector<24x128xf32>
    %576 = arith.mulf %425, %575 : vector<24x128xf32>
    %577 = arith.addf %574, %576 : vector<24x128xf32>
    %578 = vector.broadcast %466 : f32 to vector<24x128xf32>
    %579 = arith.mulf %524, %578 : vector<24x128xf32>
    %580 = arith.addf %577, %579 : vector<24x128xf32>
    %581 = vector.broadcast %467 : f32 to vector<24x128xf32>
    %582 = arith.mulf %532, %581 : vector<24x128xf32>
    %583 = arith.addf %580, %582 : vector<24x128xf32>
    %584 = vector.broadcast %468 : f32 to vector<24x128xf32>
    %585 = arith.mulf %534, %584 : vector<24x128xf32>
    %586 = arith.addf %583, %585 : vector<24x128xf32>
    %587 = vector.broadcast %469 : f32 to vector<24x128xf32>
    %588 = arith.mulf %536, %587 : vector<24x128xf32>
    %589 = arith.addf %586, %588 : vector<24x128xf32>
    %590 = arith.addf %518, %589 : vector<24x128xf32>
    %591 = vector.broadcast %488 : f32 to vector<24x128xf32>
    %592 = arith.mulf %526, %591 : vector<24x128xf32>
    %593 = vector.broadcast %489 : f32 to vector<24x128xf32>
    %594 = arith.mulf %528, %593 : vector<24x128xf32>
    %595 = arith.addf %592, %594 : vector<24x128xf32>
    %596 = vector.broadcast %490 : f32 to vector<24x128xf32>
    %597 = arith.mulf %530, %596 : vector<24x128xf32>
    %598 = arith.addf %595, %597 : vector<24x128xf32>
    %599 = vector.broadcast %491 : f32 to vector<24x128xf32>
    %600 = arith.mulf %522, %599 : vector<24x128xf32>
    %601 = arith.addf %598, %600 : vector<24x128xf32>
    %602 = vector.broadcast %492 : f32 to vector<24x128xf32>
    %603 = arith.mulf %425, %602 : vector<24x128xf32>
    %604 = arith.addf %601, %603 : vector<24x128xf32>
    %605 = vector.broadcast %493 : f32 to vector<24x128xf32>
    %606 = arith.mulf %524, %605 : vector<24x128xf32>
    %607 = arith.addf %604, %606 : vector<24x128xf32>
    %608 = vector.broadcast %494 : f32 to vector<24x128xf32>
    %609 = arith.mulf %532, %608 : vector<24x128xf32>
    %610 = arith.addf %607, %609 : vector<24x128xf32>
    %611 = vector.broadcast %495 : f32 to vector<24x128xf32>
    %612 = arith.mulf %534, %611 : vector<24x128xf32>
    %613 = arith.addf %610, %612 : vector<24x128xf32>
    %614 = vector.broadcast %496 : f32 to vector<24x128xf32>
    %615 = arith.mulf %536, %614 : vector<24x128xf32>
    %616 = arith.addf %613, %615 : vector<24x128xf32>
    %617 = arith.addf %520, %616 : vector<24x128xf32>
    %618 = vector.extract_strided_slice %429 {offsets = [0, 0], sizes = [24, 127], strides = [1, 1]} : vector<24x128xf32> to vector<24x127xf32>
    %619 = tpu.concatenate %16, %618 in 1 : vector<24x1xf32>, vector<24x127xf32> -> vector<24x128xf32>
    %620 = vector.extract_strided_slice %429 {offsets = [0, 1], sizes = [24, 127], strides = [1, 1]} : vector<24x128xf32> to vector<24x127xf32>
    %621 = tpu.concatenate %620, %16 in 1 : vector<24x127xf32>, vector<24x1xf32> -> vector<24x128xf32>
    %622 = vector.extract_strided_slice %619 {offsets = [0, 0], sizes = [23, 128], strides = [1, 1]} : vector<24x128xf32> to vector<23x128xf32>
    %623 = tpu.concatenate %15, %622 in 0 : vector<1x128xf32>, vector<23x128xf32> -> vector<24x128xf32>
    %624 = vector.extract_strided_slice %429 {offsets = [0, 0], sizes = [23, 128], strides = [1, 1]} : vector<24x128xf32> to vector<23x128xf32>
    %625 = tpu.concatenate %15, %624 in 0 : vector<1x128xf32>, vector<23x128xf32> -> vector<24x128xf32>
    %626 = vector.extract_strided_slice %621 {offsets = [0, 0], sizes = [23, 128], strides = [1, 1]} : vector<24x128xf32> to vector<23x128xf32>
    %627 = tpu.concatenate %15, %626 in 0 : vector<1x128xf32>, vector<23x128xf32> -> vector<24x128xf32>
    %628 = vector.extract_strided_slice %619 {offsets = [1, 0], sizes = [23, 128], strides = [1, 1]} : vector<24x128xf32> to vector<23x128xf32>
    %629 = tpu.concatenate %628, %15 in 0 : vector<23x128xf32>, vector<1x128xf32> -> vector<24x128xf32>
    %630 = vector.extract_strided_slice %429 {offsets = [1, 0], sizes = [23, 128], strides = [1, 1]} : vector<24x128xf32> to vector<23x128xf32>
    %631 = tpu.concatenate %630, %15 in 0 : vector<23x128xf32>, vector<1x128xf32> -> vector<24x128xf32>
    %632 = vector.extract_strided_slice %621 {offsets = [1, 0], sizes = [23, 128], strides = [1, 1]} : vector<24x128xf32> to vector<23x128xf32>
    %633 = tpu.concatenate %632, %15 in 0 : vector<23x128xf32>, vector<1x128xf32> -> vector<24x128xf32>
    %634 = vector.broadcast %443 : f32 to vector<24x128xf32>
    %635 = arith.mulf %623, %634 : vector<24x128xf32>
    %636 = vector.broadcast %444 : f32 to vector<24x128xf32>
    %637 = arith.mulf %625, %636 : vector<24x128xf32>
    %638 = arith.addf %635, %637 : vector<24x128xf32>
    %639 = vector.broadcast %445 : f32 to vector<24x128xf32>
    %640 = arith.mulf %627, %639 : vector<24x128xf32>
    %641 = arith.addf %638, %640 : vector<24x128xf32>
    %642 = vector.broadcast %446 : f32 to vector<24x128xf32>
    %643 = arith.mulf %619, %642 : vector<24x128xf32>
    %644 = arith.addf %641, %643 : vector<24x128xf32>
    %645 = vector.broadcast %447 : f32 to vector<24x128xf32>
    %646 = arith.mulf %429, %645 : vector<24x128xf32>
    %647 = arith.addf %644, %646 : vector<24x128xf32>
    %648 = vector.broadcast %448 : f32 to vector<24x128xf32>
    %649 = arith.mulf %621, %648 : vector<24x128xf32>
    %650 = arith.addf %647, %649 : vector<24x128xf32>
    %651 = vector.broadcast %449 : f32 to vector<24x128xf32>
    %652 = arith.mulf %629, %651 : vector<24x128xf32>
    %653 = arith.addf %650, %652 : vector<24x128xf32>
    %654 = vector.broadcast %450 : f32 to vector<24x128xf32>
    %655 = arith.mulf %631, %654 : vector<24x128xf32>
    %656 = arith.addf %653, %655 : vector<24x128xf32>
    %657 = vector.broadcast %451 : f32 to vector<24x128xf32>
    %658 = arith.mulf %633, %657 : vector<24x128xf32>
    %659 = arith.addf %656, %658 : vector<24x128xf32>
    %660 = arith.addf %563, %659 : vector<24x128xf32>
    %661 = vector.broadcast %470 : f32 to vector<24x128xf32>
    %662 = arith.mulf %623, %661 : vector<24x128xf32>
    %663 = vector.broadcast %471 : f32 to vector<24x128xf32>
    %664 = arith.mulf %625, %663 : vector<24x128xf32>
    %665 = arith.addf %662, %664 : vector<24x128xf32>
    %666 = vector.broadcast %472 : f32 to vector<24x128xf32>
    %667 = arith.mulf %627, %666 : vector<24x128xf32>
    %668 = arith.addf %665, %667 : vector<24x128xf32>
    %669 = vector.broadcast %473 : f32 to vector<24x128xf32>
    %670 = arith.mulf %619, %669 : vector<24x128xf32>
    %671 = arith.addf %668, %670 : vector<24x128xf32>
    %672 = vector.broadcast %474 : f32 to vector<24x128xf32>
    %673 = arith.mulf %429, %672 : vector<24x128xf32>
    %674 = arith.addf %671, %673 : vector<24x128xf32>
    %675 = vector.broadcast %475 : f32 to vector<24x128xf32>
    %676 = arith.mulf %621, %675 : vector<24x128xf32>
    %677 = arith.addf %674, %676 : vector<24x128xf32>
    %678 = vector.broadcast %476 : f32 to vector<24x128xf32>
    %679 = arith.mulf %629, %678 : vector<24x128xf32>
    %680 = arith.addf %677, %679 : vector<24x128xf32>
    %681 = vector.broadcast %477 : f32 to vector<24x128xf32>
    %682 = arith.mulf %631, %681 : vector<24x128xf32>
    %683 = arith.addf %680, %682 : vector<24x128xf32>
    %684 = vector.broadcast %478 : f32 to vector<24x128xf32>
    %685 = arith.mulf %633, %684 : vector<24x128xf32>
    %686 = arith.addf %683, %685 : vector<24x128xf32>
    %687 = arith.addf %590, %686 : vector<24x128xf32>
    %688 = vector.broadcast %497 : f32 to vector<24x128xf32>
    %689 = arith.mulf %623, %688 : vector<24x128xf32>
    %690 = vector.broadcast %498 : f32 to vector<24x128xf32>
    %691 = arith.mulf %625, %690 : vector<24x128xf32>
    %692 = arith.addf %689, %691 : vector<24x128xf32>
    %693 = vector.broadcast %499 : f32 to vector<24x128xf32>
    %694 = arith.mulf %627, %693 : vector<24x128xf32>
    %695 = arith.addf %692, %694 : vector<24x128xf32>
    %696 = vector.broadcast %500 : f32 to vector<24x128xf32>
    %697 = arith.mulf %619, %696 : vector<24x128xf32>
    %698 = arith.addf %695, %697 : vector<24x128xf32>
    %699 = vector.broadcast %501 : f32 to vector<24x128xf32>
    %700 = arith.mulf %429, %699 : vector<24x128xf32>
    %701 = arith.addf %698, %700 : vector<24x128xf32>
    %702 = vector.broadcast %502 : f32 to vector<24x128xf32>
    %703 = arith.mulf %621, %702 : vector<24x128xf32>
    %704 = arith.addf %701, %703 : vector<24x128xf32>
    %705 = vector.broadcast %503 : f32 to vector<24x128xf32>
    %706 = arith.mulf %629, %705 : vector<24x128xf32>
    %707 = arith.addf %704, %706 : vector<24x128xf32>
    %708 = vector.broadcast %504 : f32 to vector<24x128xf32>
    %709 = arith.mulf %631, %708 : vector<24x128xf32>
    %710 = arith.addf %707, %709 : vector<24x128xf32>
    %711 = vector.broadcast %505 : f32 to vector<24x128xf32>
    %712 = arith.mulf %633, %711 : vector<24x128xf32>
    %713 = arith.addf %710, %712 : vector<24x128xf32>
    %714 = arith.addf %617, %713 : vector<24x128xf32>
    %715 = vector.extract_strided_slice %433 {offsets = [0, 0], sizes = [24, 127], strides = [1, 1]} : vector<24x128xf32> to vector<24x127xf32>
    %716 = tpu.concatenate %16, %715 in 1 : vector<24x1xf32>, vector<24x127xf32> -> vector<24x128xf32>
    %717 = vector.extract_strided_slice %433 {offsets = [0, 1], sizes = [24, 127], strides = [1, 1]} : vector<24x128xf32> to vector<24x127xf32>
    %718 = tpu.concatenate %717, %16 in 1 : vector<24x127xf32>, vector<24x1xf32> -> vector<24x128xf32>
    %719 = vector.extract_strided_slice %716 {offsets = [0, 0], sizes = [23, 128], strides = [1, 1]} : vector<24x128xf32> to vector<23x128xf32>
    %720 = tpu.concatenate %15, %719 in 0 : vector<1x128xf32>, vector<23x128xf32> -> vector<24x128xf32>
    %721 = vector.extract_strided_slice %433 {offsets = [0, 0], sizes = [23, 128], strides = [1, 1]} : vector<24x128xf32> to vector<23x128xf32>
    %722 = tpu.concatenate %15, %721 in 0 : vector<1x128xf32>, vector<23x128xf32> -> vector<24x128xf32>
    %723 = vector.extract_strided_slice %718 {offsets = [0, 0], sizes = [23, 128], strides = [1, 1]} : vector<24x128xf32> to vector<23x128xf32>
    %724 = tpu.concatenate %15, %723 in 0 : vector<1x128xf32>, vector<23x128xf32> -> vector<24x128xf32>
    %725 = vector.extract_strided_slice %716 {offsets = [1, 0], sizes = [23, 128], strides = [1, 1]} : vector<24x128xf32> to vector<23x128xf32>
    %726 = tpu.concatenate %725, %15 in 0 : vector<23x128xf32>, vector<1x128xf32> -> vector<24x128xf32>
    %727 = vector.extract_strided_slice %433 {offsets = [1, 0], sizes = [23, 128], strides = [1, 1]} : vector<24x128xf32> to vector<23x128xf32>
    %728 = tpu.concatenate %727, %15 in 0 : vector<23x128xf32>, vector<1x128xf32> -> vector<24x128xf32>
    %729 = vector.extract_strided_slice %718 {offsets = [1, 0], sizes = [23, 128], strides = [1, 1]} : vector<24x128xf32> to vector<23x128xf32>
    %730 = tpu.concatenate %729, %15 in 0 : vector<23x128xf32>, vector<1x128xf32> -> vector<24x128xf32>
    %731 = vector.broadcast %452 : f32 to vector<24x128xf32>
    %732 = arith.mulf %720, %731 : vector<24x128xf32>
    %733 = vector.broadcast %453 : f32 to vector<24x128xf32>
    %734 = arith.mulf %722, %733 : vector<24x128xf32>
    %735 = arith.addf %732, %734 : vector<24x128xf32>
    %736 = vector.broadcast %454 : f32 to vector<24x128xf32>
    %737 = arith.mulf %724, %736 : vector<24x128xf32>
    %738 = arith.addf %735, %737 : vector<24x128xf32>
    %739 = vector.broadcast %455 : f32 to vector<24x128xf32>
    %740 = arith.mulf %716, %739 : vector<24x128xf32>
    %741 = arith.addf %738, %740 : vector<24x128xf32>
    %742 = vector.broadcast %456 : f32 to vector<24x128xf32>
    %743 = arith.mulf %433, %742 : vector<24x128xf32>
    %744 = arith.addf %741, %743 : vector<24x128xf32>
    %745 = vector.broadcast %457 : f32 to vector<24x128xf32>
    %746 = arith.mulf %718, %745 : vector<24x128xf32>
    %747 = arith.addf %744, %746 : vector<24x128xf32>
    %748 = vector.broadcast %458 : f32 to vector<24x128xf32>
    %749 = arith.mulf %726, %748 : vector<24x128xf32>
    %750 = arith.addf %747, %749 : vector<24x128xf32>
    %751 = vector.broadcast %459 : f32 to vector<24x128xf32>
    %752 = arith.mulf %728, %751 : vector<24x128xf32>
    %753 = arith.addf %750, %752 : vector<24x128xf32>
    %754 = vector.broadcast %460 : f32 to vector<24x128xf32>
    %755 = arith.mulf %730, %754 : vector<24x128xf32>
    %756 = arith.addf %753, %755 : vector<24x128xf32>
    %757 = arith.addf %660, %756 : vector<24x128xf32>
    %758 = vector.broadcast %479 : f32 to vector<24x128xf32>
    %759 = arith.mulf %720, %758 : vector<24x128xf32>
    %760 = vector.broadcast %480 : f32 to vector<24x128xf32>
    %761 = arith.mulf %722, %760 : vector<24x128xf32>
    %762 = arith.addf %759, %761 : vector<24x128xf32>
    %763 = vector.broadcast %481 : f32 to vector<24x128xf32>
    %764 = arith.mulf %724, %763 : vector<24x128xf32>
    %765 = arith.addf %762, %764 : vector<24x128xf32>
    %766 = vector.broadcast %482 : f32 to vector<24x128xf32>
    %767 = arith.mulf %716, %766 : vector<24x128xf32>
    %768 = arith.addf %765, %767 : vector<24x128xf32>
    %769 = vector.broadcast %483 : f32 to vector<24x128xf32>
    %770 = arith.mulf %433, %769 : vector<24x128xf32>
    %771 = arith.addf %768, %770 : vector<24x128xf32>
    %772 = vector.broadcast %484 : f32 to vector<24x128xf32>
    %773 = arith.mulf %718, %772 : vector<24x128xf32>
    %774 = arith.addf %771, %773 : vector<24x128xf32>
    %775 = vector.broadcast %485 : f32 to vector<24x128xf32>
    %776 = arith.mulf %726, %775 : vector<24x128xf32>
    %777 = arith.addf %774, %776 : vector<24x128xf32>
    %778 = vector.broadcast %486 : f32 to vector<24x128xf32>
    %779 = arith.mulf %728, %778 : vector<24x128xf32>
    %780 = arith.addf %777, %779 : vector<24x128xf32>
    %781 = vector.broadcast %487 : f32 to vector<24x128xf32>
    %782 = arith.mulf %730, %781 : vector<24x128xf32>
    %783 = arith.addf %780, %782 : vector<24x128xf32>
    %784 = arith.addf %687, %783 : vector<24x128xf32>
    %785 = vector.broadcast %506 : f32 to vector<24x128xf32>
    %786 = arith.mulf %720, %785 : vector<24x128xf32>
    %787 = vector.broadcast %507 : f32 to vector<24x128xf32>
    %788 = arith.mulf %722, %787 : vector<24x128xf32>
    %789 = arith.addf %786, %788 : vector<24x128xf32>
    %790 = vector.broadcast %508 : f32 to vector<24x128xf32>
    %791 = arith.mulf %724, %790 : vector<24x128xf32>
    %792 = arith.addf %789, %791 : vector<24x128xf32>
    %793 = vector.broadcast %509 : f32 to vector<24x128xf32>
    %794 = arith.mulf %716, %793 : vector<24x128xf32>
    %795 = arith.addf %792, %794 : vector<24x128xf32>
    %796 = vector.broadcast %510 : f32 to vector<24x128xf32>
    %797 = arith.mulf %433, %796 : vector<24x128xf32>
    %798 = arith.addf %795, %797 : vector<24x128xf32>
    %799 = vector.broadcast %511 : f32 to vector<24x128xf32>
    %800 = arith.mulf %718, %799 : vector<24x128xf32>
    %801 = arith.addf %798, %800 : vector<24x128xf32>
    %802 = vector.broadcast %512 : f32 to vector<24x128xf32>
    %803 = arith.mulf %726, %802 : vector<24x128xf32>
    %804 = arith.addf %801, %803 : vector<24x128xf32>
    %805 = vector.broadcast %513 : f32 to vector<24x128xf32>
    %806 = arith.mulf %728, %805 : vector<24x128xf32>
    %807 = arith.addf %804, %806 : vector<24x128xf32>
    %808 = vector.broadcast %514 : f32 to vector<24x128xf32>
    %809 = arith.mulf %730, %808 : vector<24x128xf32>
    %810 = arith.addf %807, %809 : vector<24x128xf32>
    %811 = arith.addf %714, %810 : vector<24x128xf32>
    %c0_126 = arith.constant 0 : index
    %812 = memref.load %arg8[%c0_126] : memref<3xf32, #tpu.memory_space<smem>>
    %813 = vector.broadcast %812 : f32 to vector<24x128xf32>
    %814 = arith.mulf %757, %813 : vector<24x128xf32>
    %c0_127 = arith.constant 0 : index
    %815 = memref.load %arg9[%c0_127] : memref<3xf32, #tpu.memory_space<smem>>
    %816 = vector.broadcast %815 : f32 to vector<24x128xf32>
    %817 = arith.addf %814, %816 : vector<24x128xf32>
    %cst_128 = arith.constant 0.000000e+00 : f32
    %818 = vector.broadcast %cst_128 : f32 to vector<24x128xf32>
    %819 = arith.maximumf %817, %818 : vector<24x128xf32>
    %820 = arith.addf %425, %819 : vector<24x128xf32>
    %cst_129 = arith.constant 0.000000e+00 : f32
    %821 = vector.broadcast %cst_129 : f32 to vector<24x128xf32>
    %822 = arith.select %14, %820, %821 : vector<24x128xi1>, vector<24x128xf32>
    %c1_130 = arith.constant 1 : index
    %823 = memref.load %arg8[%c1_130] : memref<3xf32, #tpu.memory_space<smem>>
    %824 = vector.broadcast %823 : f32 to vector<24x128xf32>
    %825 = arith.mulf %784, %824 : vector<24x128xf32>
    %c1_131 = arith.constant 1 : index
    %826 = memref.load %arg9[%c1_131] : memref<3xf32, #tpu.memory_space<smem>>
    %827 = vector.broadcast %826 : f32 to vector<24x128xf32>
    %828 = arith.addf %825, %827 : vector<24x128xf32>
    %cst_132 = arith.constant 0.000000e+00 : f32
    %829 = vector.broadcast %cst_132 : f32 to vector<24x128xf32>
    %830 = arith.maximumf %828, %829 : vector<24x128xf32>
    %831 = arith.addf %429, %830 : vector<24x128xf32>
    %cst_133 = arith.constant 0.000000e+00 : f32
    %832 = vector.broadcast %cst_133 : f32 to vector<24x128xf32>
    %833 = arith.select %14, %831, %832 : vector<24x128xi1>, vector<24x128xf32>
    %c2_134 = arith.constant 2 : index
    %834 = memref.load %arg8[%c2_134] : memref<3xf32, #tpu.memory_space<smem>>
    %835 = vector.broadcast %834 : f32 to vector<24x128xf32>
    %836 = arith.mulf %811, %835 : vector<24x128xf32>
    %c2_135 = arith.constant 2 : index
    %837 = memref.load %arg9[%c2_135] : memref<3xf32, #tpu.memory_space<smem>>
    %838 = vector.broadcast %837 : f32 to vector<24x128xf32>
    %839 = arith.addf %836, %838 : vector<24x128xf32>
    %cst_136 = arith.constant 0.000000e+00 : f32
    %840 = vector.broadcast %cst_136 : f32 to vector<24x128xf32>
    %841 = arith.maximumf %839, %840 : vector<24x128xf32>
    %842 = arith.addf %433, %841 : vector<24x128xf32>
    %cst_137 = arith.constant 0.000000e+00 : f32
    %843 = vector.broadcast %cst_137 : f32 to vector<24x128xf32>
    %844 = arith.select %14, %842, %843 : vector<24x128xi1>, vector<24x128xf32>
    %c0_138 = arith.constant 0 : index
    %845 = memref.load %arg10[%c0_138] : memref<81xf32, #tpu.memory_space<smem>>
    %c1_139 = arith.constant 1 : index
    %846 = memref.load %arg10[%c1_139] : memref<81xf32, #tpu.memory_space<smem>>
    %c2_140 = arith.constant 2 : index
    %847 = memref.load %arg10[%c2_140] : memref<81xf32, #tpu.memory_space<smem>>
    %c3_141 = arith.constant 3 : index
    %848 = memref.load %arg10[%c3_141] : memref<81xf32, #tpu.memory_space<smem>>
    %c4_142 = arith.constant 4 : index
    %849 = memref.load %arg10[%c4_142] : memref<81xf32, #tpu.memory_space<smem>>
    %c5_143 = arith.constant 5 : index
    %850 = memref.load %arg10[%c5_143] : memref<81xf32, #tpu.memory_space<smem>>
    %c6_144 = arith.constant 6 : index
    %851 = memref.load %arg10[%c6_144] : memref<81xf32, #tpu.memory_space<smem>>
    %c7_145 = arith.constant 7 : index
    %852 = memref.load %arg10[%c7_145] : memref<81xf32, #tpu.memory_space<smem>>
    %c8_146 = arith.constant 8 : index
    %853 = memref.load %arg10[%c8_146] : memref<81xf32, #tpu.memory_space<smem>>
    %c9_147 = arith.constant 9 : index
    %854 = memref.load %arg10[%c9_147] : memref<81xf32, #tpu.memory_space<smem>>
    %c10_148 = arith.constant 10 : index
    %855 = memref.load %arg10[%c10_148] : memref<81xf32, #tpu.memory_space<smem>>
    %c11_149 = arith.constant 11 : index
    %856 = memref.load %arg10[%c11_149] : memref<81xf32, #tpu.memory_space<smem>>
    %c12_150 = arith.constant 12 : index
    %857 = memref.load %arg10[%c12_150] : memref<81xf32, #tpu.memory_space<smem>>
    %c13_151 = arith.constant 13 : index
    %858 = memref.load %arg10[%c13_151] : memref<81xf32, #tpu.memory_space<smem>>
    %c14_152 = arith.constant 14 : index
    %859 = memref.load %arg10[%c14_152] : memref<81xf32, #tpu.memory_space<smem>>
    %c15_153 = arith.constant 15 : index
    %860 = memref.load %arg10[%c15_153] : memref<81xf32, #tpu.memory_space<smem>>
    %c16_154 = arith.constant 16 : index
    %861 = memref.load %arg10[%c16_154] : memref<81xf32, #tpu.memory_space<smem>>
    %c17_155 = arith.constant 17 : index
    %862 = memref.load %arg10[%c17_155] : memref<81xf32, #tpu.memory_space<smem>>
    %c18_156 = arith.constant 18 : index
    %863 = memref.load %arg10[%c18_156] : memref<81xf32, #tpu.memory_space<smem>>
    %c19_157 = arith.constant 19 : index
    %864 = memref.load %arg10[%c19_157] : memref<81xf32, #tpu.memory_space<smem>>
    %c20_158 = arith.constant 20 : index
    %865 = memref.load %arg10[%c20_158] : memref<81xf32, #tpu.memory_space<smem>>
    %c21_159 = arith.constant 21 : index
    %866 = memref.load %arg10[%c21_159] : memref<81xf32, #tpu.memory_space<smem>>
    %c22_160 = arith.constant 22 : index
    %867 = memref.load %arg10[%c22_160] : memref<81xf32, #tpu.memory_space<smem>>
    %c23_161 = arith.constant 23 : index
    %868 = memref.load %arg10[%c23_161] : memref<81xf32, #tpu.memory_space<smem>>
    %c24_162 = arith.constant 24 : index
    %869 = memref.load %arg10[%c24_162] : memref<81xf32, #tpu.memory_space<smem>>
    %c25_163 = arith.constant 25 : index
    %870 = memref.load %arg10[%c25_163] : memref<81xf32, #tpu.memory_space<smem>>
    %c26_164 = arith.constant 26 : index
    %871 = memref.load %arg10[%c26_164] : memref<81xf32, #tpu.memory_space<smem>>
    %c27_165 = arith.constant 27 : index
    %872 = memref.load %arg10[%c27_165] : memref<81xf32, #tpu.memory_space<smem>>
    %c28_166 = arith.constant 28 : index
    %873 = memref.load %arg10[%c28_166] : memref<81xf32, #tpu.memory_space<smem>>
    %c29_167 = arith.constant 29 : index
    %874 = memref.load %arg10[%c29_167] : memref<81xf32, #tpu.memory_space<smem>>
    %c30_168 = arith.constant 30 : index
    %875 = memref.load %arg10[%c30_168] : memref<81xf32, #tpu.memory_space<smem>>
    %c31_169 = arith.constant 31 : index
    %876 = memref.load %arg10[%c31_169] : memref<81xf32, #tpu.memory_space<smem>>
    %c32_170 = arith.constant 32 : index
    %877 = memref.load %arg10[%c32_170] : memref<81xf32, #tpu.memory_space<smem>>
    %c33_171 = arith.constant 33 : index
    %878 = memref.load %arg10[%c33_171] : memref<81xf32, #tpu.memory_space<smem>>
    %c34_172 = arith.constant 34 : index
    %879 = memref.load %arg10[%c34_172] : memref<81xf32, #tpu.memory_space<smem>>
    %c35_173 = arith.constant 35 : index
    %880 = memref.load %arg10[%c35_173] : memref<81xf32, #tpu.memory_space<smem>>
    %c36_174 = arith.constant 36 : index
    %881 = memref.load %arg10[%c36_174] : memref<81xf32, #tpu.memory_space<smem>>
    %c37_175 = arith.constant 37 : index
    %882 = memref.load %arg10[%c37_175] : memref<81xf32, #tpu.memory_space<smem>>
    %c38_176 = arith.constant 38 : index
    %883 = memref.load %arg10[%c38_176] : memref<81xf32, #tpu.memory_space<smem>>
    %c39_177 = arith.constant 39 : index
    %884 = memref.load %arg10[%c39_177] : memref<81xf32, #tpu.memory_space<smem>>
    %c40_178 = arith.constant 40 : index
    %885 = memref.load %arg10[%c40_178] : memref<81xf32, #tpu.memory_space<smem>>
    %c41_179 = arith.constant 41 : index
    %886 = memref.load %arg10[%c41_179] : memref<81xf32, #tpu.memory_space<smem>>
    %c42_180 = arith.constant 42 : index
    %887 = memref.load %arg10[%c42_180] : memref<81xf32, #tpu.memory_space<smem>>
    %c43_181 = arith.constant 43 : index
    %888 = memref.load %arg10[%c43_181] : memref<81xf32, #tpu.memory_space<smem>>
    %c44_182 = arith.constant 44 : index
    %889 = memref.load %arg10[%c44_182] : memref<81xf32, #tpu.memory_space<smem>>
    %c45_183 = arith.constant 45 : index
    %890 = memref.load %arg10[%c45_183] : memref<81xf32, #tpu.memory_space<smem>>
    %c46_184 = arith.constant 46 : index
    %891 = memref.load %arg10[%c46_184] : memref<81xf32, #tpu.memory_space<smem>>
    %c47_185 = arith.constant 47 : index
    %892 = memref.load %arg10[%c47_185] : memref<81xf32, #tpu.memory_space<smem>>
    %c48_186 = arith.constant 48 : index
    %893 = memref.load %arg10[%c48_186] : memref<81xf32, #tpu.memory_space<smem>>
    %c49_187 = arith.constant 49 : index
    %894 = memref.load %arg10[%c49_187] : memref<81xf32, #tpu.memory_space<smem>>
    %c50_188 = arith.constant 50 : index
    %895 = memref.load %arg10[%c50_188] : memref<81xf32, #tpu.memory_space<smem>>
    %c51_189 = arith.constant 51 : index
    %896 = memref.load %arg10[%c51_189] : memref<81xf32, #tpu.memory_space<smem>>
    %c52_190 = arith.constant 52 : index
    %897 = memref.load %arg10[%c52_190] : memref<81xf32, #tpu.memory_space<smem>>
    %c53_191 = arith.constant 53 : index
    %898 = memref.load %arg10[%c53_191] : memref<81xf32, #tpu.memory_space<smem>>
    %c54_192 = arith.constant 54 : index
    %899 = memref.load %arg10[%c54_192] : memref<81xf32, #tpu.memory_space<smem>>
    %c55_193 = arith.constant 55 : index
    %900 = memref.load %arg10[%c55_193] : memref<81xf32, #tpu.memory_space<smem>>
    %c56_194 = arith.constant 56 : index
    %901 = memref.load %arg10[%c56_194] : memref<81xf32, #tpu.memory_space<smem>>
    %c57_195 = arith.constant 57 : index
    %902 = memref.load %arg10[%c57_195] : memref<81xf32, #tpu.memory_space<smem>>
    %c58_196 = arith.constant 58 : index
    %903 = memref.load %arg10[%c58_196] : memref<81xf32, #tpu.memory_space<smem>>
    %c59_197 = arith.constant 59 : index
    %904 = memref.load %arg10[%c59_197] : memref<81xf32, #tpu.memory_space<smem>>
    %c60_198 = arith.constant 60 : index
    %905 = memref.load %arg10[%c60_198] : memref<81xf32, #tpu.memory_space<smem>>
    %c61_199 = arith.constant 61 : index
    %906 = memref.load %arg10[%c61_199] : memref<81xf32, #tpu.memory_space<smem>>
    %c62_200 = arith.constant 62 : index
    %907 = memref.load %arg10[%c62_200] : memref<81xf32, #tpu.memory_space<smem>>
    %c63_201 = arith.constant 63 : index
    %908 = memref.load %arg10[%c63_201] : memref<81xf32, #tpu.memory_space<smem>>
    %c64_202 = arith.constant 64 : index
    %909 = memref.load %arg10[%c64_202] : memref<81xf32, #tpu.memory_space<smem>>
    %c65_203 = arith.constant 65 : index
    %910 = memref.load %arg10[%c65_203] : memref<81xf32, #tpu.memory_space<smem>>
    %c66_204 = arith.constant 66 : index
    %911 = memref.load %arg10[%c66_204] : memref<81xf32, #tpu.memory_space<smem>>
    %c67_205 = arith.constant 67 : index
    %912 = memref.load %arg10[%c67_205] : memref<81xf32, #tpu.memory_space<smem>>
    %c68_206 = arith.constant 68 : index
    %913 = memref.load %arg10[%c68_206] : memref<81xf32, #tpu.memory_space<smem>>
    %c69_207 = arith.constant 69 : index
    %914 = memref.load %arg10[%c69_207] : memref<81xf32, #tpu.memory_space<smem>>
    %c70_208 = arith.constant 70 : index
    %915 = memref.load %arg10[%c70_208] : memref<81xf32, #tpu.memory_space<smem>>
    %c71_209 = arith.constant 71 : index
    %916 = memref.load %arg10[%c71_209] : memref<81xf32, #tpu.memory_space<smem>>
    %c72_210 = arith.constant 72 : index
    %917 = memref.load %arg10[%c72_210] : memref<81xf32, #tpu.memory_space<smem>>
    %c73_211 = arith.constant 73 : index
    %918 = memref.load %arg10[%c73_211] : memref<81xf32, #tpu.memory_space<smem>>
    %c74_212 = arith.constant 74 : index
    %919 = memref.load %arg10[%c74_212] : memref<81xf32, #tpu.memory_space<smem>>
    %c75_213 = arith.constant 75 : index
    %920 = memref.load %arg10[%c75_213] : memref<81xf32, #tpu.memory_space<smem>>
    %c76_214 = arith.constant 76 : index
    %921 = memref.load %arg10[%c76_214] : memref<81xf32, #tpu.memory_space<smem>>
    %c77_215 = arith.constant 77 : index
    %922 = memref.load %arg10[%c77_215] : memref<81xf32, #tpu.memory_space<smem>>
    %c78_216 = arith.constant 78 : index
    %923 = memref.load %arg10[%c78_216] : memref<81xf32, #tpu.memory_space<smem>>
    %c79_217 = arith.constant 79 : index
    %924 = memref.load %arg10[%c79_217] : memref<81xf32, #tpu.memory_space<smem>>
    %c80_218 = arith.constant 80 : index
    %925 = memref.load %arg10[%c80_218] : memref<81xf32, #tpu.memory_space<smem>>
    %c0_219 = arith.constant 0 : index
    %926 = memref.load %arg11[%c0_219] : memref<3xf32, #tpu.memory_space<smem>>
    %927 = vector.broadcast %926 : f32 to vector<24x128xf32>
    %c1_220 = arith.constant 1 : index
    %928 = memref.load %arg11[%c1_220] : memref<3xf32, #tpu.memory_space<smem>>
    %929 = vector.broadcast %928 : f32 to vector<24x128xf32>
    %c2_221 = arith.constant 2 : index
    %930 = memref.load %arg11[%c2_221] : memref<3xf32, #tpu.memory_space<smem>>
    %931 = vector.broadcast %930 : f32 to vector<24x128xf32>
    %932 = vector.extract_strided_slice %822 {offsets = [0, 0], sizes = [24, 127], strides = [1, 1]} : vector<24x128xf32> to vector<24x127xf32>
    %933 = tpu.concatenate %16, %932 in 1 : vector<24x1xf32>, vector<24x127xf32> -> vector<24x128xf32>
    %934 = vector.extract_strided_slice %822 {offsets = [0, 1], sizes = [24, 127], strides = [1, 1]} : vector<24x128xf32> to vector<24x127xf32>
    %935 = tpu.concatenate %934, %16 in 1 : vector<24x127xf32>, vector<24x1xf32> -> vector<24x128xf32>
    %936 = vector.extract_strided_slice %933 {offsets = [0, 0], sizes = [23, 128], strides = [1, 1]} : vector<24x128xf32> to vector<23x128xf32>
    %937 = tpu.concatenate %15, %936 in 0 : vector<1x128xf32>, vector<23x128xf32> -> vector<24x128xf32>
    %938 = vector.extract_strided_slice %822 {offsets = [0, 0], sizes = [23, 128], strides = [1, 1]} : vector<24x128xf32> to vector<23x128xf32>
    %939 = tpu.concatenate %15, %938 in 0 : vector<1x128xf32>, vector<23x128xf32> -> vector<24x128xf32>
    %940 = vector.extract_strided_slice %935 {offsets = [0, 0], sizes = [23, 128], strides = [1, 1]} : vector<24x128xf32> to vector<23x128xf32>
    %941 = tpu.concatenate %15, %940 in 0 : vector<1x128xf32>, vector<23x128xf32> -> vector<24x128xf32>
    %942 = vector.extract_strided_slice %933 {offsets = [1, 0], sizes = [23, 128], strides = [1, 1]} : vector<24x128xf32> to vector<23x128xf32>
    %943 = tpu.concatenate %942, %15 in 0 : vector<23x128xf32>, vector<1x128xf32> -> vector<24x128xf32>
    %944 = vector.extract_strided_slice %822 {offsets = [1, 0], sizes = [23, 128], strides = [1, 1]} : vector<24x128xf32> to vector<23x128xf32>
    %945 = tpu.concatenate %944, %15 in 0 : vector<23x128xf32>, vector<1x128xf32> -> vector<24x128xf32>
    %946 = vector.extract_strided_slice %935 {offsets = [1, 0], sizes = [23, 128], strides = [1, 1]} : vector<24x128xf32> to vector<23x128xf32>
    %947 = tpu.concatenate %946, %15 in 0 : vector<23x128xf32>, vector<1x128xf32> -> vector<24x128xf32>
    %948 = vector.broadcast %845 : f32 to vector<24x128xf32>
    %949 = arith.mulf %937, %948 : vector<24x128xf32>
    %950 = vector.broadcast %846 : f32 to vector<24x128xf32>
    %951 = arith.mulf %939, %950 : vector<24x128xf32>
    %952 = arith.addf %949, %951 : vector<24x128xf32>
    %953 = vector.broadcast %847 : f32 to vector<24x128xf32>
    %954 = arith.mulf %941, %953 : vector<24x128xf32>
    %955 = arith.addf %952, %954 : vector<24x128xf32>
    %956 = vector.broadcast %848 : f32 to vector<24x128xf32>
    %957 = arith.mulf %933, %956 : vector<24x128xf32>
    %958 = arith.addf %955, %957 : vector<24x128xf32>
    %959 = vector.broadcast %849 : f32 to vector<24x128xf32>
    %960 = arith.mulf %822, %959 : vector<24x128xf32>
    %961 = arith.addf %958, %960 : vector<24x128xf32>
    %962 = vector.broadcast %850 : f32 to vector<24x128xf32>
    %963 = arith.mulf %935, %962 : vector<24x128xf32>
    %964 = arith.addf %961, %963 : vector<24x128xf32>
    %965 = vector.broadcast %851 : f32 to vector<24x128xf32>
    %966 = arith.mulf %943, %965 : vector<24x128xf32>
    %967 = arith.addf %964, %966 : vector<24x128xf32>
    %968 = vector.broadcast %852 : f32 to vector<24x128xf32>
    %969 = arith.mulf %945, %968 : vector<24x128xf32>
    %970 = arith.addf %967, %969 : vector<24x128xf32>
    %971 = vector.broadcast %853 : f32 to vector<24x128xf32>
    %972 = arith.mulf %947, %971 : vector<24x128xf32>
    %973 = arith.addf %970, %972 : vector<24x128xf32>
    %974 = arith.addf %927, %973 : vector<24x128xf32>
    %975 = vector.broadcast %872 : f32 to vector<24x128xf32>
    %976 = arith.mulf %937, %975 : vector<24x128xf32>
    %977 = vector.broadcast %873 : f32 to vector<24x128xf32>
    %978 = arith.mulf %939, %977 : vector<24x128xf32>
    %979 = arith.addf %976, %978 : vector<24x128xf32>
    %980 = vector.broadcast %874 : f32 to vector<24x128xf32>
    %981 = arith.mulf %941, %980 : vector<24x128xf32>
    %982 = arith.addf %979, %981 : vector<24x128xf32>
    %983 = vector.broadcast %875 : f32 to vector<24x128xf32>
    %984 = arith.mulf %933, %983 : vector<24x128xf32>
    %985 = arith.addf %982, %984 : vector<24x128xf32>
    %986 = vector.broadcast %876 : f32 to vector<24x128xf32>
    %987 = arith.mulf %822, %986 : vector<24x128xf32>
    %988 = arith.addf %985, %987 : vector<24x128xf32>
    %989 = vector.broadcast %877 : f32 to vector<24x128xf32>
    %990 = arith.mulf %935, %989 : vector<24x128xf32>
    %991 = arith.addf %988, %990 : vector<24x128xf32>
    %992 = vector.broadcast %878 : f32 to vector<24x128xf32>
    %993 = arith.mulf %943, %992 : vector<24x128xf32>
    %994 = arith.addf %991, %993 : vector<24x128xf32>
    %995 = vector.broadcast %879 : f32 to vector<24x128xf32>
    %996 = arith.mulf %945, %995 : vector<24x128xf32>
    %997 = arith.addf %994, %996 : vector<24x128xf32>
    %998 = vector.broadcast %880 : f32 to vector<24x128xf32>
    %999 = arith.mulf %947, %998 : vector<24x128xf32>
    %1000 = arith.addf %997, %999 : vector<24x128xf32>
    %1001 = arith.addf %929, %1000 : vector<24x128xf32>
    %1002 = vector.broadcast %899 : f32 to vector<24x128xf32>
    %1003 = arith.mulf %937, %1002 : vector<24x128xf32>
    %1004 = vector.broadcast %900 : f32 to vector<24x128xf32>
    %1005 = arith.mulf %939, %1004 : vector<24x128xf32>
    %1006 = arith.addf %1003, %1005 : vector<24x128xf32>
    %1007 = vector.broadcast %901 : f32 to vector<24x128xf32>
    %1008 = arith.mulf %941, %1007 : vector<24x128xf32>
    %1009 = arith.addf %1006, %1008 : vector<24x128xf32>
    %1010 = vector.broadcast %902 : f32 to vector<24x128xf32>
    %1011 = arith.mulf %933, %1010 : vector<24x128xf32>
    %1012 = arith.addf %1009, %1011 : vector<24x128xf32>
    %1013 = vector.broadcast %903 : f32 to vector<24x128xf32>
    %1014 = arith.mulf %822, %1013 : vector<24x128xf32>
    %1015 = arith.addf %1012, %1014 : vector<24x128xf32>
    %1016 = vector.broadcast %904 : f32 to vector<24x128xf32>
    %1017 = arith.mulf %935, %1016 : vector<24x128xf32>
    %1018 = arith.addf %1015, %1017 : vector<24x128xf32>
    %1019 = vector.broadcast %905 : f32 to vector<24x128xf32>
    %1020 = arith.mulf %943, %1019 : vector<24x128xf32>
    %1021 = arith.addf %1018, %1020 : vector<24x128xf32>
    %1022 = vector.broadcast %906 : f32 to vector<24x128xf32>
    %1023 = arith.mulf %945, %1022 : vector<24x128xf32>
    %1024 = arith.addf %1021, %1023 : vector<24x128xf32>
    %1025 = vector.broadcast %907 : f32 to vector<24x128xf32>
    %1026 = arith.mulf %947, %1025 : vector<24x128xf32>
    %1027 = arith.addf %1024, %1026 : vector<24x128xf32>
    %1028 = arith.addf %931, %1027 : vector<24x128xf32>
    %1029 = vector.extract_strided_slice %833 {offsets = [0, 0], sizes = [24, 127], strides = [1, 1]} : vector<24x128xf32> to vector<24x127xf32>
    %1030 = tpu.concatenate %16, %1029 in 1 : vector<24x1xf32>, vector<24x127xf32> -> vector<24x128xf32>
    %1031 = vector.extract_strided_slice %833 {offsets = [0, 1], sizes = [24, 127], strides = [1, 1]} : vector<24x128xf32> to vector<24x127xf32>
    %1032 = tpu.concatenate %1031, %16 in 1 : vector<24x127xf32>, vector<24x1xf32> -> vector<24x128xf32>
    %1033 = vector.extract_strided_slice %1030 {offsets = [0, 0], sizes = [23, 128], strides = [1, 1]} : vector<24x128xf32> to vector<23x128xf32>
    %1034 = tpu.concatenate %15, %1033 in 0 : vector<1x128xf32>, vector<23x128xf32> -> vector<24x128xf32>
    %1035 = vector.extract_strided_slice %833 {offsets = [0, 0], sizes = [23, 128], strides = [1, 1]} : vector<24x128xf32> to vector<23x128xf32>
    %1036 = tpu.concatenate %15, %1035 in 0 : vector<1x128xf32>, vector<23x128xf32> -> vector<24x128xf32>
    %1037 = vector.extract_strided_slice %1032 {offsets = [0, 0], sizes = [23, 128], strides = [1, 1]} : vector<24x128xf32> to vector<23x128xf32>
    %1038 = tpu.concatenate %15, %1037 in 0 : vector<1x128xf32>, vector<23x128xf32> -> vector<24x128xf32>
    %1039 = vector.extract_strided_slice %1030 {offsets = [1, 0], sizes = [23, 128], strides = [1, 1]} : vector<24x128xf32> to vector<23x128xf32>
    %1040 = tpu.concatenate %1039, %15 in 0 : vector<23x128xf32>, vector<1x128xf32> -> vector<24x128xf32>
    %1041 = vector.extract_strided_slice %833 {offsets = [1, 0], sizes = [23, 128], strides = [1, 1]} : vector<24x128xf32> to vector<23x128xf32>
    %1042 = tpu.concatenate %1041, %15 in 0 : vector<23x128xf32>, vector<1x128xf32> -> vector<24x128xf32>
    %1043 = vector.extract_strided_slice %1032 {offsets = [1, 0], sizes = [23, 128], strides = [1, 1]} : vector<24x128xf32> to vector<23x128xf32>
    %1044 = tpu.concatenate %1043, %15 in 0 : vector<23x128xf32>, vector<1x128xf32> -> vector<24x128xf32>
    %1045 = vector.broadcast %854 : f32 to vector<24x128xf32>
    %1046 = arith.mulf %1034, %1045 : vector<24x128xf32>
    %1047 = vector.broadcast %855 : f32 to vector<24x128xf32>
    %1048 = arith.mulf %1036, %1047 : vector<24x128xf32>
    %1049 = arith.addf %1046, %1048 : vector<24x128xf32>
    %1050 = vector.broadcast %856 : f32 to vector<24x128xf32>
    %1051 = arith.mulf %1038, %1050 : vector<24x128xf32>
    %1052 = arith.addf %1049, %1051 : vector<24x128xf32>
    %1053 = vector.broadcast %857 : f32 to vector<24x128xf32>
    %1054 = arith.mulf %1030, %1053 : vector<24x128xf32>
    %1055 = arith.addf %1052, %1054 : vector<24x128xf32>
    %1056 = vector.broadcast %858 : f32 to vector<24x128xf32>
    %1057 = arith.mulf %833, %1056 : vector<24x128xf32>
    %1058 = arith.addf %1055, %1057 : vector<24x128xf32>
    %1059 = vector.broadcast %859 : f32 to vector<24x128xf32>
    %1060 = arith.mulf %1032, %1059 : vector<24x128xf32>
    %1061 = arith.addf %1058, %1060 : vector<24x128xf32>
    %1062 = vector.broadcast %860 : f32 to vector<24x128xf32>
    %1063 = arith.mulf %1040, %1062 : vector<24x128xf32>
    %1064 = arith.addf %1061, %1063 : vector<24x128xf32>
    %1065 = vector.broadcast %861 : f32 to vector<24x128xf32>
    %1066 = arith.mulf %1042, %1065 : vector<24x128xf32>
    %1067 = arith.addf %1064, %1066 : vector<24x128xf32>
    %1068 = vector.broadcast %862 : f32 to vector<24x128xf32>
    %1069 = arith.mulf %1044, %1068 : vector<24x128xf32>
    %1070 = arith.addf %1067, %1069 : vector<24x128xf32>
    %1071 = arith.addf %974, %1070 : vector<24x128xf32>
    %1072 = vector.broadcast %881 : f32 to vector<24x128xf32>
    %1073 = arith.mulf %1034, %1072 : vector<24x128xf32>
    %1074 = vector.broadcast %882 : f32 to vector<24x128xf32>
    %1075 = arith.mulf %1036, %1074 : vector<24x128xf32>
    %1076 = arith.addf %1073, %1075 : vector<24x128xf32>
    %1077 = vector.broadcast %883 : f32 to vector<24x128xf32>
    %1078 = arith.mulf %1038, %1077 : vector<24x128xf32>
    %1079 = arith.addf %1076, %1078 : vector<24x128xf32>
    %1080 = vector.broadcast %884 : f32 to vector<24x128xf32>
    %1081 = arith.mulf %1030, %1080 : vector<24x128xf32>
    %1082 = arith.addf %1079, %1081 : vector<24x128xf32>
    %1083 = vector.broadcast %885 : f32 to vector<24x128xf32>
    %1084 = arith.mulf %833, %1083 : vector<24x128xf32>
    %1085 = arith.addf %1082, %1084 : vector<24x128xf32>
    %1086 = vector.broadcast %886 : f32 to vector<24x128xf32>
    %1087 = arith.mulf %1032, %1086 : vector<24x128xf32>
    %1088 = arith.addf %1085, %1087 : vector<24x128xf32>
    %1089 = vector.broadcast %887 : f32 to vector<24x128xf32>
    %1090 = arith.mulf %1040, %1089 : vector<24x128xf32>
    %1091 = arith.addf %1088, %1090 : vector<24x128xf32>
    %1092 = vector.broadcast %888 : f32 to vector<24x128xf32>
    %1093 = arith.mulf %1042, %1092 : vector<24x128xf32>
    %1094 = arith.addf %1091, %1093 : vector<24x128xf32>
    %1095 = vector.broadcast %889 : f32 to vector<24x128xf32>
    %1096 = arith.mulf %1044, %1095 : vector<24x128xf32>
    %1097 = arith.addf %1094, %1096 : vector<24x128xf32>
    %1098 = arith.addf %1001, %1097 : vector<24x128xf32>
    %1099 = vector.broadcast %908 : f32 to vector<24x128xf32>
    %1100 = arith.mulf %1034, %1099 : vector<24x128xf32>
    %1101 = vector.broadcast %909 : f32 to vector<24x128xf32>
    %1102 = arith.mulf %1036, %1101 : vector<24x128xf32>
    %1103 = arith.addf %1100, %1102 : vector<24x128xf32>
    %1104 = vector.broadcast %910 : f32 to vector<24x128xf32>
    %1105 = arith.mulf %1038, %1104 : vector<24x128xf32>
    %1106 = arith.addf %1103, %1105 : vector<24x128xf32>
    %1107 = vector.broadcast %911 : f32 to vector<24x128xf32>
    %1108 = arith.mulf %1030, %1107 : vector<24x128xf32>
    %1109 = arith.addf %1106, %1108 : vector<24x128xf32>
    %1110 = vector.broadcast %912 : f32 to vector<24x128xf32>
    %1111 = arith.mulf %833, %1110 : vector<24x128xf32>
    %1112 = arith.addf %1109, %1111 : vector<24x128xf32>
    %1113 = vector.broadcast %913 : f32 to vector<24x128xf32>
    %1114 = arith.mulf %1032, %1113 : vector<24x128xf32>
    %1115 = arith.addf %1112, %1114 : vector<24x128xf32>
    %1116 = vector.broadcast %914 : f32 to vector<24x128xf32>
    %1117 = arith.mulf %1040, %1116 : vector<24x128xf32>
    %1118 = arith.addf %1115, %1117 : vector<24x128xf32>
    %1119 = vector.broadcast %915 : f32 to vector<24x128xf32>
    %1120 = arith.mulf %1042, %1119 : vector<24x128xf32>
    %1121 = arith.addf %1118, %1120 : vector<24x128xf32>
    %1122 = vector.broadcast %916 : f32 to vector<24x128xf32>
    %1123 = arith.mulf %1044, %1122 : vector<24x128xf32>
    %1124 = arith.addf %1121, %1123 : vector<24x128xf32>
    %1125 = arith.addf %1028, %1124 : vector<24x128xf32>
    %1126 = vector.extract_strided_slice %844 {offsets = [0, 0], sizes = [24, 127], strides = [1, 1]} : vector<24x128xf32> to vector<24x127xf32>
    %1127 = tpu.concatenate %16, %1126 in 1 : vector<24x1xf32>, vector<24x127xf32> -> vector<24x128xf32>
    %1128 = vector.extract_strided_slice %844 {offsets = [0, 1], sizes = [24, 127], strides = [1, 1]} : vector<24x128xf32> to vector<24x127xf32>
    %1129 = tpu.concatenate %1128, %16 in 1 : vector<24x127xf32>, vector<24x1xf32> -> vector<24x128xf32>
    %1130 = vector.extract_strided_slice %1127 {offsets = [0, 0], sizes = [23, 128], strides = [1, 1]} : vector<24x128xf32> to vector<23x128xf32>
    %1131 = tpu.concatenate %15, %1130 in 0 : vector<1x128xf32>, vector<23x128xf32> -> vector<24x128xf32>
    %1132 = vector.extract_strided_slice %844 {offsets = [0, 0], sizes = [23, 128], strides = [1, 1]} : vector<24x128xf32> to vector<23x128xf32>
    %1133 = tpu.concatenate %15, %1132 in 0 : vector<1x128xf32>, vector<23x128xf32> -> vector<24x128xf32>
    %1134 = vector.extract_strided_slice %1129 {offsets = [0, 0], sizes = [23, 128], strides = [1, 1]} : vector<24x128xf32> to vector<23x128xf32>
    %1135 = tpu.concatenate %15, %1134 in 0 : vector<1x128xf32>, vector<23x128xf32> -> vector<24x128xf32>
    %1136 = vector.extract_strided_slice %1127 {offsets = [1, 0], sizes = [23, 128], strides = [1, 1]} : vector<24x128xf32> to vector<23x128xf32>
    %1137 = tpu.concatenate %1136, %15 in 0 : vector<23x128xf32>, vector<1x128xf32> -> vector<24x128xf32>
    %1138 = vector.extract_strided_slice %844 {offsets = [1, 0], sizes = [23, 128], strides = [1, 1]} : vector<24x128xf32> to vector<23x128xf32>
    %1139 = tpu.concatenate %1138, %15 in 0 : vector<23x128xf32>, vector<1x128xf32> -> vector<24x128xf32>
    %1140 = vector.extract_strided_slice %1129 {offsets = [1, 0], sizes = [23, 128], strides = [1, 1]} : vector<24x128xf32> to vector<23x128xf32>
    %1141 = tpu.concatenate %1140, %15 in 0 : vector<23x128xf32>, vector<1x128xf32> -> vector<24x128xf32>
    %1142 = vector.broadcast %863 : f32 to vector<24x128xf32>
    %1143 = arith.mulf %1131, %1142 : vector<24x128xf32>
    %1144 = vector.broadcast %864 : f32 to vector<24x128xf32>
    %1145 = arith.mulf %1133, %1144 : vector<24x128xf32>
    %1146 = arith.addf %1143, %1145 : vector<24x128xf32>
    %1147 = vector.broadcast %865 : f32 to vector<24x128xf32>
    %1148 = arith.mulf %1135, %1147 : vector<24x128xf32>
    %1149 = arith.addf %1146, %1148 : vector<24x128xf32>
    %1150 = vector.broadcast %866 : f32 to vector<24x128xf32>
    %1151 = arith.mulf %1127, %1150 : vector<24x128xf32>
    %1152 = arith.addf %1149, %1151 : vector<24x128xf32>
    %1153 = vector.broadcast %867 : f32 to vector<24x128xf32>
    %1154 = arith.mulf %844, %1153 : vector<24x128xf32>
    %1155 = arith.addf %1152, %1154 : vector<24x128xf32>
    %1156 = vector.broadcast %868 : f32 to vector<24x128xf32>
    %1157 = arith.mulf %1129, %1156 : vector<24x128xf32>
    %1158 = arith.addf %1155, %1157 : vector<24x128xf32>
    %1159 = vector.broadcast %869 : f32 to vector<24x128xf32>
    %1160 = arith.mulf %1137, %1159 : vector<24x128xf32>
    %1161 = arith.addf %1158, %1160 : vector<24x128xf32>
    %1162 = vector.broadcast %870 : f32 to vector<24x128xf32>
    %1163 = arith.mulf %1139, %1162 : vector<24x128xf32>
    %1164 = arith.addf %1161, %1163 : vector<24x128xf32>
    %1165 = vector.broadcast %871 : f32 to vector<24x128xf32>
    %1166 = arith.mulf %1141, %1165 : vector<24x128xf32>
    %1167 = arith.addf %1164, %1166 : vector<24x128xf32>
    %1168 = arith.addf %1071, %1167 : vector<24x128xf32>
    %1169 = vector.broadcast %890 : f32 to vector<24x128xf32>
    %1170 = arith.mulf %1131, %1169 : vector<24x128xf32>
    %1171 = vector.broadcast %891 : f32 to vector<24x128xf32>
    %1172 = arith.mulf %1133, %1171 : vector<24x128xf32>
    %1173 = arith.addf %1170, %1172 : vector<24x128xf32>
    %1174 = vector.broadcast %892 : f32 to vector<24x128xf32>
    %1175 = arith.mulf %1135, %1174 : vector<24x128xf32>
    %1176 = arith.addf %1173, %1175 : vector<24x128xf32>
    %1177 = vector.broadcast %893 : f32 to vector<24x128xf32>
    %1178 = arith.mulf %1127, %1177 : vector<24x128xf32>
    %1179 = arith.addf %1176, %1178 : vector<24x128xf32>
    %1180 = vector.broadcast %894 : f32 to vector<24x128xf32>
    %1181 = arith.mulf %844, %1180 : vector<24x128xf32>
    %1182 = arith.addf %1179, %1181 : vector<24x128xf32>
    %1183 = vector.broadcast %895 : f32 to vector<24x128xf32>
    %1184 = arith.mulf %1129, %1183 : vector<24x128xf32>
    %1185 = arith.addf %1182, %1184 : vector<24x128xf32>
    %1186 = vector.broadcast %896 : f32 to vector<24x128xf32>
    %1187 = arith.mulf %1137, %1186 : vector<24x128xf32>
    %1188 = arith.addf %1185, %1187 : vector<24x128xf32>
    %1189 = vector.broadcast %897 : f32 to vector<24x128xf32>
    %1190 = arith.mulf %1139, %1189 : vector<24x128xf32>
    %1191 = arith.addf %1188, %1190 : vector<24x128xf32>
    %1192 = vector.broadcast %898 : f32 to vector<24x128xf32>
    %1193 = arith.mulf %1141, %1192 : vector<24x128xf32>
    %1194 = arith.addf %1191, %1193 : vector<24x128xf32>
    %1195 = arith.addf %1098, %1194 : vector<24x128xf32>
    %1196 = vector.broadcast %917 : f32 to vector<24x128xf32>
    %1197 = arith.mulf %1131, %1196 : vector<24x128xf32>
    %1198 = vector.broadcast %918 : f32 to vector<24x128xf32>
    %1199 = arith.mulf %1133, %1198 : vector<24x128xf32>
    %1200 = arith.addf %1197, %1199 : vector<24x128xf32>
    %1201 = vector.broadcast %919 : f32 to vector<24x128xf32>
    %1202 = arith.mulf %1135, %1201 : vector<24x128xf32>
    %1203 = arith.addf %1200, %1202 : vector<24x128xf32>
    %1204 = vector.broadcast %920 : f32 to vector<24x128xf32>
    %1205 = arith.mulf %1127, %1204 : vector<24x128xf32>
    %1206 = arith.addf %1203, %1205 : vector<24x128xf32>
    %1207 = vector.broadcast %921 : f32 to vector<24x128xf32>
    %1208 = arith.mulf %844, %1207 : vector<24x128xf32>
    %1209 = arith.addf %1206, %1208 : vector<24x128xf32>
    %1210 = vector.broadcast %922 : f32 to vector<24x128xf32>
    %1211 = arith.mulf %1129, %1210 : vector<24x128xf32>
    %1212 = arith.addf %1209, %1211 : vector<24x128xf32>
    %1213 = vector.broadcast %923 : f32 to vector<24x128xf32>
    %1214 = arith.mulf %1137, %1213 : vector<24x128xf32>
    %1215 = arith.addf %1212, %1214 : vector<24x128xf32>
    %1216 = vector.broadcast %924 : f32 to vector<24x128xf32>
    %1217 = arith.mulf %1139, %1216 : vector<24x128xf32>
    %1218 = arith.addf %1215, %1217 : vector<24x128xf32>
    %1219 = vector.broadcast %925 : f32 to vector<24x128xf32>
    %1220 = arith.mulf %1141, %1219 : vector<24x128xf32>
    %1221 = arith.addf %1218, %1220 : vector<24x128xf32>
    %1222 = arith.addf %1125, %1221 : vector<24x128xf32>
    %1223 = vector.extract_strided_slice %1168 {offsets = [8, 0], sizes = [8, 128], strides = [1, 1]} : vector<24x128xf32> to vector<8x128xf32>
    %cst_222 = arith.constant 0.000000e+00 : f32
    %1224 = vector.broadcast %cst_222 : f32 to vector<8x128xf32>
    %1225 = arith.subf %1224, %1223 : vector<8x128xf32>
    %1226 = math.exp %1225 : vector<8x128xf32>
    %cst_223 = arith.constant 1.000000e+00 : f32
    %1227 = vector.broadcast %cst_223 : f32 to vector<8x128xf32>
    %1228 = arith.addf %1227, %1226 : vector<8x128xf32>
    %cst_224 = arith.constant 1.000000e+00 : f32
    %1229 = vector.broadcast %cst_224 : f32 to vector<8x128xf32>
    %1230 = arith.divf %1229, %1228 : vector<8x128xf32>
    %c0_225 = arith.constant 0 : index
    %c0_226 = arith.constant 0 : index
    %c0_227 = arith.constant 0 : index
    %1231 = vector.load %arg2[%c0_225, %c0_226, %c0_227] : memref<3x8x128xf32, #tpu.memory_space<vmem>>, vector<1x8x128xf32>
    %1232 = vector.shape_cast %1231 : vector<1x8x128xf32> to vector<8x128xf32>
    %1233 = arith.addf %1230, %1232 : vector<8x128xf32>
    %cst_228 = arith.constant 9.99999974E-5 : f32
    %cst_229 = arith.constant 1.000000e+00 : f32
    %1234 = vector.broadcast %cst_228 : f32 to vector<8x128xf32>
    %1235 = arith.maximumf %1234, %1233 : vector<8x128xf32>
    %1236 = vector.broadcast %cst_229 : f32 to vector<8x128xf32>
    %1237 = arith.minimumf %1236, %1235 : vector<8x128xf32>
    %c0_230 = arith.constant 0 : index
    %c0_231 = arith.constant 0 : index
    %c0_232 = arith.constant 0 : index
    %1238 = vector.load %arg12[%c0_230, %c0_231, %c0_232] : memref<3x8x128xf32, #tpu.memory_space<vmem>>, vector<1x8x128xf32>
    %1239 = vector.shape_cast %1238 : vector<1x8x128xf32> to vector<8x128xf32>
    %1240 = vector.shape_cast %1237 : vector<8x128xf32> to vector<1x8x128xf32>
    tpu.vector_store %arg12[%c0_230, %c0_231, %c0_232], %1240 {strides = array<i32>} : memref<3x8x128xf32, #tpu.memory_space<vmem>>, vector<1x8x128xf32>,
    %1241 = arith.divf %1232, %1237 : vector<8x128xf32>
    %cst_233 = arith.constant 0.000000e+00 : f32
    %cst_234 = arith.constant 1.000000e+00 : f32
    %1242 = vector.broadcast %cst_233 : f32 to vector<8x128xf32>
    %1243 = arith.maximumf %1242, %1241 : vector<8x128xf32>
    %1244 = vector.broadcast %cst_234 : f32 to vector<8x128xf32>
    %1245 = arith.minimumf %1244, %1243 : vector<8x128xf32>
    %c0_235 = arith.constant 0 : index
    %c0_236 = arith.constant 0 : index
    %c0_237 = arith.constant 0 : index
    %1246 = vector.load %arg13[%c0_235, %c0_236, %c0_237] : memref<3x8x128xf32, #tpu.memory_space<vmem>>, vector<1x8x128xf32>
    %1247 = vector.shape_cast %1246 : vector<1x8x128xf32> to vector<8x128xf32>
    %1248 = vector.shape_cast %1245 : vector<8x128xf32> to vector<1x8x128xf32>
    tpu.vector_store %arg13[%c0_235, %c0_236, %c0_237], %1248 {strides = array<i32>} : memref<3x8x128xf32, #tpu.memory_space<vmem>>, vector<1x8x128xf32>,
    %1249 = vector.extract_strided_slice %1195 {offsets = [8, 0], sizes = [8, 128], strides = [1, 1]} : vector<24x128xf32> to vector<8x128xf32>
    %cst_238 = arith.constant 0.000000e+00 : f32
    %1250 = vector.broadcast %cst_238 : f32 to vector<8x128xf32>
    %1251 = arith.subf %1250, %1249 : vector<8x128xf32>
    %1252 = math.exp %1251 : vector<8x128xf32>
    %cst_239 = arith.constant 1.000000e+00 : f32
    %1253 = vector.broadcast %cst_239 : f32 to vector<8x128xf32>
    %1254 = arith.addf %1253, %1252 : vector<8x128xf32>
    %cst_240 = arith.constant 1.000000e+00 : f32
    %1255 = vector.broadcast %cst_240 : f32 to vector<8x128xf32>
    %1256 = arith.divf %1255, %1254 : vector<8x128xf32>
    %c1_241 = arith.constant 1 : index
    %c0_242 = arith.constant 0 : index
    %c0_243 = arith.constant 0 : index
    %1257 = vector.load %arg2[%c1_241, %c0_242, %c0_243] : memref<3x8x128xf32, #tpu.memory_space<vmem>>, vector<1x8x128xf32>
    %1258 = vector.shape_cast %1257 : vector<1x8x128xf32> to vector<8x128xf32>
    %1259 = arith.addf %1256, %1258 : vector<8x128xf32>
    %cst_244 = arith.constant 9.99999974E-5 : f32
    %cst_245 = arith.constant 1.000000e+00 : f32
    %1260 = vector.broadcast %cst_244 : f32 to vector<8x128xf32>
    %1261 = arith.maximumf %1260, %1259 : vector<8x128xf32>
    %1262 = vector.broadcast %cst_245 : f32 to vector<8x128xf32>
    %1263 = arith.minimumf %1262, %1261 : vector<8x128xf32>
    %c1_246 = arith.constant 1 : index
    %c0_247 = arith.constant 0 : index
    %c0_248 = arith.constant 0 : index
    %1264 = vector.load %arg12[%c1_246, %c0_247, %c0_248] : memref<3x8x128xf32, #tpu.memory_space<vmem>>, vector<1x8x128xf32>
    %1265 = vector.shape_cast %1264 : vector<1x8x128xf32> to vector<8x128xf32>
    %1266 = vector.shape_cast %1263 : vector<8x128xf32> to vector<1x8x128xf32>
    tpu.vector_store %arg12[%c1_246, %c0_247, %c0_248], %1266 {strides = array<i32>} : memref<3x8x128xf32, #tpu.memory_space<vmem>>, vector<1x8x128xf32>,
    %1267 = arith.divf %1258, %1263 : vector<8x128xf32>
    %cst_249 = arith.constant 0.000000e+00 : f32
    %cst_250 = arith.constant 1.000000e+00 : f32
    %1268 = vector.broadcast %cst_249 : f32 to vector<8x128xf32>
    %1269 = arith.maximumf %1268, %1267 : vector<8x128xf32>
    %1270 = vector.broadcast %cst_250 : f32 to vector<8x128xf32>
    %1271 = arith.minimumf %1270, %1269 : vector<8x128xf32>
    %c1_251 = arith.constant 1 : index
    %c0_252 = arith.constant 0 : index
    %c0_253 = arith.constant 0 : index
    %1272 = vector.load %arg13[%c1_251, %c0_252, %c0_253] : memref<3x8x128xf32, #tpu.memory_space<vmem>>, vector<1x8x128xf32>
    %1273 = vector.shape_cast %1272 : vector<1x8x128xf32> to vector<8x128xf32>
    %1274 = vector.shape_cast %1271 : vector<8x128xf32> to vector<1x8x128xf32>
    tpu.vector_store %arg13[%c1_251, %c0_252, %c0_253], %1274 {strides = array<i32>} : memref<3x8x128xf32, #tpu.memory_space<vmem>>, vector<1x8x128xf32>,
    %1275 = vector.extract_strided_slice %1222 {offsets = [8, 0], sizes = [8, 128], strides = [1, 1]} : vector<24x128xf32> to vector<8x128xf32>
    %cst_254 = arith.constant 0.000000e+00 : f32
    %1276 = vector.broadcast %cst_254 : f32 to vector<8x128xf32>
    %1277 = arith.subf %1276, %1275 : vector<8x128xf32>
    %1278 = math.exp %1277 : vector<8x128xf32>
    %cst_255 = arith.constant 1.000000e+00 : f32
    %1279 = vector.broadcast %cst_255 : f32 to vector<8x128xf32>
    %1280 = arith.addf %1279, %1278 : vector<8x128xf32>
    %cst_256 = arith.constant 1.000000e+00 : f32
    %1281 = vector.broadcast %cst_256 : f32 to vector<8x128xf32>
    %1282 = arith.divf %1281, %1280 : vector<8x128xf32>
    %c2_257 = arith.constant 2 : index
    %c0_258 = arith.constant 0 : index
    %c0_259 = arith.constant 0 : index
    %1283 = vector.load %arg2[%c2_257, %c0_258, %c0_259] : memref<3x8x128xf32, #tpu.memory_space<vmem>>, vector<1x8x128xf32>
    %1284 = vector.shape_cast %1283 : vector<1x8x128xf32> to vector<8x128xf32>
    %1285 = arith.addf %1282, %1284 : vector<8x128xf32>
    %cst_260 = arith.constant 9.99999974E-5 : f32
    %cst_261 = arith.constant 1.000000e+00 : f32
    %1286 = vector.broadcast %cst_260 : f32 to vector<8x128xf32>
    %1287 = arith.maximumf %1286, %1285 : vector<8x128xf32>
    %1288 = vector.broadcast %cst_261 : f32 to vector<8x128xf32>
    %1289 = arith.minimumf %1288, %1287 : vector<8x128xf32>
    %c2_262 = arith.constant 2 : index
    %c0_263 = arith.constant 0 : index
    %c0_264 = arith.constant 0 : index
    %1290 = vector.load %arg12[%c2_262, %c0_263, %c0_264] : memref<3x8x128xf32, #tpu.memory_space<vmem>>, vector<1x8x128xf32>
    %1291 = vector.shape_cast %1290 : vector<1x8x128xf32> to vector<8x128xf32>
    %1292 = vector.shape_cast %1289 : vector<8x128xf32> to vector<1x8x128xf32>
    tpu.vector_store %arg12[%c2_262, %c0_263, %c0_264], %1292 {strides = array<i32>} : memref<3x8x128xf32, #tpu.memory_space<vmem>>, vector<1x8x128xf32>,
    %1293 = arith.divf %1284, %1289 : vector<8x128xf32>
    %cst_265 = arith.constant 0.000000e+00 : f32
    %cst_266 = arith.constant 1.000000e+00 : f32
    %1294 = vector.broadcast %cst_265 : f32 to vector<8x128xf32>
    %1295 = arith.maximumf %1294, %1293 : vector<8x128xf32>
    %1296 = vector.broadcast %cst_266 : f32 to vector<8x128xf32>
    %1297 = arith.minimumf %1296, %1295 : vector<8x128xf32>
    %c2_267 = arith.constant 2 : index
    %c0_268 = arith.constant 0 : index
    %c0_269 = arith.constant 0 : index
    %1298 = vector.load %arg13[%c2_267, %c0_268, %c0_269] : memref<3x8x128xf32, #tpu.memory_space<vmem>>, vector<1x8x128xf32>
    %1299 = vector.shape_cast %1298 : vector<1x8x128xf32> to vector<8x128xf32>
    %1300 = vector.shape_cast %1297 : vector<8x128xf32> to vector<1x8x128xf32>
    tpu.vector_store %arg13[%c2_267, %c0_268, %c0_269], %1300 {strides = array<i32>} : memref<3x8x128xf32, #tpu.memory_space<vmem>>, vector<1x8x128xf32>,
    return
  }
  func.func @transform_0(%arg0: i32) -> (i32, i32, i32) {
    %c1_i32 = arith.constant 1 : i32
    %0 = arith.muli %arg0, %c1_i32 : i32
    %c1_i32_0 = arith.constant 1 : i32
    %1 = arith.subi %0, %c1_i32_0 : i32
    %c0_i32 = arith.constant 0 : i32
    %2 = arith.maxsi %1, %c0_i32 : i32
    %c0_i32_1 = arith.constant 0 : i32
    %c0_i32_2 = arith.constant 0 : i32
    %c0_i32_3 = arith.constant 0 : i32
    return %c0_i32_1, %2, %c0_i32_2 : i32, i32, i32
  }
  func.func @transform_1(%arg0: i32) -> (i32, i32, i32) {
    %c0_i32 = arith.constant 0 : i32
    %c0_i32_0 = arith.constant 0 : i32
    %c0_i32_1 = arith.constant 0 : i32
    return %c0_i32, %arg0, %c0_i32_0 : i32, i32, i32
  }
  func.func @transform_2(%arg0: i32) -> (i32, i32, i32) {
    %c1_i32 = arith.constant 1 : i32
    %0 = arith.addi %arg0, %c1_i32 : i32
    %c1_i32_0 = arith.constant 1 : i32
    %1 = arith.muli %0, %c1_i32_0 : i32
    %c1_i32_1 = arith.constant 1 : i32
    %2 = arith.minsi %1, %c1_i32_1 : i32
    %c0_i32 = arith.constant 0 : i32
    %c0_i32_2 = arith.constant 0 : i32
    %c0_i32_3 = arith.constant 0 : i32
    return %c0_i32, %2, %c0_i32_2 : i32, i32, i32
  }
  func.func @transform_3(%arg0: i32) -> i32 {
    %c0_i32 = arith.constant 0 : i32
    %c0_i32_0 = arith.constant 0 : i32
    return %c0_i32 : i32
  }
  func.func @transform_4(%arg0: i32) -> i32 {
    %c0_i32 = arith.constant 0 : i32
    %c0_i32_0 = arith.constant 0 : i32
    return %c0_i32 : i32
  }
  func.func @transform_5(%arg0: i32) -> i32 {
    %c0_i32 = arith.constant 0 : i32
    %c0_i32_0 = arith.constant 0 : i32
    return %c0_i32 : i32
  }
  func.func @transform_6(%arg0: i32) -> i32 {
    %c0_i32 = arith.constant 0 : i32
    %c0_i32_0 = arith.constant 0 : i32
    return %c0_i32 : i32
  }
  func.func @transform_7(%arg0: i32) -> i32 {
    %c0_i32 = arith.constant 0 : i32
    %c0_i32_0 = arith.constant 0 : i32
    return %c0_i32 : i32
  }
  func.func @transform_8(%arg0: i32) -> i32 {
    %c0_i32 = arith.constant 0 : i32
    %c0_i32_0 = arith.constant 0 : i32
    return %c0_i32 : i32
  }
  func.func @transform_9(%arg0: i32) -> i32 {
    %c0_i32 = arith.constant 0 : i32
    %c0_i32_0 = arith.constant 0 : i32
    return %c0_i32 : i32
  }
  func.func @transform_10(%arg0: i32) -> i32 {
    %c0_i32 = arith.constant 0 : i32
    %c0_i32_0 = arith.constant 0 : i32
    return %c0_i32 : i32
  }
  func.func @transform_11(%arg0: i32) -> (i32, i32, i32) {
    %c0_i32 = arith.constant 0 : i32
    %c0_i32_0 = arith.constant 0 : i32
    %c0_i32_1 = arith.constant 0 : i32
    return %c0_i32, %arg0, %c0_i32_0 : i32, i32, i32
  }
  func.func @transform_12(%arg0: i32) -> (i32, i32, i32) {
    %c0_i32 = arith.constant 0 : i32
    %c0_i32_0 = arith.constant 0 : i32
    %c0_i32_1 = arith.constant 0 : i32
    return %c0_i32, %arg0, %c0_i32_0 : i32, i32, i32
  }
}

</mosaic_0001>

<llo_original>
// kernel: tpu_custom_call.1
$region0: #{tpu_custom_call.1}
  #allocation0 [shape = 'u32[]', space=smem, size = 0x4, offset = 0x4, fixed_abs, tag = 'smem constant byte address 0x4 - core index']
  #allocation1 [shape = 'u32[144,128]{1,0:T(1,128)}', space=vmem, size = 0x12000, scoped, tag = 'internal scratch']
  %s0 = inlined_call_operand.hbm [shape: f32[3,16,128], index: 0, kind: input, shape index: {}]
  %s1 = inlined_call_operand.hbm [shape: f32[3,16,128], index: 1, kind: input, shape index: {}]
  %s2 = inlined_call_operand.hbm [shape: f32[3,16,128], index: 2, kind: input, shape index: {}]
  %s3 = inlined_call_operand.vmem [shape: f32[81], index: 3, kind: input, shape index: {}]
  %s4 = inlined_call_operand.vmem [shape: f32[3], index: 4, kind: input, shape index: {}]
  %s5 = inlined_call_operand.vmem [shape: f32[81], index: 5, kind: input, shape index: {}]
  %s6 = inlined_call_operand.vmem [shape: f32[3], index: 6, kind: input, shape index: {}]
  %s7 = inlined_call_operand.vmem [shape: f32[3], index: 7, kind: input, shape index: {}]
  %s8 = inlined_call_operand.vmem [shape: f32[3], index: 8, kind: input, shape index: {}]
  %s9 = inlined_call_operand.vmem [shape: f32[81], index: 9, kind: input, shape index: {}]
  %s10 = inlined_call_operand.vmem [shape: f32[3], index: 10, kind: input, shape index: {}]
  %s11 = inlined_call_operand.hbm [shape: f32[3,16,128], index: 11, kind: output, shape index: {0}]
  %s12 = inlined_call_operand.hbm [shape: f32[3,16,128], index: 12, kind: output, shape index: {1}]
  %13 = xla_tuple %s11, %s12
  %s14 = sld [smem:[#allocation0]]
  $region129: #{tpu_custom_call.1} parent=0
    _
  %s16 = ssub.s32 1, %s14
  %s17 = scalar_select 0, %s16, %s14
  $region1: #{tpu_custom_call.1} parent=0
    #allocation2 [shape = 'u8[24576]{0}', space=vmem, size = 0x6000, scoped, tag = 'input window, operand 0']
    #allocation3 [shape = 's32[2]{0}', space=sflag, size = 0x8, scoped, tag = 'scoped memory for tpu_custom_call.1']
    #allocation4 [shape = 's32[2]{0}', space=sflag, size = 0x8, scoped, tag = 'scoped memory for tpu_custom_call.1']
    #allocation5 [shape = 's32[2]{0}', space=sflag, size = 0x8, scoped, tag = 'scoped memory for tpu_custom_call.1']
    #allocation6 [shape = 'u8[24576]{0}', space=vmem, size = 0x6000, scoped, tag = 'input window, operand 1']
    #allocation7 [shape = 's32[2]{0}', space=sflag, size = 0x8, scoped, tag = 'scoped memory for tpu_custom_call.1']
    #allocation8 [shape = 'u8[24576]{0}', space=vmem, size = 0x6000, scoped, tag = 'input window, operand 2']
    #allocation9 [shape = 'u8[512]{0}', space=smem, size = 0x200, scoped, tag = 'input window, operand 3, single buffered']
    #allocation10 [shape = 'u8[512]{0}', space=smem, size = 0x200, scoped, tag = 'input window, operand 4, single buffered']
    #allocation11 [shape = 's32[1]{0}', space=sflag, size = 0x4, scoped, tag = 'scoped memory for tpu_custom_call.1']
    #allocation12 [shape = 'u8[512]{0}', space=smem, size = 0x200, scoped, tag = 'input window, operand 5, single buffered']
    #allocation13 [shape = 'u8[512]{0}', space=smem, size = 0x200, scoped, tag = 'input window, operand 6, single buffered']
    #allocation14 [shape = 's32[1]{0}', space=sflag, size = 0x4, scoped, tag = 'scoped memory for tpu_custom_call.1']
    #allocation15 [shape = 'u8[512]{0}', space=smem, size = 0x200, scoped, tag = 'input window, operand 7, single buffered']
    #allocation16 [shape = 'u8[512]{0}', space=smem, size = 0x200, scoped, tag = 'input window, operand 8, single buffered']
    #allocation17 [shape = 's32[1]{0}', space=sflag, size = 0x4, scoped, tag = 'scoped memory for tpu_custom_call.1']
    #allocation18 [shape = 'u8[512]{0}', space=smem, size = 0x200, scoped, tag = 'input window, operand 9, single buffered']
    #allocation19 [shape = 'u8[512]{0}', space=smem, size = 0x200, scoped, tag = 'input window, operand 10, single buffered']
    #allocation20 [shape = 's32[1]{0}', space=sflag, size = 0x4, scoped, tag = 'scoped memory for tpu_custom_call.1']
    #allocation21 [shape = 'u8[24576]{0}', space=vmem, size = 0x6000, scoped, tag = 'output window, operand 0']
    #allocation22 [shape = 'u8[24576]{0}', space=vmem, size = 0x6000, scoped, tag = 'output window, operand 1']
    #allocation23 [shape = 's32[2]{0}', space=sflag, size = 0x8, scoped, tag = 'scoped memory for tpu_custom_call.1']
    %18 = vsyncpa [#allocation3], 0
    %s19 = scalar_lea.sflag [#allocation3], 1
    %20 = vsyncpa %s19, 0
    %21 = vsyncpa [#allocation7], 0
    %s22 = scalar_lea.sflag [#allocation7], 1
    %23 = vsyncpa %s22, 0
    %24 = vsyncpa [#allocation5], 0
    %25 = vsyncpa [#allocation11], 0
    %26 = vsyncpa [#allocation14], 0
    %27 = vsyncpa [#allocation17], 0
    %28 = vsyncpa [#allocation20], 0
    %29 = vsyncpa [#allocation4], 0
    %s30 = scalar_lea.sflag [#allocation4], 1
    %31 = vsyncpa %s30, 0
    %32 = vsyncpa [#allocation23], 0
    %s33 = scalar_lea.sflag [#allocation23], 1
    %34 = vsyncpa %s33, 0
    loop: start=0, step=1, limit=4
    $region2: #{tpu_custom_call.1} parent=1 // loop_pre_header
      _
    $region3: #{tpu_custom_call.1} parent=1 // loop_header
      %s36 = sphi 0, %s40
      %p37 = scmp.ge.s32.totalorder %s36, 4
      %s52 = sphi 0, %s54
      %s55 = sphi 0, %s52
      %s56 = sphi 0, %s55
      %s72 = sphi 0, %s56
      %s78 = sphi 0, %s80
      %s81 = sphi 0, %s78
      %s82 = sphi 0, %s81
      %s98 = sphi 0, %s82
      %s110 = sphi 0, %s112
      %s113 = sphi 0, %s110
      %s114 = sphi 0, %s113
      %s130 = sphi 0, %s114
      %s134 = sphi 0, %s134
      %s136 = sphi 0, %s134
      %s137 = sphi 0, %s136
      %s151 = sphi 0, %s137
      %s155 = sphi 0, %s155
      %s157 = sphi 0, %s155
      %s158 = sphi 0, %s157
      %s172 = sphi 0, %s158
      %s176 = sphi 0, %s176
      %s178 = sphi 0, %s176
      %s179 = sphi 0, %s178
      %s193 = sphi 0, %s179
      %s197 = sphi 0, %s197
      %s199 = sphi 0, %s197
      %s200 = sphi 0, %s199
      %s214 = sphi 0, %s200
      %s218 = sphi 0, %s218
      %s220 = sphi 0, %s218
      %s221 = sphi 0, %s220
      %s235 = sphi 0, %s221
      %s239 = sphi 0, %s239
      %s241 = sphi 0, %s239
      %s242 = sphi 0, %s241
      %s256 = sphi 0, %s242
      %s260 = sphi 0, %s260
      %s262 = sphi 0, %s260
      %s263 = sphi 0, %s262
      %s277 = sphi 0, %s263
      %s281 = sphi 0, %s281
      %s283 = sphi 0, %s281
      %s284 = sphi 0, %s283
      %s298 = sphi 0, %s284
      %s304 = sphi 0, %s306
      %s307 = sphi 0, %s304
      %s308 = sphi 0, %s307
      %s324 = sphi 0, %s308
      %s330 = sphi 0, %s332
      %s333 = sphi 0, %s330
      %s334 = sphi 0, %s333
      %s350 = sphi 0, %s334
    $region4: #{tpu_custom_call.1} parent=1 // loop_header_branch
      %39 = sbr.rel (%p37) target = $region8
    $region5: #{tpu_custom_call.1} parent=1 // loop_body
      %s41 = ssub.s32 %s36, 1
      %s42 = ssub.s32 %s36, 2
      %s43 = sadd.s32 %s36, 1
      %s44 = ssub.s32 %s36, 1
      %p45 = scmp.gt.s32.totalorder %s44, 0
      %s46 = scalar_select %p45, %s44, 0
      %s47 = ssub.s32 %s43, 1
      %p48 = scmp.gt.s32.totalorder %s47, 0
      %s49 = scalar_select %p48, %s47, 0
      %s50 = ssub.s32 %s46, %s49
      %p51 = scmp.eq.s32.totalorder %s50, 0
      %s53 = sadd.s32 %s52, 1
      %s54 = scalar_select %p51, %s52, %s53
      %p57 = pneg %p51
      %p58 = scmp.eq.s32.totalorder %s36, 1
      %p59 = por %p57, %p58
      %p60 = scmp.ne.s32.totalorder %s52, %s55
      %p61 = scmp.eq.s32.totalorder %s36, 0
      %p62 = por %p60, %p61
      %p63 = scmp.ne.s32.totalorder %s52, %s55
      %p64 = scmp.eq.s32.totalorder %s41, 1
      %p65 = por %p63, %p64
      %p66 = scmp.ne.s32.totalorder %s55, %s56
      %p67 = scmp.eq.s32.totalorder %s41, 0
      %p68 = por %p66, %p67
      %p69 = scmp.ne.s32.totalorder %s55, %s56
      %p70 = scmp.eq.s32.totalorder %s42, 1
      %p71 = por %p69, %p70
      %p73 = scmp.ne.s32.totalorder %s56, %s72
      %p74 = scmp.eq.s32.totalorder %s42, 0
      %p75 = por %p73, %p74
      %s76 = ssub.s32 %s36, %s43
      %p77 = scmp.eq.s32.totalorder %s76, 0
      %s79 = sadd.s32 %s78, 1
      %s80 = scalar_select %p77, %s78, %s79
      %p83 = pneg %p77
      %p84 = scmp.eq.s32.totalorder %s36, 1
      %p85 = por %p83, %p84
      %p86 = scmp.ne.s32.totalorder %s78, %s81
      %p87 = scmp.eq.s32.totalorder %s36, 0
      %p88 = por %p86, %p87
      %p89 = scmp.ne.s32.totalorder %s78, %s81
      %p90 = scmp.eq.s32.totalorder %s41, 1
      %p91 = por %p89, %p90
      %p92 = scmp.ne.s32.totalorder %s81, %s82
      %p93 = scmp.eq.s32.totalorder %s41, 0
      %p94 = por %p92, %p93
      %p95 = scmp.ne.s32.totalorder %s81, %s82
      %p96 = scmp.eq.s32.totalorder %s42, 1
      %p97 = por %p95, %p96
      %p99 = scmp.ne.s32.totalorder %s82, %s98
      %p100 = scmp.eq.s32.totalorder %s42, 0
      %p101 = por %p99, %p100
      %s102 = sadd.s32 %s36, 1
      %p103 = scmp.lt.s32.totalorder %s102, 1
      %s104 = scalar_select %p103, %s102, 1
      %s105 = sadd.s32 %s43, 1
      %p106 = scmp.lt.s32.totalorder %s105, 1
      %s107 = scalar_select %p106, %s105, 1
      %s108 = ssub.s32 %s104, %s107
      %p109 = scmp.eq.s32.totalorder %s108, 0
      %s111 = sadd.s32 %s110, 1
      %s112 = scalar_select %p109, %s110, %s111
      %p115 = pneg %p109
      %p116 = scmp.eq.s32.totalorder %s36, 1
      %p117 = por %p115, %p116
      %p118 = scmp.ne.s32.totalorder %s110, %s113
      %p119 = scmp.eq.s32.totalorder %s36, 0
      %p120 = por %p118, %p119
      %p121 = scmp.ne.s32.totalorder %s110, %s113
      %p122 = scmp.eq.s32.totalorder %s41, 1
      %p123 = por %p121, %p122
      %p124 = scmp.ne.s32.totalorder %s113, %s114
      %p125 = scmp.eq.s32.totalorder %s41, 0
      %p126 = por %p124, %p125
      %p127 = scmp.ne.s32.totalorder %s113, %s114
      %p128 = scmp.eq.s32.totalorder %s42, 1
      %p129 = por %p127, %p128
      %p131 = scmp.ne.s32.totalorder %s114, %s130
      %p132 = scmp.eq.s32.totalorder %s42, 0
      %p133 = por %p131, %p132
      %s135 = sadd.s32 %s134, 1
      %p138 = scmp.eq.s32.totalorder %s36, 1
      %p139 = scmp.ne.s32.totalorder %s134, %s136
      %p140 = scmp.eq.s32.totalorder %s36, 0
      %p141 = por %p139, %p140
      %p142 = scmp.ne.s32.totalorder %s134, %s136
      %p143 = scmp.eq.s32.totalorder %s41, 1
      %p144 = por %p142, %p143
      %p145 = scmp.ne.s32.totalorder %s136, %s137
      %p146 = scmp.eq.s32.totalorder %s41, 0
      %p147 = por %p145, %p146
      %p148 = scmp.ne.s32.totalorder %s136, %s137
      %p149 = scmp.eq.s32.totalorder %s42, 1
      %p150 = por %p148, %p149
      %p152 = scmp.ne.s32.totalorder %s137, %s151
      %p153 = scmp.eq.s32.totalorder %s42, 0
      %p154 = por %p152, %p153
      %s156 = sadd.s32 %s155, 1
      %p159 = scmp.eq.s32.totalorder %s36, 1
      %p160 = scmp.ne.s32.totalorder %s155, %s157
      %p161 = scmp.eq.s32.totalorder %s36, 0
      %p162 = por %p160, %p161
      %p163 = scmp.ne.s32.totalorder %s155, %s157
      %p164 = scmp.eq.s32.totalorder %s41, 1
      %p165 = por %p163, %p164
      %p166 = scmp.ne.s32.totalorder %s157, %s158
      %p167 = scmp.eq.s32.totalorder %s41, 0
      %p168 = por %p166, %p167
      %p169 = scmp.ne.s32.totalorder %s157, %s158
      %p170 = scmp.eq.s32.totalorder %s42, 1
      %p171 = por %p169, %p170
      %p173 = scmp.ne.s32.totalorder %s158, %s172
      %p174 = scmp.eq.s32.totalorder %s42, 0
      %p175 = por %p173, %p174
      %s177 = sadd.s32 %s176, 1
      %p180 = scmp.eq.s32.totalorder %s36, 1
      %p181 = scmp.ne.s32.totalorder %s176, %s178
      %p182 = scmp.eq.s32.totalorder %s36, 0
      %p183 = por %p181, %p182
      %p184 = scmp.ne.s32.totalorder %s176, %s178
      %p185 = scmp.eq.s32.totalorder %s41, 1
      %p186 = por %p184, %p185
      %p187 = scmp.ne.s32.totalorder %s178, %s179
      %p188 = scmp.eq.s32.totalorder %s41, 0
      %p189 = por %p187, %p188
      %p190 = scmp.ne.s32.totalorder %s178, %s179
      %p191 = scmp.eq.s32.totalorder %s42, 1
      %p192 = por %p190, %p191
      %p194 = scmp.ne.s32.totalorder %s179, %s193
      %p195 = scmp.eq.s32.totalorder %s42, 0
      %p196 = por %p194, %p195
      %s198 = sadd.s32 %s197, 1
      %p201 = scmp.eq.s32.totalorder %s36, 1
      %p202 = scmp.ne.s32.totalorder %s197, %s199
      %p203 = scmp.eq.s32.totalorder %s36, 0
      %p204 = por %p202, %p203
      %p205 = scmp.ne.s32.totalorder %s197, %s199
      %p206 = scmp.eq.s32.totalorder %s41, 1
      %p207 = por %p205, %p206
      %p208 = scmp.ne.s32.totalorder %s199, %s200
      %p209 = scmp.eq.s32.totalorder %s41, 0
      %p210 = por %p208, %p209
      %p211 = scmp.ne.s32.totalorder %s199, %s200
      %p212 = scmp.eq.s32.totalorder %s42, 1
      %p213 = por %p211, %p212
      %p215 = scmp.ne.s32.totalorder %s200, %s214
      %p216 = scmp.eq.s32.totalorder %s42, 0
      %p217 = por %p215, %p216
      %s219 = sadd.s32 %s218, 1
      %p222 = scmp.eq.s32.totalorder %s36, 1
      %p223 = scmp.ne.s32.totalorder %s218, %s220
      %p224 = scmp.eq.s32.totalorder %s36, 0
      %p225 = por %p223, %p224
      %p226 = scmp.ne.s32.totalorder %s218, %s220
      %p227 = scmp.eq.s32.totalorder %s41, 1
      %p228 = por %p226, %p227
      %p229 = scmp.ne.s32.totalorder %s220, %s221
      %p230 = scmp.eq.s32.totalorder %s41, 0
      %p231 = por %p229, %p230
      %p232 = scmp.ne.s32.totalorder %s220, %s221
      %p233 = scmp.eq.s32.totalorder %s42, 1
      %p234 = por %p232, %p233
      %p236 = scmp.ne.s32.totalorder %s221, %s235
      %p237 = scmp.eq.s32.totalorder %s42, 0
      %p238 = por %p236, %p237
      %s240 = sadd.s32 %s239, 1
      %p243 = scmp.eq.s32.totalorder %s36, 1
      %p244 = scmp.ne.s32.totalorder %s239, %s241
      %p245 = scmp.eq.s32.totalorder %s36, 0
      %p246 = por %p244, %p245
      %p247 = scmp.ne.s32.totalorder %s239, %s241
      %p248 = scmp.eq.s32.totalorder %s41, 1
      %p249 = por %p247, %p248
      %p250 = scmp.ne.s32.totalorder %s241, %s242
      %p251 = scmp.eq.s32.totalorder %s41, 0
      %p252 = por %p250, %p251
      %p253 = scmp.ne.s32.totalorder %s241, %s242
      %p254 = scmp.eq.s32.totalorder %s42, 1
      %p255 = por %p253, %p254
      %p257 = scmp.ne.s32.totalorder %s242, %s256
      %p258 = scmp.eq.s32.totalorder %s42, 0
      %p259 = por %p257, %p258
      %s261 = sadd.s32 %s260, 1
      %p264 = scmp.eq.s32.totalorder %s36, 1
      %p265 = scmp.ne.s32.totalorder %s260, %s262
      %p266 = scmp.eq.s32.totalorder %s36, 0
      %p267 = por %p265, %p266
      %p268 = scmp.ne.s32.totalorder %s260, %s262
      %p269 = scmp.eq.s32.totalorder %s41, 1
      %p270 = por %p268, %p269
      %p271 = scmp.ne.s32.totalorder %s262, %s263
      %p272 = scmp.eq.s32.totalorder %s41, 0
      %p273 = por %p271, %p272
      %p274 = scmp.ne.s32.totalorder %s262, %s263
      %p275 = scmp.eq.s32.totalorder %s42, 1
      %p276 = por %p274, %p275
      %p278 = scmp.ne.s32.totalorder %s263, %s277
      %p279 = scmp.eq.s32.totalorder %s42, 0
      %p280 = por %p278, %p279
      %s282 = sadd.s32 %s281, 1
      %p285 = scmp.eq.s32.totalorder %s36, 1
      %p286 = scmp.ne.s32.totalorder %s281, %s283
      %p287 = scmp.eq.s32.totalorder %s36, 0
      %p288 = por %p286, %p287
      %p289 = scmp.ne.s32.totalorder %s281, %s283
      %p290 = scmp.eq.s32.totalorder %s41, 1
      %p291 = por %p289, %p290
      %p292 = scmp.ne.s32.totalorder %s283, %s284
      %p293 = scmp.eq.s32.totalorder %s41, 0
      %p294 = por %p292, %p293
      %p295 = scmp.ne.s32.totalorder %s283, %s284
      %p296 = scmp.eq.s32.totalorder %s42, 1
      %p297 = por %p295, %p296
      %p299 = scmp.ne.s32.totalorder %s284, %s298
      %p300 = scmp.eq.s32.totalorder %s42, 0
      %p301 = por %p299, %p300
      %s302 = ssub.s32 %s36, %s43
      %p303 = scmp.eq.s32.totalorder %s302, 0
      %s305 = sadd.s32 %s304, 1
      %s306 = scalar_select %p303, %s304, %s305
      %p309 = pneg %p303
      %p310 = scmp.eq.s32.totalorder %s36, 1
      %p311 = por %p309, %p310
      %p312 = scmp.ne.s32.totalorder %s304, %s307
      %p313 = scmp.eq.s32.totalorder %s36, 0
      %p314 = por %p312, %p313
      %p315 = scmp.ne.s32.totalorder %s304, %s307
      %p316 = scmp.eq.s32.totalorder %s41, 1
      %p317 = por %p315, %p316
      %p318 = scmp.ne.s32.totalorder %s307, %s308
      %p319 = scmp.eq.s32.totalorder %s41, 0
      %p320 = por %p318, %p319
      %p321 = scmp.ne.s32.totalorder %s307, %s308
      %p322 = scmp.eq.s32.totalorder %s42, 1
      %p323 = por %p321, %p322
      %p325 = scmp.ne.s32.totalorder %s308, %s324
      %p326 = scmp.eq.s32.totalorder %s42, 0
      %p327 = por %p325, %p326
      %s328 = ssub.s32 %s36, %s43
      %p329 = scmp.eq.s32.totalorder %s328, 0
      %s331 = sadd.s32 %s330, 1
      %s332 = scalar_select %p329, %s330, %s331
      %p335 = pneg %p329
      %p336 = scmp.eq.s32.totalorder %s36, 1
      %p337 = por %p335, %p336
      %p338 = scmp.ne.s32.totalorder %s330, %s333
      %p339 = scmp.eq.s32.totalorder %s36, 0
      %p340 = por %p338, %p339
      %p341 = scmp.ne.s32.totalorder %s330, %s333
      %p342 = scmp.eq.s32.totalorder %s41, 1
      %p343 = por %p341, %p342
      %p344 = scmp.ne.s32.totalorder %s333, %s334
      %p345 = scmp.eq.s32.totalorder %s41, 0
      %p346 = por %p344, %p345
      %p347 = scmp.ne.s32.totalorder %s333, %s334
      %p348 = scmp.eq.s32.totalorder %s42, 1
      %p349 = por %p347, %p348
      %p351 = scmp.ne.s32.totalorder %s334, %s350
      %p352 = scmp.eq.s32.totalorder %s42, 0
      %p353 = por %p351, %p352
      %p354 = scmp.le.s32.totalorder 1, %s36
      %p355 = scmp.lt.s32.totalorder %s36, 3
      %p356 = pnand %p354, %p355
      %p357 = pneg %p356
      // Predicated region
      $region9: #{tpu_custom_call.1} parent=5 // pred_check
        _
      $region10: #{tpu_custom_call.1} parent=5 // pred_check_branch
        %359 = sbr.rel (%p356) target = $region12
      $region11: #{tpu_custom_call.1} parent=5 // pred_region
        %s360 = ssub.s32 %s36, 1
        // Predicated region
        $region13: #{tpu_custom_call.1} parent=11 // pred_check
          %p361 = pneg %p147
        $region14: #{tpu_custom_call.1} parent=11 // pred_check_branch
          %363 = sbr.rel (%p361) target = $region16
        $region15: #{tpu_custom_call.1} parent=11 // pred_region
          %s365 = ssub.s32 16, 16
          %366 = vsyncadd [#allocation5], %s365
          %s368 = sshll.u32 %s3, 4
          %s369 = int_to_ptr.vmem [resolvable:$true] %s368
          %371 = dma.vmem_to_smem %s369, 16, [#allocation9], [#allocation5]
        $region16: #{tpu_custom_call.1} parent=11 // pred_fallthru
          _
        // Predicated region
        $region17: #{tpu_custom_call.1} parent=11 // pred_check
          %p372 = pneg %p168
        $region18: #{tpu_custom_call.1} parent=11 // pred_check_branch
          %374 = sbr.rel (%p372) target = $region20
        $region19: #{tpu_custom_call.1} parent=11 // pred_region
          %s376 = ssub.s32 16, 16
          %377 = vsyncadd [#allocation11], %s376
          %s379 = sshll.u32 %s4, 4
          %s380 = int_to_ptr.vmem [resolvable:$true] %s379
          %382 = dma.vmem_to_smem %s380, 16, [#allocation10], [#allocation11]
        $region20: #{tpu_custom_call.1} parent=11 // pred_fallthru
          _
        // Predicated region
        $region21: #{tpu_custom_call.1} parent=11 // pred_check
          %p383 = pneg %p189
        $region22: #{tpu_custom_call.1} parent=11 // pred_check_branch
          %385 = sbr.rel (%p383) target = $region24
        $region23: #{tpu_custom_call.1} parent=11 // pred_region
          %s387 = ssub.s32 16, 16
          %388 = vsyncadd [#allocation11], %s387
          %s390 = sshll.u32 %s5, 4
          %s391 = int_to_ptr.vmem [resolvable:$true] %s390
          %393 = dma.vmem_to_smem %s391, 16, [#allocation12], [#allocation11]
        $region24: #{tpu_custom_call.1} parent=11 // pred_fallthru
          _
        // Predicated region
        $region25: #{tpu_custom_call.1} parent=11 // pred_check
          %p394 = pneg %p210
        $region26: #{tpu_custom_call.1} parent=11 // pred_check_branch
          %396 = sbr.rel (%p394) target = $region28
        $region27: #{tpu_custom_call.1} parent=11 // pred_region
          %s398 = ssub.s32 16, 16
          %399 = vsyncadd [#allocation14], %s398
          %s401 = sshll.u32 %s6, 4
          %s402 = int_to_ptr.vmem [resolvable:$true] %s401
          %404 = dma.vmem_to_smem %s402, 16, [#allocation13], [#allocation14]
        $region28: #{tpu_custom_call.1} parent=11 // pred_fallthru
          _
        // Predicated region
        $region29: #{tpu_custom_call.1} parent=11 // pred_check
          %p405 = pneg %p231
        $region30: #{tpu_custom_call.1} parent=11 // pred_check_branch
          %407 = sbr.rel (%p405) target = $region32
        $region31: #{tpu_custom_call.1} parent=11 // pred_region
          %s409 = ssub.s32 16, 16
          %410 = vsyncadd [#allocation14], %s409
          %s412 = sshll.u32 %s7, 4
          %s413 = int_to_ptr.vmem [resolvable:$true] %s412
          %415 = dma.vmem_to_smem %s413, 16, [#allocation15], [#allocation14]
        $region32: #{tpu_custom_call.1} parent=11 // pred_fallthru
          _
        // Predicated region
        $region33: #{tpu_custom_call.1} parent=11 // pred_check
          %p416 = pneg %p252
        $region34: #{tpu_custom_call.1} parent=11 // pred_check_branch
          %418 = sbr.rel (%p416) target = $region36
        $region35: #{tpu_custom_call.1} parent=11 // pred_region
          %s420 = ssub.s32 16, 16
          %421 = vsyncadd [#allocation17], %s420
          %s423 = sshll.u32 %s8, 4
          %s424 = int_to_ptr.vmem [resolvable:$true] %s423
          %426 = dma.vmem_to_smem %s424, 16, [#allocation16], [#allocation17]
        $region36: #{tpu_custom_call.1} parent=11 // pred_fallthru
          _
        // Predicated region
        $region37: #{tpu_custom_call.1} parent=11 // pred_check
          %p427 = pneg %p273
        $region38: #{tpu_custom_call.1} parent=11 // pred_check_branch
          %429 = sbr.rel (%p427) target = $region40
        $region39: #{tpu_custom_call.1} parent=11 // pred_region
          %s431 = ssub.s32 16, 16
          %432 = vsyncadd [#allocation17], %s431
          %s434 = sshll.u32 %s9, 4
          %s435 = int_to_ptr.vmem [resolvable:$true] %s434
          %437 = dma.vmem_to_smem %s435, 16, [#allocation18], [#allocation17]
        $region40: #{tpu_custom_call.1} parent=11 // pred_fallthru
          _
        // Predicated region
        $region41: #{tpu_custom_call.1} parent=11 // pred_check
          %p438 = pneg %p294
        $region42: #{tpu_custom_call.1} parent=11 // pred_check_branch
          %440 = sbr.rel (%p438) target = $region44
        $region43: #{tpu_custom_call.1} parent=11 // pred_region
          %s442 = ssub.s32 16, 16
          %443 = vsyncadd [#allocation20], %s442
          %s445 = sshll.u32 %s10, 4
          %s446 = int_to_ptr.vmem [resolvable:$true] %s445
          %448 = dma.vmem_to_smem %s446, 16, [#allocation19], [#allocation20]
        $region44: #{tpu_custom_call.1} parent=11 // pred_fallthru
          _
      $region12: #{tpu_custom_call.1} parent=5 // pred_fallthru
        _
      %p449 = scmp.lt.s32.totalorder %s36, 2
      // Predicated region
      $region45: #{tpu_custom_call.1} parent=5 // pred_check
        %p450 = pneg %p449
      $region46: #{tpu_custom_call.1} parent=5 // pred_check_branch
        %452 = sbr.rel (%p450) target = $region48
      $region47: #{tpu_custom_call.1} parent=5 // pred_region
        // Predicated region
        $region49: #{tpu_custom_call.1} parent=47 // pred_check
          %p453 = pneg %p62
        $region50: #{tpu_custom_call.1} parent=47 // pred_check_branch
          %455 = sbr.rel (%p453) target = $region52
        $region51: #{tpu_custom_call.1} parent=47 // pred_region
          %s456 = sand.u32 %s52, 1
          %s457 = scalar_lea.sflag [#allocation3], %s456
          %s458 = sand.u32 %s52, 1
          %s459 = smul.addr %s458, 24
          %s460 = scalar_lea.vmem [#allocation2], %s459
          %s461 = ssub.s32 %s36, 1
          %p462 = scmp.gt.s32.totalorder %s461, 0
          %s463 = scalar_select %p462, %s461, 0
          %s465 = ssub.s32 384, 384
          %466 = vsyncadd %s457, %s465
          %s467 = smul.addr %s463, 128
          %s468 = scalar_lea.hbm %s0, %s467
          %s469 = sshll.u32 %s460, 4
          %s470 = int_to_ptr.vmem [resolvable:$true] %s469
          %475 = dma.hbm_to_vmem [thread:$0]  %s468, 384, %s470, %s457, 256, 128, 8
        $region52: #{tpu_custom_call.1} parent=47 // pred_fallthru
          _
        // Predicated region
        $region53: #{tpu_custom_call.1} parent=47 // pred_check
          %p476 = pneg %p88
        $region54: #{tpu_custom_call.1} parent=47 // pred_check_branch
          %478 = sbr.rel (%p476) target = $region56
        $region55: #{tpu_custom_call.1} parent=47 // pred_region
          %s479 = sand.u32 %s36, 1
          %s480 = scalar_lea.sflag [#allocation7], %s479
          %s481 = sand.u32 %s78, 1
          %s482 = smul.addr %s481, 24
          %s483 = scalar_lea.vmem [#allocation6], %s482
          %s485 = ssub.s32 384, 384
          %486 = vsyncadd %s480, %s485
          %s487 = smul.addr %s36, 128
          %s488 = scalar_lea.hbm %s1, %s487
          %s489 = sshll.u32 %s483, 4
          %s490 = int_to_ptr.vmem [resolvable:$true] %s489
          %495 = dma.hbm_to_vmem [thread:$0]  %s488, 384, %s490, %s480, 256, 128, 8
        $region56: #{tpu_custom_call.1} parent=47 // pred_fallthru
          _
        // Predicated region
        $region57: #{tpu_custom_call.1} parent=47 // pred_check
          %p496 = pneg %p120
        $region58: #{tpu_custom_call.1} parent=47 // pred_check_branch
          %498 = sbr.rel (%p496) target = $region60
        $region59: #{tpu_custom_call.1} parent=47 // pred_region
          %s499 = sand.u32 %s36, 1
          %s500 = scalar_lea.sflag [#allocation7], %s499
          %s501 = sand.u32 %s110, 1
          %s502 = smul.addr %s501, 24
          %s503 = scalar_lea.vmem [#allocation8], %s502
          %s504 = sadd.s32 %s36, 1
          %p505 = scmp.lt.s32.totalorder %s504, 1
          %s506 = scalar_select %p505, %s504, 1
          %s508 = ssub.s32 384, 384
          %509 = vsyncadd %s500, %s508
          %s510 = smul.addr %s506, 128
          %s511 = scalar_lea.hbm %s2, %s510
          %s512 = sshll.u32 %s503, 4
          %s513 = int_to_ptr.vmem [resolvable:$true] %s512
          %518 = dma.hbm_to_vmem [thread:$0]  %s511, 384, %s513, %s500, 256, 128, 8
        $region60: #{tpu_custom_call.1} parent=47 // pred_fallthru
          _
      $region48: #{tpu_custom_call.1} parent=5 // pred_fallthru
        _
      %p519 = scmp.le.s32.totalorder 1, %s36
      %p520 = scmp.lt.s32.totalorder %s36, 3
      %p521 = pnand %p519, %p520
      %p522 = pneg %p521
      // Predicated region
      $region61: #{tpu_custom_call.1} parent=5 // pred_check
        _
      $region62: #{tpu_custom_call.1} parent=5 // pred_check_branch
        %524 = sbr.rel (%p521) target = $region64
      $region63: #{tpu_custom_call.1} parent=5 // pred_region
        %s525 = ssub.s32 %s36, 1
        %s526 = sand.u32 %s55, 1
        %s527 = scalar_lea.sflag [#allocation3], %s526
        %s528 = sand.u32 %s55, 1
        %s529 = smul.addr %s528, 24
        %s530 = scalar_lea.vmem [#allocation2], %s529
        // Predicated region
        $region65: #{tpu_custom_call.1} parent=63 // pred_check
          %p531 = pneg %p68
        $region66: #{tpu_custom_call.1} parent=63 // pred_check_branch
          %533 = sbr.rel (%p531) target = $region68
        $region67: #{tpu_custom_call.1} parent=63 // pred_region
          %534 = dma.done %s527, 384
        $region68: #{tpu_custom_call.1} parent=63 // pred_fallthru
          _
        %s535 = sand.u32 %s41, 1
        %s536 = scalar_lea.sflag [#allocation7], %s535
        %s537 = sand.u32 %s81, 1
        %s538 = smul.addr %s537, 24
        %s539 = scalar_lea.vmem [#allocation6], %s538
        // Predicated region
        $region69: #{tpu_custom_call.1} parent=63 // pred_check
          %p540 = pneg %p94
        $region70: #{tpu_custom_call.1} parent=63 // pred_check_branch
          %542 = sbr.rel (%p540) target = $region72
        $region71: #{tpu_custom_call.1} parent=63 // pred_region
          %543 = dma.done %s536, 384
        $region72: #{tpu_custom_call.1} parent=63 // pred_fallthru
          _
        %s544 = sand.u32 %s41, 1
        %s545 = scalar_lea.sflag [#allocation7], %s544
        %s546 = sand.u32 %s113, 1
        %s547 = smul.addr %s546, 24
        %s548 = scalar_lea.vmem [#allocation8], %s547
        // Predicated region
        $region73: #{tpu_custom_call.1} parent=63 // pred_check
          %p549 = pneg %p126
        $region74: #{tpu_custom_call.1} parent=63 // pred_check_branch
          %551 = sbr.rel (%p549) target = $region76
        $region75: #{tpu_custom_call.1} parent=63 // pred_region
          %552 = dma.done %s545, 384
        $region76: #{tpu_custom_call.1} parent=63 // pred_fallthru
          _
        // Predicated region
        $region77: #{tpu_custom_call.1} parent=63 // pred_check
          %p553 = pneg %p147
        $region78: #{tpu_custom_call.1} parent=63 // pred_check_branch
          %555 = sbr.rel (%p553) target = $region80
        $region79: #{tpu_custom_call.1} parent=63 // pred_region
          %556 = dma.done [#allocation5], 16
        $region80: #{tpu_custom_call.1} parent=63 // pred_fallthru
          _
        // Predicated region
        $region81: #{tpu_custom_call.1} parent=63 // pred_check
          %p557 = pneg %p168
        $region82: #{tpu_custom_call.1} parent=63 // pred_check_branch
          %559 = sbr.rel (%p557) target = $region84
        $region83: #{tpu_custom_call.1} parent=63 // pred_region
          %560 = dma.done [#allocation11], 16
        $region84: #{tpu_custom_call.1} parent=63 // pred_fallthru
          _
        // Predicated region
        $region85: #{tpu_custom_call.1} parent=63 // pred_check
          %p561 = pneg %p189
        $region86: #{tpu_custom_call.1} parent=63 // pred_check_branch
          %563 = sbr.rel (%p561) target = $region88
        $region87: #{tpu_custom_call.1} parent=63 // pred_region
          %564 = dma.done [#allocation11], 16
        $region88: #{tpu_custom_call.1} parent=63 // pred_fallthru
          _
        // Predicated region
        $region89: #{tpu_custom_call.1} parent=63 // pred_check
          %p565 = pneg %p210
        $region90: #{tpu_custom_call.1} parent=63 // pred_check_branch
          %567 = sbr.rel (%p565) target = $region92
        $region91: #{tpu_custom_call.1} parent=63 // pred_region
          %568 = dma.done [#allocation14], 16
        $region92: #{tpu_custom_call.1} parent=63 // pred_fallthru
          _
        // Predicated region
        $region93: #{tpu_custom_call.1} parent=63 // pred_check
          %p569 = pneg %p231
        $region94: #{tpu_custom_call.1} parent=63 // pred_check_branch
          %571 = sbr.rel (%p569) target = $region96
        $region95: #{tpu_custom_call.1} parent=63 // pred_region
          %572 = dma.done [#allocation14], 16
        $region96: #{tpu_custom_call.1} parent=63 // pred_fallthru
          _
        // Predicated region
        $region97: #{tpu_custom_call.1} parent=63 // pred_check
          %p573 = pneg %p252
        $region98: #{tpu_custom_call.1} parent=63 // pred_check_branch
          %575 = sbr.rel (%p573) target = $region100
        $region99: #{tpu_custom_call.1} parent=63 // pred_region
          %576 = dma.done [#allocation17], 16
        $region100: #{tpu_custom_call.1} parent=63 // pred_fallthru
          _
        // Predicated region
        $region101: #{tpu_custom_call.1} parent=63 // pred_check
          %p577 = pneg %p273
        $region102: #{tpu_custom_call.1} parent=63 // pred_check_branch
          %579 = sbr.rel (%p577) target = $region104
        $region103: #{tpu_custom_call.1} parent=63 // pred_region
          %580 = dma.done [#allocation17], 16
        $region104: #{tpu_custom_call.1} parent=63 // pred_fallthru
          _
        // Predicated region
        $region105: #{tpu_custom_call.1} parent=63 // pred_check
          %p581 = pneg %p294
        $region106: #{tpu_custom_call.1} parent=63 // pred_check_branch
          %583 = sbr.rel (%p581) target = $region108
        $region107: #{tpu_custom_call.1} parent=63 // pred_region
          %584 = dma.done [#allocation20], 16
        $region108: #{tpu_custom_call.1} parent=63 // pred_fallthru
          _
        %585 = sfence
        %s586 = sand.u32 %s55, 1
        %s587 = scalar_lea.sflag [#allocation3], %s586
        %s588 = sand.u32 %s55, 1
        %s589 = smul.addr %s588, 24
        %s590 = scalar_lea.vmem [#allocation2], %s589
        %p591 = pneg %p68
        %p592 = pneg %p65
        %s593 = sand.u32 %s41, 1
        %s594 = scalar_lea.sflag [#allocation7], %s593
        %s595 = sand.u32 %s81, 1
        %s596 = smul.addr %s595, 24
        %s597 = scalar_lea.vmem [#allocation6], %s596
        %p598 = pneg %p94
        %p599 = pneg %p91
        %s600 = sand.u32 %s41, 1
        %s601 = scalar_lea.sflag [#allocation7], %s600
        %s602 = sand.u32 %s113, 1
        %s603 = smul.addr %s602, 24
        %s604 = scalar_lea.vmem [#allocation8], %s603
        %p605 = pneg %p126
        %p606 = pneg %p123
        %p607 = pneg %p147
        %p608 = pneg %p144
        %p609 = pneg %p168
        %p610 = pneg %p165
        %p611 = pneg %p189
        %p612 = pneg %p186
        %p613 = pneg %p210
        %p614 = pneg %p207
        %p615 = pneg %p231
        %p616 = pneg %p228
        %p617 = pneg %p252
        %p618 = pneg %p249
        %p619 = pneg %p273
        %p620 = pneg %p270
        %p621 = pneg %p294
        %p622 = pneg %p291
        %p623 = pneg %p320
        %p624 = pneg %p317
        %s625 = sand.u32 %s307, 1
        %s626 = scalar_lea.sflag [#allocation4], %s625
        %s627 = sand.u32 %s307, 1
        %s628 = smul.addr %s627, 24
        %s629 = scalar_lea.vmem [#allocation21], %s628
        %p630 = pneg %p346
        %p631 = pneg %p343
        %s632 = sand.u32 %s333, 1
        %s633 = scalar_lea.sflag [#allocation23], %s632
        %s634 = sand.u32 %s333, 1
        %s635 = smul.addr %s634, 24
        %s636 = scalar_lea.vmem [#allocation22], %s635
        %s637 = ssub.s32 %s41, 1
        %p638 = scmp.gt.s32.totalorder %s637, 0
        %s639 = scalar_select %p638, %s637, 0
        %s640 = sadd.s32 %s41, 1
        %p641 = scmp.lt.s32.totalorder %s640, 1
        %s642 = scalar_select %p641, %s640, 1
        %v643 = vlaneseq
        %v644 = vshrl.u32 %v643, 7
        %v645 = vadd.s32 %v644, 8
        %v646 = vadd.s32 %v644, 16
        %v647 = vlaneseq
        %v648 = vand.u32 %v647, 127
        %s649 = smul.u32 %s41, 8
        %v650 = vstv %s649
        %v651 = vadd.s32 %v650, %v644
        %v652 = vadd.s32 %v650, %v645
        %v653 = vadd.s32 %v650, %v646
        %v654 = vsub.s32 %v651, 8
        %v655 = vsub.s32 %v652, 8
        %v656 = vsub.s32 %v653, 8
        %vm657 = vcmp.ge.s32.totalorder %v654, 0
        %vm658 = vcmp.ge.s32.totalorder %v655, 0
        %vm659 = vcmp.ge.s32.totalorder %v656, 0
        %vm660 = vcmp.lt.s32.totalorder %v654, 16
        %vm661 = vcmp.lt.s32.totalorder %v655, 16
        %vm662 = vcmp.lt.s32.totalorder %v656, 16
        %vm663 = vmand %vm657, %vm660
        %vm664 = vmand %vm658, %vm661
        %vm665 = vmand %vm659, %vm662
        %vm666 = vcmp.lt.s32.totalorder %v648, 16
        %vm667 = vmand %vm663, %vm666
        %vm668 = vmand %vm664, %vm666
        %vm669 = vmand %vm665, %vm666
        %v670 = vld [vmem:[%s530] sm:$0xff]
        %v671 = vld [vmem:[%s539] sm:$0xff]
        %v672 = vld [vmem:[%s548] sm:$0xff]
        %v673 = vsel %vm667, %v670, 0.0
        %v674 = vsel %vm668, %v671, 0.0
        %v675 = vsel %vm669, %v672, 0.0
        %s676 = scalar_lea.vmem %s530, 8 [#allocation2]
        %v677 = vld [vmem:[%s676] sm:$0xff]
        %s678 = scalar_lea.vmem %s539, 8 [#allocation6]
        %v679 = vld [vmem:[%s678] sm:$0xff]
        %s680 = scalar_lea.vmem %s548, 8 [#allocation8]
        %v681 = vld [vmem:[%s680] sm:$0xff]
        %v682 = vsel %vm667, %v677, 0.0
        %v683 = vsel %vm668, %v679, 0.0
        %v684 = vsel %vm669, %v681, 0.0
        %s685 = scalar_lea.vmem %s530, 16 [#allocation2]
        %v686 = vld [vmem:[%s685] sm:$0xff]
        %s687 = scalar_lea.vmem %s539, 16 [#allocation6]
        %v688 = vld [vmem:[%s687] sm:$0xff]
        %s689 = scalar_lea.vmem %s548, 16 [#allocation8]
        %v690 = vld [vmem:[%s689] sm:$0xff]
        %v691 = vsel %vm667, %v686, 0.0
        %v692 = vsel %vm668, %v688, 0.0
        %v693 = vsel %vm669, %v690, 0.0
        %s694 = sld [smem:[#allocation9]]
        %s695 = sld [smem:[#allocation9 + $0x1]]
        %s696 = sld [smem:[#allocation9 + $0x2]]
        %s697 = sld [smem:[#allocation9 + $0x3]]
        %s698 = sld [smem:[#allocation9 + $0x4]]
        %s699 = sld [smem:[#allocation9 + $0x5]]
        %s700 = sld [smem:[#allocation9 + $0x6]]
        %s701 = sld [smem:[#allocation9 + $0x7]]
        %s702 = sld [smem:[#allocation9 + $0x8]]
        %s703 = sld [smem:[#allocation9 + $0x9]]
        %s704 = sld [smem:[#allocation9 + $0xa]]
        %s705 = sld [smem:[#allocation9 + $0xb]]
        %s706 = sld [smem:[#allocation9 + $0xc]]
        %s707 = sld [smem:[#allocation9 + $0xd]]
        %s708 = sld [smem:[#allocation9 + $0xe]]
        %s709 = sld [smem:[#allocation9 + $0xf]]
        %s710 = sld [smem:[#allocation9 + $0x10]]
        %s711 = sld [smem:[#allocation9 + $0x11]]
        %s712 = sld [smem:[#allocation9 + $0x12]]
        %s713 = sld [smem:[#allocation9 + $0x13]]
        %s714 = sld [smem:[#allocation9 + $0x14]]
        %s715 = sld [smem:[#allocation9 + $0x15]]
        %s716 = sld [smem:[#allocation9 + $0x16]]
        %s717 = sld [smem:[#allocation9 + $0x17]]
        %s718 = sld [smem:[#allocation9 + $0x18]]
        %s719 = sld [smem:[#allocation9 + $0x19]]
        %s720 = sld [smem:[#allocation9 + $0x1a]]
        %s721 = sld [smem:[#allocation9 + $0x1b]]
        %s722 = sld [smem:[#allocation9 + $0x1c]]
        %s723 = sld [smem:[#allocation9 + $0x1d]]
        %s724 = sld [smem:[#allocation9 + $0x1e]]
        %s725 = sld [smem:[#allocation9 + $0x1f]]
        %s726 = sld [smem:[#allocation9 + $0x20]]
        %s727 = sld [smem:[#allocation9 + $0x21]]
        %s728 = sld [smem:[#allocation9 + $0x22]]
        %s729 = sld [smem:[#allocation9 + $0x23]]
        %s730 = sld [smem:[#allocation9 + $0x24]]
        %s731 = sld [smem:[#allocation9 + $0x25]]
        %s732 = sld [smem:[#allocation9 + $0x26]]
        %s733 = sld [smem:[#allocation9 + $0x27]]
        %s734 = sld [smem:[#allocation9 + $0x28]]
        %s735 = sld [smem:[#allocation9 + $0x29]]
        %s736 = sld [smem:[#allocation9 + $0x2a]]
        %s737 = sld [smem:[#allocation9 + $0x2b]]
        %s738 = sld [smem:[#allocation9 + $0x2c]]
        %s739 = sld [smem:[#allocation9 + $0x2d]]
        %s740 = sld [smem:[#allocation9 + $0x2e]]
        %s741 = sld [smem:[#allocation9 + $0x2f]]
        %s742 = sld [smem:[#allocation9 + $0x30]]
        %s743 = sld [smem:[#allocation9 + $0x31]]
        %s744 = sld [smem:[#allocation9 + $0x32]]
        %s745 = sld [smem:[#allocation9 + $0x33]]
        %s746 = sld [smem:[#allocation9 + $0x34]]
        %s747 = sld [smem:[#allocation9 + $0x35]]
        %s748 = sld [smem:[#allocation9 + $0x36]]
        %s749 = sld [smem:[#allocation9 + $0x37]]
        %s750 = sld [smem:[#allocation9 + $0x38]]
        %s751 = sld [smem:[#allocation9 + $0x39]]
        %s752 = sld [smem:[#allocation9 + $0x3a]]
        %s753 = sld [smem:[#allocation9 + $0x3b]]
        %s754 = sld [smem:[#allocation9 + $0x3c]]
        %s755 = sld [smem:[#allocation9 + $0x3d]]
        %s756 = sld [smem:[#allocation9 + $0x3e]]
        %s757 = sld [smem:[#allocation9 + $0x3f]]
        %s758 = sld [smem:[#allocation9 + $0x40]]
        %s759 = sld [smem:[#allocation9 + $0x41]]
        %s760 = sld [smem:[#allocation9 + $0x42]]
        %s761 = sld [smem:[#allocation9 + $0x43]]
        %s762 = sld [smem:[#allocation9 + $0x44]]
        %s763 = sld [smem:[#allocation9 + $0x45]]
        %s764 = sld [smem:[#allocation9 + $0x46]]
        %s765 = sld [smem:[#allocation9 + $0x47]]
        %s766 = sld [smem:[#allocation9 + $0x48]]
        %s767 = sld [smem:[#allocation9 + $0x49]]
        %s768 = sld [smem:[#allocation9 + $0x4a]]
        %s769 = sld [smem:[#allocation9 + $0x4b]]
        %s770 = sld [smem:[#allocation9 + $0x4c]]
        %s771 = sld [smem:[#allocation9 + $0x4d]]
        %s772 = sld [smem:[#allocation9 + $0x4e]]
        %s773 = sld [smem:[#allocation9 + $0x4f]]
        %s774 = sld [smem:[#allocation9 + $0x50]]
        %s775 = sld [smem:[#allocation10]]
        %v776 = vstv %s775
        %s777 = sld [smem:[#allocation10 + $0x1]]
        %v778 = vstv %s777
        %s779 = sld [smem:[#allocation10 + $0x2]]
        %v780 = vstv %s779
        %784 = vrot.lane.b32.xlu0 %v673, 1
        %v785 = vpop.permute.xlu0 %784
        %786 = vrot.lane.b32.xlu0 %v674, 1
        %v787 = vpop.permute.xlu0 %786
        %788 = vrot.lane.b32.xlu0 %v675, 1
        %v789 = vpop.permute.xlu0 %788
        %vm793 = vcmask 7168
        %v794 = vsel %vm793, 0.0, %v785
        %v795 = vsel %vm793, 0.0, %v787
        %v796 = vsel %vm793, 0.0, %v789
        %797 = vrot.lane.b32.xlu0 %v673, 127
        %v798 = vpop.permute.xlu0 %797
        %799 = vrot.lane.b32.xlu0 %v674, 127
        %v800 = vpop.permute.xlu0 %799
        %801 = vrot.lane.b32.xlu0 %v675, 127
        %v802 = vpop.permute.xlu0 %801
        %vm806 = vcmask 1039360
        %v807 = vsel %vm806, %v798, 0.0
        %v808 = vsel %vm806, %v800, 0.0
        %v809 = vsel %vm806, %v802, 0.0
        %vm813 = vcmask 1040384
        %v814 = vrot.slane %v794, 7
        %v815 = vrot.slane %v795, 7
        %v816 = vsel %vm813, %v814, %v815
        %v817 = vrot.slane %v796, 7
        %v818 = vsel %vm813, %v815, %v817
        %v822 = vsel %vm813, 0.0, %v814
        %v823 = vrot.slane %v673, 7
        %v824 = vrot.slane %v674, 7
        %v825 = vsel %vm813, %v823, %v824
        %v826 = vrot.slane %v675, 7
        %v827 = vsel %vm813, %v824, %v826
        %v831 = vsel %vm813, 0.0, %v823
        %v835 = vrot.slane %v807, 7
        %v836 = vrot.slane %v808, 7
        %v837 = vsel %vm813, %v835, %v836
        %v838 = vrot.slane %v809, 7
        %v839 = vsel %vm813, %v836, %v838
        %v843 = vsel %vm813, 0.0, %v835
        %vm844 = vcmask 1046528
        %v845 = vrot.slane %v794, 1
        %v846 = vrot.slane %v795, 1
        %v847 = vsel %vm844, %v845, %v846
        %v848 = vrot.slane %v796, 1
        %v849 = vsel %vm844, %v846, %v848
        %v853 = vsel %vm844, %v848, 0.0
        %v854 = vrot.slane %v673, 1
        %v855 = vrot.slane %v674, 1
        %v856 = vsel %vm844, %v854, %v855
        %v857 = vrot.slane %v675, 1
        %v858 = vsel %vm844, %v855, %v857
        %v862 = vsel %vm844, %v857, 0.0
        %v863 = vrot.slane %v807, 1
        %v864 = vrot.slane %v808, 1
        %v865 = vsel %vm844, %v863, %v864
        %v866 = vrot.slane %v809, 1
        %v867 = vsel %vm844, %v864, %v866
        %v871 = vsel %vm844, %v866, 0.0
        %v872 = vstv %s694
        %v873 = vmul.f32 %v822, %v872
        %v874 = vmul.f32 %v816, %v872
        %v875 = vmul.f32 %v818, %v872
        %v876 = vstv %s695
        %v877 = vmul.f32 %v831, %v876
        %v878 = vmul.f32 %v825, %v876
        %v879 = vmul.f32 %v827, %v876
        %v880 = vadd.f32 %v873, %v877
        %v881 = vadd.f32 %v874, %v878
        %v882 = vadd.f32 %v875, %v879
        %v883 = vstv %s696
        %v884 = vmul.f32 %v843, %v883
        %v885 = vmul.f32 %v837, %v883
        %v886 = vmul.f32 %v839, %v883
        %v887 = vadd.f32 %v880, %v884
        %v888 = vadd.f32 %v881, %v885
        %v889 = vadd.f32 %v882, %v886
        %v890 = vstv %s697
        %v891 = vmul.f32 %v794, %v890
        %v892 = vmul.f32 %v795, %v890
        %v893 = vmul.f32 %v796, %v890
        %v894 = vadd.f32 %v887, %v891
        %v895 = vadd.f32 %v888, %v892
        %v896 = vadd.f32 %v889, %v893
        %v897 = vstv %s698
        %v898 = vmul.f32 %v673, %v897
        %v899 = vmul.f32 %v674, %v897
        %v900 = vmul.f32 %v675, %v897
        %v901 = vadd.f32 %v894, %v898
        %v902 = vadd.f32 %v895, %v899
        %v903 = vadd.f32 %v896, %v900
        %v904 = vstv %s699
        %v905 = vmul.f32 %v807, %v904
        %v906 = vmul.f32 %v808, %v904
        %v907 = vmul.f32 %v809, %v904
        %v908 = vadd.f32 %v901, %v905
        %v909 = vadd.f32 %v902, %v906
        %v910 = vadd.f32 %v903, %v907
        %v911 = vstv %s700
        %v912 = vmul.f32 %v847, %v911
        %v913 = vmul.f32 %v849, %v911
        %v914 = vmul.f32 %v853, %v911
        %v915 = vadd.f32 %v908, %v912
        %v916 = vadd.f32 %v909, %v913
        %v917 = vadd.f32 %v910, %v914
        %v918 = vstv %s701
        %v919 = vmul.f32 %v856, %v918
        %v920 = vmul.f32 %v858, %v918
        %v921 = vmul.f32 %v862, %v918
        %v922 = vadd.f32 %v915, %v919
        %v923 = vadd.f32 %v916, %v920
        %v924 = vadd.f32 %v917, %v921
        %v925 = vstv %s702
        %v926 = vmul.f32 %v865, %v925
        %v927 = vmul.f32 %v867, %v925
        %v928 = vmul.f32 %v871, %v925
        %v929 = vadd.f32 %v922, %v926
        %v930 = vadd.f32 %v923, %v927
        %v931 = vadd.f32 %v924, %v928
        %v932 = vadd.f32 %v776, %v929
        %v933 = vadd.f32 %v776, %v930
        %v934 = vadd.f32 %v776, %v931
        %v935 = vstv %s721
        %v936 = vmul.f32 %v822, %v935
        %v937 = vmul.f32 %v816, %v935
        %v938 = vmul.f32 %v818, %v935
        %v939 = vstv %s722
        %v940 = vmul.f32 %v831, %v939
        %v941 = vmul.f32 %v825, %v939
        %v942 = vmul.f32 %v827, %v939
        %v943 = vadd.f32 %v936, %v940
        %v944 = vadd.f32 %v937, %v941
        %v945 = vadd.f32 %v938, %v942
        %v946 = vstv %s723
        %v947 = vmul.f32 %v843, %v946
        %v948 = vmul.f32 %v837, %v946
        %v949 = vmul.f32 %v839, %v946
        %v950 = vadd.f32 %v943, %v947
        %v951 = vadd.f32 %v944, %v948
        %v952 = vadd.f32 %v945, %v949
        %v953 = vstv %s724
        %v954 = vmul.f32 %v794, %v953
        %v955 = vmul.f32 %v795, %v953
        %v956 = vmul.f32 %v796, %v953
        %v957 = vadd.f32 %v950, %v954
        %v958 = vadd.f32 %v951, %v955
        %v959 = vadd.f32 %v952, %v956
        %v960 = vstv %s725
        %v961 = vmul.f32 %v673, %v960
        %v962 = vmul.f32 %v674, %v960
        %v963 = vmul.f32 %v675, %v960
        %v964 = vadd.f32 %v957, %v961
        %v965 = vadd.f32 %v958, %v962
        %v966 = vadd.f32 %v959, %v963
        %v967 = vstv %s726
        %v968 = vmul.f32 %v807, %v967
        %v969 = vmul.f32 %v808, %v967
        %v970 = vmul.f32 %v809, %v967
        %v971 = vadd.f32 %v964, %v968
        %v972 = vadd.f32 %v965, %v969
        %v973 = vadd.f32 %v966, %v970
        %v974 = vstv %s727
        %v975 = vmul.f32 %v847, %v974
        %v976 = vmul.f32 %v849, %v974
        %v977 = vmul.f32 %v853, %v974
        %v978 = vadd.f32 %v971, %v975
        %v979 = vadd.f32 %v972, %v976
        %v980 = vadd.f32 %v973, %v977
        %v981 = vstv %s728
        %v982 = vmul.f32 %v856, %v981
        %v983 = vmul.f32 %v858, %v981
        %v984 = vmul.f32 %v862, %v981
        %v985 = vadd.f32 %v978, %v982
        %v986 = vadd.f32 %v979, %v983
        %v987 = vadd.f32 %v980, %v984
        %v988 = vstv %s729
        %v989 = vmul.f32 %v865, %v988
        %v990 = vmul.f32 %v867, %v988
        %v991 = vmul.f32 %v871, %v988
        %v992 = vadd.f32 %v985, %v989
        %v993 = vadd.f32 %v986, %v990
        %v994 = vadd.f32 %v987, %v991
        %v995 = vadd.f32 %v778, %v992
        %v996 = vadd.f32 %v778, %v993
        %v997 = vadd.f32 %v778, %v994
        %v998 = vstv %s748
        %v999 = vmul.f32 %v822, %v998
        %v1000 = vmul.f32 %v816, %v998
        %v1001 = vmul.f32 %v818, %v998
        %v1002 = vstv %s749
        %v1003 = vmul.f32 %v831, %v1002
        %v1004 = vmul.f32 %v825, %v1002
        %v1005 = vmul.f32 %v827, %v1002
        %v1006 = vadd.f32 %v999, %v1003
        %v1007 = vadd.f32 %v1000, %v1004
        %v1008 = vadd.f32 %v1001, %v1005
        %v1009 = vstv %s750
        %v1010 = vmul.f32 %v843, %v1009
        %v1011 = vmul.f32 %v837, %v1009
        %v1012 = vmul.f32 %v839, %v1009
        %v1013 = vadd.f32 %v1006, %v1010
        %v1014 = vadd.f32 %v1007, %v1011
        %v1015 = vadd.f32 %v1008, %v1012
        %v1016 = vstv %s751
        %v1017 = vmul.f32 %v794, %v1016
        %v1018 = vmul.f32 %v795, %v1016
        %v1019 = vmul.f32 %v796, %v1016
        %v1020 = vadd.f32 %v1013, %v1017
        %v1021 = vadd.f32 %v1014, %v1018
        %v1022 = vadd.f32 %v1015, %v1019
        %v1023 = vstv %s752
        %v1024 = vmul.f32 %v673, %v1023
        %v1025 = vmul.f32 %v674, %v1023
        %v1026 = vmul.f32 %v675, %v1023
        %v1027 = vadd.f32 %v1020, %v1024
        %v1028 = vadd.f32 %v1021, %v1025
        %v1029 = vadd.f32 %v1022, %v1026
        %v1030 = vstv %s753
        %v1031 = vmul.f32 %v807, %v1030
        %v1032 = vmul.f32 %v808, %v1030
        %v1033 = vmul.f32 %v809, %v1030
        %v1034 = vadd.f32 %v1027, %v1031
        %v1035 = vadd.f32 %v1028, %v1032
        %v1036 = vadd.f32 %v1029, %v1033
        %v1037 = vstv %s754
        %v1038 = vmul.f32 %v847, %v1037
        %v1039 = vmul.f32 %v849, %v1037
        %v1040 = vmul.f32 %v853, %v1037
        %v1041 = vadd.f32 %v1034, %v1038
        %v1042 = vadd.f32 %v1035, %v1039
        %v1043 = vadd.f32 %v1036, %v1040
        %v1044 = vstv %s755
        %v1045 = vmul.f32 %v856, %v1044
        %v1046 = vmul.f32 %v858, %v1044
        %v1047 = vmul.f32 %v862, %v1044
        %v1048 = vadd.f32 %v1041, %v1045
        %v1049 = vadd.f32 %v1042, %v1046
        %v1050 = vadd.f32 %v1043, %v1047
        %v1051 = vstv %s756
        %v1052 = vmul.f32 %v865, %v1051
        %v1053 = vmul.f32 %v867, %v1051
        %v1054 = vmul.f32 %v871, %v1051
        %v1055 = vadd.f32 %v1048, %v1052
        %v1056 = vadd.f32 %v1049, %v1053
        %v1057 = vadd.f32 %v1050, %v1054
        %v1058 = vadd.f32 %v780, %v1055
        %v1059 = vadd.f32 %v780, %v1056
        %v1060 = vadd.f32 %v780, %v1057
        %1064 = vrot.lane.b32.xlu0 %v682, 1
        %v1065 = vpop.permute.xlu0 %1064
        %1066 = vrot.lane.b32.xlu0 %v683, 1
        %v1067 = vpop.permute.xlu0 %1066
        %1068 = vrot.lane.b32.xlu0 %v684, 1
        %v1069 = vpop.permute.xlu0 %1068
        %v1073 = vsel %vm793, 0.0, %v1065
        %v1074 = vsel %vm793, 0.0, %v1067
        %v1075 = vsel %vm793, 0.0, %v1069
        %1076 = vrot.lane.b32.xlu0 %v682, 127
        %v1077 = vpop.permute.xlu0 %1076
        %1078 = vrot.lane.b32.xlu0 %v683, 127
        %v1079 = vpop.permute.xlu0 %1078
        %1080 = vrot.lane.b32.xlu0 %v684, 127
        %v1081 = vpop.permute.xlu0 %1080
        %v1085 = vsel %vm806, %v1077, 0.0
        %v1086 = vsel %vm806, %v1079, 0.0
        %v1087 = vsel %vm806, %v1081, 0.0
        %v1091 = vrot.slane %v1073, 7
        %v1092 = vrot.slane %v1074, 7
        %v1093 = vsel %vm813, %v1091, %v1092
        %v1094 = vrot.slane %v1075, 7
        %v1095 = vsel %vm813, %v1092, %v1094
        %v1099 = vsel %vm813, 0.0, %v1091
        %v1100 = vrot.slane %v682, 7
        %v1101 = vrot.slane %v683, 7
        %v1102 = vsel %vm813, %v1100, %v1101
        %v1103 = vrot.slane %v684, 7
        %v1104 = vsel %vm813, %v1101, %v1103
        %v1108 = vsel %vm813, 0.0, %v1100
        %v1112 = vrot.slane %v1085, 7
        %v1113 = vrot.slane %v1086, 7
        %v1114 = vsel %vm813, %v1112, %v1113
        %v1115 = vrot.slane %v1087, 7
        %v1116 = vsel %vm813, %v1113, %v1115
        %v1120 = vsel %vm813, 0.0, %v1112
        %v1121 = vrot.slane %v1073, 1
        %v1122 = vrot.slane %v1074, 1
        %v1123 = vsel %vm844, %v1121, %v1122
        %v1124 = vrot.slane %v1075, 1
        %v1125 = vsel %vm844, %v1122, %v1124
        %v1129 = vsel %vm844, %v1124, 0.0
        %v1130 = vrot.slane %v682, 1
        %v1131 = vrot.slane %v683, 1
        %v1132 = vsel %vm844, %v1130, %v1131
        %v1133 = vrot.slane %v684, 1
        %v1134 = vsel %vm844, %v1131, %v1133
        %v1138 = vsel %vm844, %v1133, 0.0
        %v1139 = vrot.slane %v1085, 1
        %v1140 = vrot.slane %v1086, 1
        %v1141 = vsel %vm844, %v1139, %v1140
        %v1142 = vrot.slane %v1087, 1
        %v1143 = vsel %vm844, %v1140, %v1142
        %v1147 = vsel %vm844, %v1142, 0.0
        %v1148 = vstv %s703
        %v1149 = vmul.f32 %v1099, %v1148
        %v1150 = vmul.f32 %v1093, %v1148
        %v1151 = vmul.f32 %v1095, %v1148
        %v1152 = vstv %s704
        %v1153 = vmul.f32 %v1108, %v1152
        %v1154 = vmul.f32 %v1102, %v1152
        %v1155 = vmul.f32 %v1104, %v1152
        %v1156 = vadd.f32 %v1149, %v1153
        %v1157 = vadd.f32 %v1150, %v1154
        %v1158 = vadd.f32 %v1151, %v1155
        %v1159 = vstv %s705
        %v1160 = vmul.f32 %v1120, %v1159
        %v1161 = vmul.f32 %v1114, %v1159
        %v1162 = vmul.f32 %v1116, %v1159
        %v1163 = vadd.f32 %v1156, %v1160
        %v1164 = vadd.f32 %v1157, %v1161
        %v1165 = vadd.f32 %v1158, %v1162
        %v1166 = vstv %s706
        %v1167 = vmul.f32 %v1073, %v1166
        %v1168 = vmul.f32 %v1074, %v1166
        %v1169 = vmul.f32 %v1075, %v1166
        %v1170 = vadd.f32 %v1163, %v1167
        %v1171 = vadd.f32 %v1164, %v1168
        %v1172 = vadd.f32 %v1165, %v1169
        %v1173 = vstv %s707
        %v1174 = vmul.f32 %v682, %v1173
        %v1175 = vmul.f32 %v683, %v1173
        %v1176 = vmul.f32 %v684, %v1173
        %v1177 = vadd.f32 %v1170, %v1174
        %v1178 = vadd.f32 %v1171, %v1175
        %v1179 = vadd.f32 %v1172, %v1176
        %v1180 = vstv %s708
        %v1181 = vmul.f32 %v1085, %v1180
        %v1182 = vmul.f32 %v1086, %v1180
        %v1183 = vmul.f32 %v1087, %v1180
        %v1184 = vadd.f32 %v1177, %v1181
        %v1185 = vadd.f32 %v1178, %v1182
        %v1186 = vadd.f32 %v1179, %v1183
        %v1187 = vstv %s709
        %v1188 = vmul.f32 %v1123, %v1187
        %v1189 = vmul.f32 %v1125, %v1187
        %v1190 = vmul.f32 %v1129, %v1187
        %v1191 = vadd.f32 %v1184, %v1188
        %v1192 = vadd.f32 %v1185, %v1189
        %v1193 = vadd.f32 %v1186, %v1190
        %v1194 = vstv %s710
        %v1195 = vmul.f32 %v1132, %v1194
        %v1196 = vmul.f32 %v1134, %v1194
        %v1197 = vmul.f32 %v1138, %v1194
        %v1198 = vadd.f32 %v1191, %v1195
        %v1199 = vadd.f32 %v1192, %v1196
        %v1200 = vadd.f32 %v1193, %v1197
        %v1201 = vstv %s711
        %v1202 = vmul.f32 %v1141, %v1201
        %v1203 = vmul.f32 %v1143, %v1201
        %v1204 = vmul.f32 %v1147, %v1201
        %v1205 = vadd.f32 %v1198, %v1202
        %v1206 = vadd.f32 %v1199, %v1203
        %v1207 = vadd.f32 %v1200, %v1204
        %v1208 = vadd.f32 %v932, %v1205
        %v1209 = vadd.f32 %v933, %v1206
        %v1210 = vadd.f32 %v934, %v1207
        %v1211 = vstv %s730
        %v1212 = vmul.f32 %v1099, %v1211
        %v1213 = vmul.f32 %v1093, %v1211
        %v1214 = vmul.f32 %v1095, %v1211
        %v1215 = vstv %s731
        %v1216 = vmul.f32 %v1108, %v1215
        %v1217 = vmul.f32 %v1102, %v1215
        %v1218 = vmul.f32 %v1104, %v1215
        %v1219 = vadd.f32 %v1212, %v1216
        %v1220 = vadd.f32 %v1213, %v1217
        %v1221 = vadd.f32 %v1214, %v1218
        %v1222 = vstv %s732
        %v1223 = vmul.f32 %v1120, %v1222
        %v1224 = vmul.f32 %v1114, %v1222
        %v1225 = vmul.f32 %v1116, %v1222
        %v1226 = vadd.f32 %v1219, %v1223
        %v1227 = vadd.f32 %v1220, %v1224
        %v1228 = vadd.f32 %v1221, %v1225
        %v1229 = vstv %s733
        %v1230 = vmul.f32 %v1073, %v1229
        %v1231 = vmul.f32 %v1074, %v1229
        %v1232 = vmul.f32 %v1075, %v1229
        %v1233 = vadd.f32 %v1226, %v1230
        %v1234 = vadd.f32 %v1227, %v1231
        %v1235 = vadd.f32 %v1228, %v1232
        %v1236 = vstv %s734
        %v1237 = vmul.f32 %v682, %v1236
        %v1238 = vmul.f32 %v683, %v1236
        %v1239 = vmul.f32 %v684, %v1236
        %v1240 = vadd.f32 %v1233, %v1237
        %v1241 = vadd.f32 %v1234, %v1238
        %v1242 = vadd.f32 %v1235, %v1239
        %v1243 = vstv %s735
        %v1244 = vmul.f32 %v1085, %v1243
        %v1245 = vmul.f32 %v1086, %v1243
        %v1246 = vmul.f32 %v1087, %v1243
        %v1247 = vadd.f32 %v1240, %v1244
        %v1248 = vadd.f32 %v1241, %v1245
        %v1249 = vadd.f32 %v1242, %v1246
        %v1250 = vstv %s736
        %v1251 = vmul.f32 %v1123, %v1250
        %v1252 = vmul.f32 %v1125, %v1250
        %v1253 = vmul.f32 %v1129, %v1250
        %v1254 = vadd.f32 %v1247, %v1251
        %v1255 = vadd.f32 %v1248, %v1252
        %v1256 = vadd.f32 %v1249, %v1253
        %v1257 = vstv %s737
        %v1258 = vmul.f32 %v1132, %v1257
        %v1259 = vmul.f32 %v1134, %v1257
        %v1260 = vmul.f32 %v1138, %v1257
        %v1261 = vadd.f32 %v1254, %v1258
        %v1262 = vadd.f32 %v1255, %v1259
        %v1263 = vadd.f32 %v1256, %v1260
        %v1264 = vstv %s738
        %v1265 = vmul.f32 %v1141, %v1264
        %v1266 = vmul.f32 %v1143, %v1264
        %v1267 = vmul.f32 %v1147, %v1264
        %v1268 = vadd.f32 %v1261, %v1265
        %v1269 = vadd.f32 %v1262, %v1266
        %v1270 = vadd.f32 %v1263, %v1267
        %v1271 = vadd.f32 %v995, %v1268
        %v1272 = vadd.f32 %v996, %v1269
        %v1273 = vadd.f32 %v997, %v1270
        %v1274 = vstv %s757
        %v1275 = vmul.f32 %v1099, %v1274
        %v1276 = vmul.f32 %v1093, %v1274
        %v1277 = vmul.f32 %v1095, %v1274
        %v1278 = vstv %s758
        %v1279 = vmul.f32 %v1108, %v1278
        %v1280 = vmul.f32 %v1102, %v1278
        %v1281 = vmul.f32 %v1104, %v1278
        %v1282 = vadd.f32 %v1275, %v1279
        %v1283 = vadd.f32 %v1276, %v1280
        %v1284 = vadd.f32 %v1277, %v1281
        %v1285 = vstv %s759
        %v1286 = vmul.f32 %v1120, %v1285
        %v1287 = vmul.f32 %v1114, %v1285
        %v1288 = vmul.f32 %v1116, %v1285
        %v1289 = vadd.f32 %v1282, %v1286
        %v1290 = vadd.f32 %v1283, %v1287
        %v1291 = vadd.f32 %v1284, %v1288
        %v1292 = vstv %s760
        %v1293 = vmul.f32 %v1073, %v1292
        %v1294 = vmul.f32 %v1074, %v1292
        %v1295 = vmul.f32 %v1075, %v1292
        %v1296 = vadd.f32 %v1289, %v1293
        %v1297 = vadd.f32 %v1290, %v1294
        %v1298 = vadd.f32 %v1291, %v1295
        %v1299 = vstv %s761
        %v1300 = vmul.f32 %v682, %v1299
        %v1301 = vmul.f32 %v683, %v1299
        %v1302 = vmul.f32 %v684, %v1299
        %v1303 = vadd.f32 %v1296, %v1300
        %v1304 = vadd.f32 %v1297, %v1301
        %v1305 = vadd.f32 %v1298, %v1302
        %v1306 = vstv %s762
        %v1307 = vmul.f32 %v1085, %v1306
        %v1308 = vmul.f32 %v1086, %v1306
        %v1309 = vmul.f32 %v1087, %v1306
        %v1310 = vadd.f32 %v1303, %v1307
        %v1311 = vadd.f32 %v1304, %v1308
        %v1312 = vadd.f32 %v1305, %v1309
        %v1313 = vstv %s763
        %v1314 = vmul.f32 %v1123, %v1313
        %v1315 = vmul.f32 %v1125, %v1313
        %v1316 = vmul.f32 %v1129, %v1313
        %v1317 = vadd.f32 %v1310, %v1314
        %v1318 = vadd.f32 %v1311, %v1315
        %v1319 = vadd.f32 %v1312, %v1316
        %v1320 = vstv %s764
        %v1321 = vmul.f32 %v1132, %v1320
        %v1322 = vmul.f32 %v1134, %v1320
        %v1323 = vmul.f32 %v1138, %v1320
        %v1324 = vadd.f32 %v1317, %v1321
        %v1325 = vadd.f32 %v1318, %v1322
        %v1326 = vadd.f32 %v1319, %v1323
        %v1327 = vstv %s765
        %v1328 = vmul.f32 %v1141, %v1327
        %v1329 = vmul.f32 %v1143, %v1327
        %v1330 = vmul.f32 %v1147, %v1327
        %v1331 = vadd.f32 %v1324, %v1328
        %v1332 = vadd.f32 %v1325, %v1329
        %v1333 = vadd.f32 %v1326, %v1330
        %v1334 = vadd.f32 %v1058, %v1331
        %v1335 = vadd.f32 %v1059, %v1332
        %v1336 = vadd.f32 %v1060, %v1333
        %1340 = vrot.lane.b32.xlu0 %v691, 1
        %v1341 = vpop.permute.xlu0 %1340
        %1342 = vrot.lane.b32.xlu0 %v692, 1
        %v1343 = vpop.permute.xlu0 %1342
        %1344 = vrot.lane.b32.xlu0 %v693, 1
        %v1345 = vpop.permute.xlu0 %1344
        %v1349 = vsel %vm793, 0.0, %v1341
        %v1350 = vsel %vm793, 0.0, %v1343
        %v1351 = vsel %vm793, 0.0, %v1345
        %1352 = vrot.lane.b32.xlu0 %v691, 127
        %v1353 = vpop.permute.xlu0 %1352
        %1354 = vrot.lane.b32.xlu0 %v692, 127
        %v1355 = vpop.permute.xlu0 %1354
        %1356 = vrot.lane.b32.xlu0 %v693, 127
        %v1357 = vpop.permute.xlu0 %1356
        %v1361 = vsel %vm806, %v1353, 0.0
        %v1362 = vsel %vm806, %v1355, 0.0
        %v1363 = vsel %vm806, %v1357, 0.0
        %v1367 = vrot.slane %v1349, 7
        %v1368 = vrot.slane %v1350, 7
        %v1369 = vsel %vm813, %v1367, %v1368
        %v1370 = vrot.slane %v1351, 7
        %v1371 = vsel %vm813, %v1368, %v1370
        %v1375 = vsel %vm813, 0.0, %v1367
        %v1376 = vrot.slane %v691, 7
        %v1377 = vrot.slane %v692, 7
        %v1378 = vsel %vm813, %v1376, %v1377
        %v1379 = vrot.slane %v693, 7
        %v1380 = vsel %vm813, %v1377, %v1379
        %v1384 = vsel %vm813, 0.0, %v1376
        %v1388 = vrot.slane %v1361, 7
        %v1389 = vrot.slane %v1362, 7
        %v1390 = vsel %vm813, %v1388, %v1389
        %v1391 = vrot.slane %v1363, 7
        %v1392 = vsel %vm813, %v1389, %v1391
        %v1396 = vsel %vm813, 0.0, %v1388
        %v1397 = vrot.slane %v1349, 1
        %v1398 = vrot.slane %v1350, 1
        %v1399 = vsel %vm844, %v1397, %v1398
        %v1400 = vrot.slane %v1351, 1
        %v1401 = vsel %vm844, %v1398, %v1400
        %v1405 = vsel %vm844, %v1400, 0.0
        %v1406 = vrot.slane %v691, 1
        %v1407 = vrot.slane %v692, 1
        %v1408 = vsel %vm844, %v1406, %v1407
        %v1409 = vrot.slane %v693, 1
        %v1410 = vsel %vm844, %v1407, %v1409
        %v1414 = vsel %vm844, %v1409, 0.0
        %v1415 = vrot.slane %v1361, 1
        %v1416 = vrot.slane %v1362, 1
        %v1417 = vsel %vm844, %v1415, %v1416
        %v1418 = vrot.slane %v1363, 1
        %v1419 = vsel %vm844, %v1416, %v1418
        %v1423 = vsel %vm844, %v1418, 0.0
        %v1424 = vstv %s712
        %v1425 = vmul.f32 %v1375, %v1424
        %v1426 = vmul.f32 %v1369, %v1424
        %v1427 = vmul.f32 %v1371, %v1424
        %v1428 = vstv %s713
        %v1429 = vmul.f32 %v1384, %v1428
        %v1430 = vmul.f32 %v1378, %v1428
        %v1431 = vmul.f32 %v1380, %v1428
        %v1432 = vadd.f32 %v1425, %v1429
        %v1433 = vadd.f32 %v1426, %v1430
        %v1434 = vadd.f32 %v1427, %v1431
        %v1435 = vstv %s714
        %v1436 = vmul.f32 %v1396, %v1435
        %v1437 = vmul.f32 %v1390, %v1435
        %v1438 = vmul.f32 %v1392, %v1435
        %v1439 = vadd.f32 %v1432, %v1436
        %v1440 = vadd.f32 %v1433, %v1437
        %v1441 = vadd.f32 %v1434, %v1438
        %v1442 = vstv %s715
        %v1443 = vmul.f32 %v1349, %v1442
        %v1444 = vmul.f32 %v1350, %v1442
        %v1445 = vmul.f32 %v1351, %v1442
        %v1446 = vadd.f32 %v1439, %v1443
        %v1447 = vadd.f32 %v1440, %v1444
        %v1448 = vadd.f32 %v1441, %v1445
        %v1449 = vstv %s716
        %v1450 = vmul.f32 %v691, %v1449
        %v1451 = vmul.f32 %v692, %v1449
        %v1452 = vmul.f32 %v693, %v1449
        %v1453 = vadd.f32 %v1446, %v1450
        %v1454 = vadd.f32 %v1447, %v1451
        %v1455 = vadd.f32 %v1448, %v1452
        %v1456 = vstv %s717
        %v1457 = vmul.f32 %v1361, %v1456
        %v1458 = vmul.f32 %v1362, %v1456
        %v1459 = vmul.f32 %v1363, %v1456
        %v1460 = vadd.f32 %v1453, %v1457
        %v1461 = vadd.f32 %v1454, %v1458
        %v1462 = vadd.f32 %v1455, %v1459
        %v1463 = vstv %s718
        %v1464 = vmul.f32 %v1399, %v1463
        %v1465 = vmul.f32 %v1401, %v1463
        %v1466 = vmul.f32 %v1405, %v1463
        %v1467 = vadd.f32 %v1460, %v1464
        %v1468 = vadd.f32 %v1461, %v1465
        %v1469 = vadd.f32 %v1462, %v1466
        %v1470 = vstv %s719
        %v1471 = vmul.f32 %v1408, %v1470
        %v1472 = vmul.f32 %v1410, %v1470
        %v1473 = vmul.f32 %v1414, %v1470
        %v1474 = vadd.f32 %v1467, %v1471
        %v1475 = vadd.f32 %v1468, %v1472
        %v1476 = vadd.f32 %v1469, %v1473
        %v1477 = vstv %s720
        %v1478 = vmul.f32 %v1417, %v1477
        %v1479 = vmul.f32 %v1419, %v1477
        %v1480 = vmul.f32 %v1423, %v1477
        %v1481 = vadd.f32 %v1474, %v1478
        %v1482 = vadd.f32 %v1475, %v1479
        %v1483 = vadd.f32 %v1476, %v1480
        %v1484 = vadd.f32 %v1208, %v1481
        %v1485 = vadd.f32 %v1209, %v1482
        %v1486 = vadd.f32 %v1210, %v1483
        %v1487 = vstv %s739
        %v1488 = vmul.f32 %v1375, %v1487
        %v1489 = vmul.f32 %v1369, %v1487
        %v1490 = vmul.f32 %v1371, %v1487
        %v1491 = vstv %s740
        %v1492 = vmul.f32 %v1384, %v1491
        %v1493 = vmul.f32 %v1378, %v1491
        %v1494 = vmul.f32 %v1380, %v1491
        %v1495 = vadd.f32 %v1488, %v1492
        %v1496 = vadd.f32 %v1489, %v1493
        %v1497 = vadd.f32 %v1490, %v1494
        %v1498 = vstv %s741
        %v1499 = vmul.f32 %v1396, %v1498
        %v1500 = vmul.f32 %v1390, %v1498
        %v1501 = vmul.f32 %v1392, %v1498
        %v1502 = vadd.f32 %v1495, %v1499
        %v1503 = vadd.f32 %v1496, %v1500
        %v1504 = vadd.f32 %v1497, %v1501
        %v1505 = vstv %s742
        %v1506 = vmul.f32 %v1349, %v1505
        %v1507 = vmul.f32 %v1350, %v1505
        %v1508 = vmul.f32 %v1351, %v1505
        %v1509 = vadd.f32 %v1502, %v1506
        %v1510 = vadd.f32 %v1503, %v1507
        %v1511 = vadd.f32 %v1504, %v1508
        %v1512 = vstv %s743
        %v1513 = vmul.f32 %v691, %v1512
        %v1514 = vmul.f32 %v692, %v1512
        %v1515 = vmul.f32 %v693, %v1512
        %v1516 = vadd.f32 %v1509, %v1513
        %v1517 = vadd.f32 %v1510, %v1514
        %v1518 = vadd.f32 %v1511, %v1515
        %v1519 = vstv %s744
        %v1520 = vmul.f32 %v1361, %v1519
        %v1521 = vmul.f32 %v1362, %v1519
        %v1522 = vmul.f32 %v1363, %v1519
        %v1523 = vadd.f32 %v1516, %v1520
        %v1524 = vadd.f32 %v1517, %v1521
        %v1525 = vadd.f32 %v1518, %v1522
        %v1526 = vstv %s745
        %v1527 = vmul.f32 %v1399, %v1526
        %v1528 = vmul.f32 %v1401, %v1526
        %v1529 = vmul.f32 %v1405, %v1526
        %v1530 = vadd.f32 %v1523, %v1527
        %v1531 = vadd.f32 %v1524, %v1528
        %v1532 = vadd.f32 %v1525, %v1529
        %v1533 = vstv %s746
        %v1534 = vmul.f32 %v1408, %v1533
        %v1535 = vmul.f32 %v1410, %v1533
        %v1536 = vmul.f32 %v1414, %v1533
        %v1537 = vadd.f32 %v1530, %v1534
        %v1538 = vadd.f32 %v1531, %v1535
        %v1539 = vadd.f32 %v1532, %v1536
        %v1540 = vstv %s747
        %v1541 = vmul.f32 %v1417, %v1540
        %v1542 = vmul.f32 %v1419, %v1540
        %v1543 = vmul.f32 %v1423, %v1540
        %v1544 = vadd.f32 %v1537, %v1541
        %v1545 = vadd.f32 %v1538, %v1542
        %v1546 = vadd.f32 %v1539, %v1543
        %v1547 = vadd.f32 %v1271, %v1544
        %v1548 = vadd.f32 %v1272, %v1545
        %v1549 = vadd.f32 %v1273, %v1546
        %v1550 = vstv %s766
        %v1551 = vmul.f32 %v1375, %v1550
        %v1552 = vmul.f32 %v1369, %v1550
        %v1553 = vmul.f32 %v1371, %v1550
        %v1554 = vstv %s767
        %v1555 = vmul.f32 %v1384, %v1554
        %v1556 = vmul.f32 %v1378, %v1554
        %v1557 = vmul.f32 %v1380, %v1554
        %v1558 = vadd.f32 %v1551, %v1555
        %v1559 = vadd.f32 %v1552, %v1556
        %v1560 = vadd.f32 %v1553, %v1557
        %v1561 = vstv %s768
        %v1562 = vmul.f32 %v1396, %v1561
        %v1563 = vmul.f32 %v1390, %v1561
        %v1564 = vmul.f32 %v1392, %v1561
        %v1565 = vadd.f32 %v1558, %v1562
        %v1566 = vadd.f32 %v1559, %v1563
        %v1567 = vadd.f32 %v1560, %v1564
        %v1568 = vstv %s769
        %v1569 = vmul.f32 %v1349, %v1568
        %v1570 = vmul.f32 %v1350, %v1568
        %v1571 = vmul.f32 %v1351, %v1568
        %v1572 = vadd.f32 %v1565, %v1569
        %v1573 = vadd.f32 %v1566, %v1570
        %v1574 = vadd.f32 %v1567, %v1571
        %v1575 = vstv %s770
        %v1576 = vmul.f32 %v691, %v1575
        %v1577 = vmul.f32 %v692, %v1575
        %v1578 = vmul.f32 %v693, %v1575
        %v1579 = vadd.f32 %v1572, %v1576
        %v1580 = vadd.f32 %v1573, %v1577
        %v1581 = vadd.f32 %v1574, %v1578
        %v1582 = vstv %s771
        %v1583 = vmul.f32 %v1361, %v1582
        %v1584 = vmul.f32 %v1362, %v1582
        %v1585 = vmul.f32 %v1363, %v1582
        %v1586 = vadd.f32 %v1579, %v1583
        %v1587 = vadd.f32 %v1580, %v1584
        %v1588 = vadd.f32 %v1581, %v1585
        %v1589 = vstv %s772
        %v1590 = vmul.f32 %v1399, %v1589
        %v1591 = vmul.f32 %v1401, %v1589
        %v1592 = vmul.f32 %v1405, %v1589
        %v1593 = vadd.f32 %v1586, %v1590
        %v1594 = vadd.f32 %v1587, %v1591
        %v1595 = vadd.f32 %v1588, %v1592
        %v1596 = vstv %s773
        %v1597 = vmul.f32 %v1408, %v1596
        %v1598 = vmul.f32 %v1410, %v1596
        %v1599 = vmul.f32 %v1414, %v1596
        %v1600 = vadd.f32 %v1593, %v1597
        %v1601 = vadd.f32 %v1594, %v1598
        %v1602 = vadd.f32 %v1595, %v1599
        %v1603 = vstv %s774
        %v1604 = vmul.f32 %v1417, %v1603
        %v1605 = vmul.f32 %v1419, %v1603
        %v1606 = vmul.f32 %v1423, %v1603
        %v1607 = vadd.f32 %v1600, %v1604
        %v1608 = vadd.f32 %v1601, %v1605
        %v1609 = vadd.f32 %v1602, %v1606
        %v1610 = vadd.f32 %v1334, %v1607
        %v1611 = vadd.f32 %v1335, %v1608
        %v1612 = vadd.f32 %v1336, %v1609
        %v1613 = vmax.f32 %v1484, 0.0
        %v1614 = vmax.f32 %v1485, 0.0
        %v1615 = vmax.f32 %v1486, 0.0
        %v1616 = vsel %vm667, %v1613, 0.0
        %v1617 = vsel %vm668, %v1614, 0.0
        %v1618 = vsel %vm669, %v1615, 0.0
        %v1619 = vmax.f32 %v1547, 0.0
        %v1620 = vmax.f32 %v1548, 0.0
        %v1621 = vmax.f32 %v1549, 0.0
        %v1622 = vsel %vm667, %v1619, 0.0
        %v1623 = vsel %vm668, %v1620, 0.0
        %v1624 = vsel %vm669, %v1621, 0.0
        %v1625 = vmax.f32 %v1610, 0.0
        %v1626 = vmax.f32 %v1611, 0.0
        %v1627 = vmax.f32 %v1612, 0.0
        %v1628 = vsel %vm667, %v1625, 0.0
        %v1629 = vsel %vm668, %v1626, 0.0
        %v1630 = vsel %vm669, %v1627, 0.0
        %s1631 = sld [smem:[#allocation12]]
        %s1632 = sld [smem:[#allocation12 + $0x1]]
        %s1633 = sld [smem:[#allocation12 + $0x2]]
        %s1634 = sld [smem:[#allocation12 + $0x3]]
        %s1635 = sld [smem:[#allocation12 + $0x4]]
        %s1636 = sld [smem:[#allocation12 + $0x5]]
        %s1637 = sld [smem:[#allocation12 + $0x6]]
        %s1638 = sld [smem:[#allocation12 + $0x7]]
        %s1639 = sld [smem:[#allocation12 + $0x8]]
        %s1640 = sld [smem:[#allocation12 + $0x9]]
        %s1641 = sld [smem:[#allocation12 + $0xa]]
        %s1642 = sld [smem:[#allocation12 + $0xb]]
        %s1643 = sld [smem:[#allocation12 + $0xc]]
        %s1644 = sld [smem:[#allocation12 + $0xd]]
        %s1645 = sld [smem:[#allocation12 + $0xe]]
        %s1646 = sld [smem:[#allocation12 + $0xf]]
        %s1647 = sld [smem:[#allocation12 + $0x10]]
        %s1648 = sld [smem:[#allocation12 + $0x11]]
        %s1649 = sld [smem:[#allocation12 + $0x12]]
        %s1650 = sld [smem:[#allocation12 + $0x13]]
        %s1651 = sld [smem:[#allocation12 + $0x14]]
        %s1652 = sld [smem:[#allocation12 + $0x15]]
        %s1653 = sld [smem:[#allocation12 + $0x16]]
        %s1654 = sld [smem:[#allocation12 + $0x17]]
        %s1655 = sld [smem:[#allocation12 + $0x18]]
        %s1656 = sld [smem:[#allocation12 + $0x19]]
        %s1657 = sld [smem:[#allocation12 + $0x1a]]
        %s1658 = sld [smem:[#allocation12 + $0x1b]]
        %s1659 = sld [smem:[#allocation12 + $0x1c]]
        %s1660 = sld [smem:[#allocation12 + $0x1d]]
        %s1661 = sld [smem:[#allocation12 + $0x1e]]
        %s1662 = sld [smem:[#allocation12 + $0x1f]]
        %s1663 = sld [smem:[#allocation12 + $0x20]]
        %s1664 = sld [smem:[#allocation12 + $0x21]]
        %s1665 = sld [smem:[#allocation12 + $0x22]]
        %s1666 = sld [smem:[#allocation12 + $0x23]]
        %s1667 = sld [smem:[#allocation12 + $0x24]]
        %s1668 = sld [smem:[#allocation12 + $0x25]]
        %s1669 = sld [smem:[#allocation12 + $0x26]]
        %s1670 = sld [smem:[#allocation12 + $0x27]]
        %s1671 = sld [smem:[#allocation12 + $0x28]]
        %s1672 = sld [smem:[#allocation12 + $0x29]]
        %s1673 = sld [smem:[#allocation12 + $0x2a]]
        %s1674 = sld [smem:[#allocation12 + $0x2b]]
        %s1675 = sld [smem:[#allocation12 + $0x2c]]
        %s1676 = sld [smem:[#allocation12 + $0x2d]]
        %s1677 = sld [smem:[#allocation12 + $0x2e]]
        %s1678 = sld [smem:[#allocation12 + $0x2f]]
        %s1679 = sld [smem:[#allocation12 + $0x30]]
        %s1680 = sld [smem:[#allocation12 + $0x31]]
        %s1681 = sld [smem:[#allocation12 + $0x32]]
        %s1682 = sld [smem:[#allocation12 + $0x33]]
        %s1683 = sld [smem:[#allocation12 + $0x34]]
        %s1684 = sld [smem:[#allocation12 + $0x35]]
        %s1685 = sld [smem:[#allocation12 + $0x36]]
        %s1686 = sld [smem:[#allocation12 + $0x37]]
        %s1687 = sld [smem:[#allocation12 + $0x38]]
        %s1688 = sld [smem:[#allocation12 + $0x39]]
        %s1689 = sld [smem:[#allocation12 + $0x3a]]
        %s1690 = sld [smem:[#allocation12 + $0x3b]]
        %s1691 = sld [smem:[#allocation12 + $0x3c]]
        %s1692 = sld [smem:[#allocation12 + $0x3d]]
        %s1693 = sld [smem:[#allocation12 + $0x3e]]
        %s1694 = sld [smem:[#allocation12 + $0x3f]]
        %s1695 = sld [smem:[#allocation12 + $0x40]]
        %s1696 = sld [smem:[#allocation12 + $0x41]]
        %s1697 = sld [smem:[#allocation12 + $0x42]]
        %s1698 = sld [smem:[#allocation12 + $0x43]]
        %s1699 = sld [smem:[#allocation12 + $0x44]]
        %s1700 = sld [smem:[#allocation12 + $0x45]]
        %s1701 = sld [smem:[#allocation12 + $0x46]]
        %s1702 = sld [smem:[#allocation12 + $0x47]]
        %s1703 = sld [smem:[#allocation12 + $0x48]]
        %s1704 = sld [smem:[#allocation12 + $0x49]]
        %s1705 = sld [smem:[#allocation12 + $0x4a]]
        %s1706 = sld [smem:[#allocation12 + $0x4b]]
        %s1707 = sld [smem:[#allocation12 + $0x4c]]
        %s1708 = sld [smem:[#allocation12 + $0x4d]]
        %s1709 = sld [smem:[#allocation12 + $0x4e]]
        %s1710 = sld [smem:[#allocation12 + $0x4f]]
        %s1711 = sld [smem:[#allocation12 + $0x50]]
        %s1712 = sld [smem:[#allocation13]]
        %v1713 = vstv %s1712
        %s1714 = sld [smem:[#allocation13 + $0x1]]
        %v1715 = vstv %s1714
        %s1716 = sld [smem:[#allocation13 + $0x2]]
        %v1717 = vstv %s1716
        %1721 = vrot.lane.b32.xlu0 %v1616, 1
        %v1722 = vpop.permute.xlu0 %1721
        %1723 = vrot.lane.b32.xlu0 %v1617, 1
        %v1724 = vpop.permute.xlu0 %1723
        %1725 = vrot.lane.b32.xlu0 %v1618, 1
        %v1726 = vpop.permute.xlu0 %1725
        %v1730 = vsel %vm793, 0.0, %v1722
        %v1731 = vsel %vm793, 0.0, %v1724
        %v1732 = vsel %vm793, 0.0, %v1726
        %1733 = vrot.lane.b32.xlu0 %v1616, 127
        %v1734 = vpop.permute.xlu0 %1733
        %1735 = vrot.lane.b32.xlu0 %v1617, 127
        %v1736 = vpop.permute.xlu0 %1735
        %1737 = vrot.lane.b32.xlu0 %v1618, 127
        %v1738 = vpop.permute.xlu0 %1737
        %v1742 = vsel %vm806, %v1734, 0.0
        %v1743 = vsel %vm806, %v1736, 0.0
        %v1744 = vsel %vm806, %v1738, 0.0
        %v1748 = vrot.slane %v1730, 7
        %v1749 = vrot.slane %v1731, 7
        %v1750 = vsel %vm813, %v1748, %v1749
        %v1751 = vrot.slane %v1732, 7
        %v1752 = vsel %vm813, %v1749, %v1751
        %v1756 = vsel %vm813, 0.0, %v1748
        %v1757 = vrot.slane %v1616, 7
        %v1758 = vrot.slane %v1617, 7
        %v1759 = vsel %vm813, %v1757, %v1758
        %v1760 = vrot.slane %v1618, 7
        %v1761 = vsel %vm813, %v1758, %v1760
        %v1765 = vsel %vm813, 0.0, %v1757
        %v1769 = vrot.slane %v1742, 7
        %v1770 = vrot.slane %v1743, 7
        %v1771 = vsel %vm813, %v1769, %v1770
        %v1772 = vrot.slane %v1744, 7
        %v1773 = vsel %vm813, %v1770, %v1772
        %v1777 = vsel %vm813, 0.0, %v1769
        %v1778 = vrot.slane %v1730, 1
        %v1779 = vrot.slane %v1731, 1
        %v1780 = vsel %vm844, %v1778, %v1779
        %v1781 = vrot.slane %v1732, 1
        %v1782 = vsel %vm844, %v1779, %v1781
        %v1786 = vsel %vm844, %v1781, 0.0
        %v1787 = vrot.slane %v1616, 1
        %v1788 = vrot.slane %v1617, 1
        %v1789 = vsel %vm844, %v1787, %v1788
        %v1790 = vrot.slane %v1618, 1
        %v1791 = vsel %vm844, %v1788, %v1790
        %v1795 = vsel %vm844, %v1790, 0.0
        %v1796 = vrot.slane %v1742, 1
        %v1797 = vrot.slane %v1743, 1
        %v1798 = vsel %vm844, %v1796, %v1797
        %v1799 = vrot.slane %v1744, 1
        %v1800 = vsel %vm844, %v1797, %v1799
        %v1804 = vsel %vm844, %v1799, 0.0
        %v1805 = vstv %s1631
        %v1806 = vmul.f32 %v1756, %v1805
        %v1807 = vmul.f32 %v1750, %v1805
        %v1808 = vmul.f32 %v1752, %v1805
        %v1809 = vstv %s1632
        %v1810 = vmul.f32 %v1765, %v1809
        %v1811 = vmul.f32 %v1759, %v1809
        %v1812 = vmul.f32 %v1761, %v1809
        %v1813 = vadd.f32 %v1806, %v1810
        %v1814 = vadd.f32 %v1807, %v1811
        %v1815 = vadd.f32 %v1808, %v1812
        %v1816 = vstv %s1633
        %v1817 = vmul.f32 %v1777, %v1816
        %v1818 = vmul.f32 %v1771, %v1816
        %v1819 = vmul.f32 %v1773, %v1816
        %v1820 = vadd.f32 %v1813, %v1817
        %v1821 = vadd.f32 %v1814, %v1818
        %v1822 = vadd.f32 %v1815, %v1819
        %v1823 = vstv %s1634
        %v1824 = vmul.f32 %v1730, %v1823
        %v1825 = vmul.f32 %v1731, %v1823
        %v1826 = vmul.f32 %v1732, %v1823
        %v1827 = vadd.f32 %v1820, %v1824
        %v1828 = vadd.f32 %v1821, %v1825
        %v1829 = vadd.f32 %v1822, %v1826
        %v1830 = vstv %s1635
        %v1831 = vmul.f32 %v1616, %v1830
        %v1832 = vmul.f32 %v1617, %v1830
        %v1833 = vmul.f32 %v1618, %v1830
        %v1834 = vadd.f32 %v1827, %v1831
        %v1835 = vadd.f32 %v1828, %v1832
        %v1836 = vadd.f32 %v1829, %v1833
        %v1837 = vstv %s1636
        %v1838 = vmul.f32 %v1742, %v1837
        %v1839 = vmul.f32 %v1743, %v1837
        %v1840 = vmul.f32 %v1744, %v1837
        %v1841 = vadd.f32 %v1834, %v1838
        %v1842 = vadd.f32 %v1835, %v1839
        %v1843 = vadd.f32 %v1836, %v1840
        %v1844 = vstv %s1637
        %v1845 = vmul.f32 %v1780, %v1844
        %v1846 = vmul.f32 %v1782, %v1844
        %v1847 = vmul.f32 %v1786, %v1844
        %v1848 = vadd.f32 %v1841, %v1845
        %v1849 = vadd.f32 %v1842, %v1846
        %v1850 = vadd.f32 %v1843, %v1847
        %v1851 = vstv %s1638
        %v1852 = vmul.f32 %v1789, %v1851
        %v1853 = vmul.f32 %v1791, %v1851
        %v1854 = vmul.f32 %v1795, %v1851
        %v1855 = vadd.f32 %v1848, %v1852
        %v1856 = vadd.f32 %v1849, %v1853
        %v1857 = vadd.f32 %v1850, %v1854
        %v1858 = vstv %s1639
        %v1859 = vmul.f32 %v1798, %v1858
        %v1860 = vmul.f32 %v1800, %v1858
        %v1861 = vmul.f32 %v1804, %v1858
        %v1862 = vadd.f32 %v1855, %v1859
        %v1863 = vadd.f32 %v1856, %v1860
        %v1864 = vadd.f32 %v1857, %v1861
        %v1865 = vadd.f32 %v1713, %v1862
        %v1866 = vadd.f32 %v1713, %v1863
        %v1867 = vadd.f32 %v1713, %v1864
        %v1868 = vstv %s1658
        %v1869 = vmul.f32 %v1756, %v1868
        %v1870 = vmul.f32 %v1750, %v1868
        %v1871 = vmul.f32 %v1752, %v1868
        %v1872 = vstv %s1659
        %v1873 = vmul.f32 %v1765, %v1872
        %v1874 = vmul.f32 %v1759, %v1872
        %v1875 = vmul.f32 %v1761, %v1872
        %v1876 = vadd.f32 %v1869, %v1873
        %v1877 = vadd.f32 %v1870, %v1874
        %v1878 = vadd.f32 %v1871, %v1875
        %v1879 = vstv %s1660
        %v1880 = vmul.f32 %v1777, %v1879
        %v1881 = vmul.f32 %v1771, %v1879
        %v1882 = vmul.f32 %v1773, %v1879
        %v1883 = vadd.f32 %v1876, %v1880
        %v1884 = vadd.f32 %v1877, %v1881
        %v1885 = vadd.f32 %v1878, %v1882
        %v1886 = vstv %s1661
        %v1887 = vmul.f32 %v1730, %v1886
        %v1888 = vmul.f32 %v1731, %v1886
        %v1889 = vmul.f32 %v1732, %v1886
        %v1890 = vadd.f32 %v1883, %v1887
        %v1891 = vadd.f32 %v1884, %v1888
        %v1892 = vadd.f32 %v1885, %v1889
        %v1893 = vstv %s1662
        %v1894 = vmul.f32 %v1616, %v1893
        %v1895 = vmul.f32 %v1617, %v1893
        %v1896 = vmul.f32 %v1618, %v1893
        %v1897 = vadd.f32 %v1890, %v1894
        %v1898 = vadd.f32 %v1891, %v1895
        %v1899 = vadd.f32 %v1892, %v1896
        %v1900 = vstv %s1663
        %v1901 = vmul.f32 %v1742, %v1900
        %v1902 = vmul.f32 %v1743, %v1900
        %v1903 = vmul.f32 %v1744, %v1900
        %v1904 = vadd.f32 %v1897, %v1901
        %v1905 = vadd.f32 %v1898, %v1902
        %v1906 = vadd.f32 %v1899, %v1903
        %v1907 = vstv %s1664
        %v1908 = vmul.f32 %v1780, %v1907
        %v1909 = vmul.f32 %v1782, %v1907
        %v1910 = vmul.f32 %v1786, %v1907
        %v1911 = vadd.f32 %v1904, %v1908
        %v1912 = vadd.f32 %v1905, %v1909
        %v1913 = vadd.f32 %v1906, %v1910
        %v1914 = vstv %s1665
        %v1915 = vmul.f32 %v1789, %v1914
        %v1916 = vmul.f32 %v1791, %v1914
        %v1917 = vmul.f32 %v1795, %v1914
        %v1918 = vadd.f32 %v1911, %v1915
        %v1919 = vadd.f32 %v1912, %v1916
        %v1920 = vadd.f32 %v1913, %v1917
        %v1921 = vstv %s1666
        %v1922 = vmul.f32 %v1798, %v1921
        %v1923 = vmul.f32 %v1800, %v1921
        %v1924 = vmul.f32 %v1804, %v1921
        %v1925 = vadd.f32 %v1918, %v1922
        %v1926 = vadd.f32 %v1919, %v1923
        %v1927 = vadd.f32 %v1920, %v1924
        %v1928 = vadd.f32 %v1715, %v1925
        %v1929 = vadd.f32 %v1715, %v1926
        %v1930 = vadd.f32 %v1715, %v1927
        %v1931 = vstv %s1685
        %v1932 = vmul.f32 %v1756, %v1931
        %v1933 = vmul.f32 %v1750, %v1931
        %v1934 = vmul.f32 %v1752, %v1931
        %v1935 = vstv %s1686
        %v1936 = vmul.f32 %v1765, %v1935
        %v1937 = vmul.f32 %v1759, %v1935
        %v1938 = vmul.f32 %v1761, %v1935
        %v1939 = vadd.f32 %v1932, %v1936
        %v1940 = vadd.f32 %v1933, %v1937
        %v1941 = vadd.f32 %v1934, %v1938
        %v1942 = vstv %s1687
        %v1943 = vmul.f32 %v1777, %v1942
        %v1944 = vmul.f32 %v1771, %v1942
        %v1945 = vmul.f32 %v1773, %v1942
        %v1946 = vadd.f32 %v1939, %v1943
        %v1947 = vadd.f32 %v1940, %v1944
        %v1948 = vadd.f32 %v1941, %v1945
        %v1949 = vstv %s1688
        %v1950 = vmul.f32 %v1730, %v1949
        %v1951 = vmul.f32 %v1731, %v1949
        %v1952 = vmul.f32 %v1732, %v1949
        %v1953 = vadd.f32 %v1946, %v1950
        %v1954 = vadd.f32 %v1947, %v1951
        %v1955 = vadd.f32 %v1948, %v1952
        %v1956 = vstv %s1689
        %v1957 = vmul.f32 %v1616, %v1956
        %v1958 = vmul.f32 %v1617, %v1956
        %v1959 = vmul.f32 %v1618, %v1956
        %v1960 = vadd.f32 %v1953, %v1957
        %v1961 = vadd.f32 %v1954, %v1958
        %v1962 = vadd.f32 %v1955, %v1959
        %v1963 = vstv %s1690
        %v1964 = vmul.f32 %v1742, %v1963
        %v1965 = vmul.f32 %v1743, %v1963
        %v1966 = vmul.f32 %v1744, %v1963
        %v1967 = vadd.f32 %v1960, %v1964
        %v1968 = vadd.f32 %v1961, %v1965
        %v1969 = vadd.f32 %v1962, %v1966
        %v1970 = vstv %s1691
        %v1971 = vmul.f32 %v1780, %v1970
        %v1972 = vmul.f32 %v1782, %v1970
        %v1973 = vmul.f32 %v1786, %v1970
        %v1974 = vadd.f32 %v1967, %v1971
        %v1975 = vadd.f32 %v1968, %v1972
        %v1976 = vadd.f32 %v1969, %v1973
        %v1977 = vstv %s1692
        %v1978 = vmul.f32 %v1789, %v1977
        %v1979 = vmul.f32 %v1791, %v1977
        %v1980 = vmul.f32 %v1795, %v1977
        %v1981 = vadd.f32 %v1974, %v1978
        %v1982 = vadd.f32 %v1975, %v1979
        %v1983 = vadd.f32 %v1976, %v1980
        %v1984 = vstv %s1693
        %v1985 = vmul.f32 %v1798, %v1984
        %v1986 = vmul.f32 %v1800, %v1984
        %v1987 = vmul.f32 %v1804, %v1984
        %v1988 = vadd.f32 %v1981, %v1985
        %v1989 = vadd.f32 %v1982, %v1986
        %v1990 = vadd.f32 %v1983, %v1987
        %v1991 = vadd.f32 %v1717, %v1988
        %v1992 = vadd.f32 %v1717, %v1989
        %v1993 = vadd.f32 %v1717, %v1990
        %1997 = vrot.lane.b32.xlu0 %v1622, 1
        %v1998 = vpop.permute.xlu0 %1997
        %1999 = vrot.lane.b32.xlu0 %v1623, 1
        %v2000 = vpop.permute.xlu0 %1999
        %2001 = vrot.lane.b32.xlu0 %v1624, 1
        %v2002 = vpop.permute.xlu0 %2001
        %v2006 = vsel %vm793, 0.0, %v1998
        %v2007 = vsel %vm793, 0.0, %v2000
        %v2008 = vsel %vm793, 0.0, %v2002
        %2009 = vrot.lane.b32.xlu0 %v1622, 127
        %v2010 = vpop.permute.xlu0 %2009
        %2011 = vrot.lane.b32.xlu0 %v1623, 127
        %v2012 = vpop.permute.xlu0 %2011
        %2013 = vrot.lane.b32.xlu0 %v1624, 127
        %v2014 = vpop.permute.xlu0 %2013
        %v2018 = vsel %vm806, %v2010, 0.0
        %v2019 = vsel %vm806, %v2012, 0.0
        %v2020 = vsel %vm806, %v2014, 0.0
        %v2024 = vrot.slane %v2006, 7
        %v2025 = vrot.slane %v2007, 7
        %v2026 = vsel %vm813, %v2024, %v2025
        %v2027 = vrot.slane %v2008, 7
        %v2028 = vsel %vm813, %v2025, %v2027
        %v2032 = vsel %vm813, 0.0, %v2024
        %v2033 = vrot.slane %v1622, 7
        %v2034 = vrot.slane %v1623, 7
        %v2035 = vsel %vm813, %v2033, %v2034
        %v2036 = vrot.slane %v1624, 7
        %v2037 = vsel %vm813, %v2034, %v2036
        %v2041 = vsel %vm813, 0.0, %v2033
        %v2045 = vrot.slane %v2018, 7
        %v2046 = vrot.slane %v2019, 7
        %v2047 = vsel %vm813, %v2045, %v2046
        %v2048 = vrot.slane %v2020, 7
        %v2049 = vsel %vm813, %v2046, %v2048
        %v2053 = vsel %vm813, 0.0, %v2045
        %v2054 = vrot.slane %v2006, 1
        %v2055 = vrot.slane %v2007, 1
        %v2056 = vsel %vm844, %v2054, %v2055
        %v2057 = vrot.slane %v2008, 1
        %v2058 = vsel %vm844, %v2055, %v2057
        %v2062 = vsel %vm844, %v2057, 0.0
        %v2063 = vrot.slane %v1622, 1
        %v2064 = vrot.slane %v1623, 1
        %v2065 = vsel %vm844, %v2063, %v2064
        %v2066 = vrot.slane %v1624, 1
        %v2067 = vsel %vm844, %v2064, %v2066
        %v2071 = vsel %vm844, %v2066, 0.0
        %v2072 = vrot.slane %v2018, 1
        %v2073 = vrot.slane %v2019, 1
        %v2074 = vsel %vm844, %v2072, %v2073
        %v2075 = vrot.slane %v2020, 1
        %v2076 = vsel %vm844, %v2073, %v2075
        %v2080 = vsel %vm844, %v2075, 0.0
        %v2081 = vstv %s1640
        %v2082 = vmul.f32 %v2032, %v2081
        %v2083 = vmul.f32 %v2026, %v2081
        %v2084 = vmul.f32 %v2028, %v2081
        %v2085 = vstv %s1641
        %v2086 = vmul.f32 %v2041, %v2085
        %v2087 = vmul.f32 %v2035, %v2085
        %v2088 = vmul.f32 %v2037, %v2085
        %v2089 = vadd.f32 %v2082, %v2086
        %v2090 = vadd.f32 %v2083, %v2087
        %v2091 = vadd.f32 %v2084, %v2088
        %v2092 = vstv %s1642
        %v2093 = vmul.f32 %v2053, %v2092
        %v2094 = vmul.f32 %v2047, %v2092
        %v2095 = vmul.f32 %v2049, %v2092
        %v2096 = vadd.f32 %v2089, %v2093
        %v2097 = vadd.f32 %v2090, %v2094
        %v2098 = vadd.f32 %v2091, %v2095
        %v2099 = vstv %s1643
        %v2100 = vmul.f32 %v2006, %v2099
        %v2101 = vmul.f32 %v2007, %v2099
        %v2102 = vmul.f32 %v2008, %v2099
        %v2103 = vadd.f32 %v2096, %v2100
        %v2104 = vadd.f32 %v2097, %v2101
        %v2105 = vadd.f32 %v2098, %v2102
        %v2106 = vstv %s1644
        %v2107 = vmul.f32 %v1622, %v2106
        %v2108 = vmul.f32 %v1623, %v2106
        %v2109 = vmul.f32 %v1624, %v2106
        %v2110 = vadd.f32 %v2103, %v2107
        %v2111 = vadd.f32 %v2104, %v2108
        %v2112 = vadd.f32 %v2105, %v2109
        %v2113 = vstv %s1645
        %v2114 = vmul.f32 %v2018, %v2113
        %v2115 = vmul.f32 %v2019, %v2113
        %v2116 = vmul.f32 %v2020, %v2113
        %v2117 = vadd.f32 %v2110, %v2114
        %v2118 = vadd.f32 %v2111, %v2115
        %v2119 = vadd.f32 %v2112, %v2116
        %v2120 = vstv %s1646
        %v2121 = vmul.f32 %v2056, %v2120
        %v2122 = vmul.f32 %v2058, %v2120
        %v2123 = vmul.f32 %v2062, %v2120
        %v2124 = vadd.f32 %v2117, %v2121
        %v2125 = vadd.f32 %v2118, %v2122
        %v2126 = vadd.f32 %v2119, %v2123
        %v2127 = vstv %s1647
        %v2128 = vmul.f32 %v2065, %v2127
        %v2129 = vmul.f32 %v2067, %v2127
        %v2130 = vmul.f32 %v2071, %v2127
        %v2131 = vadd.f32 %v2124, %v2128
        %v2132 = vadd.f32 %v2125, %v2129
        %v2133 = vadd.f32 %v2126, %v2130
        %v2134 = vstv %s1648
        %v2135 = vmul.f32 %v2074, %v2134
        %v2136 = vmul.f32 %v2076, %v2134
        %v2137 = vmul.f32 %v2080, %v2134
        %v2138 = vadd.f32 %v2131, %v2135
        %v2139 = vadd.f32 %v2132, %v2136
        %v2140 = vadd.f32 %v2133, %v2137
        %v2141 = vadd.f32 %v1865, %v2138
        %v2142 = vadd.f32 %v1866, %v2139
        %v2143 = vadd.f32 %v1867, %v2140
        %v2144 = vstv %s1667
        %v2145 = vmul.f32 %v2032, %v2144
        %v2146 = vmul.f32 %v2026, %v2144
        %v2147 = vmul.f32 %v2028, %v2144
        %v2148 = vstv %s1668
        %v2149 = vmul.f32 %v2041, %v2148
        %v2150 = vmul.f32 %v2035, %v2148
        %v2151 = vmul.f32 %v2037, %v2148
        %v2152 = vadd.f32 %v2145, %v2149
        %v2153 = vadd.f32 %v2146, %v2150
        %v2154 = vadd.f32 %v2147, %v2151
        %v2155 = vstv %s1669
        %v2156 = vmul.f32 %v2053, %v2155
        %v2157 = vmul.f32 %v2047, %v2155
        %v2158 = vmul.f32 %v2049, %v2155
        %v2159 = vadd.f32 %v2152, %v2156
        %v2160 = vadd.f32 %v2153, %v2157
        %v2161 = vadd.f32 %v2154, %v2158
        %v2162 = vstv %s1670
        %v2163 = vmul.f32 %v2006, %v2162
        %v2164 = vmul.f32 %v2007, %v2162
        %v2165 = vmul.f32 %v2008, %v2162
        %v2166 = vadd.f32 %v2159, %v2163
        %v2167 = vadd.f32 %v2160, %v2164
        %v2168 = vadd.f32 %v2161, %v2165
        %v2169 = vstv %s1671
        %v2170 = vmul.f32 %v1622, %v2169
        %v2171 = vmul.f32 %v1623, %v2169
        %v2172 = vmul.f32 %v1624, %v2169
        %v2173 = vadd.f32 %v2166, %v2170
        %v2174 = vadd.f32 %v2167, %v2171
        %v2175 = vadd.f32 %v2168, %v2172
        %v2176 = vstv %s1672
        %v2177 = vmul.f32 %v2018, %v2176
        %v2178 = vmul.f32 %v2019, %v2176
        %v2179 = vmul.f32 %v2020, %v2176
        %v2180 = vadd.f32 %v2173, %v2177
        %v2181 = vadd.f32 %v2174, %v2178
        %v2182 = vadd.f32 %v2175, %v2179
        %v2183 = vstv %s1673
        %v2184 = vmul.f32 %v2056, %v2183
        %v2185 = vmul.f32 %v2058, %v2183
        %v2186 = vmul.f32 %v2062, %v2183
        %v2187 = vadd.f32 %v2180, %v2184
        %v2188 = vadd.f32 %v2181, %v2185
        %v2189 = vadd.f32 %v2182, %v2186
        %v2190 = vstv %s1674
        %v2191 = vmul.f32 %v2065, %v2190
        %v2192 = vmul.f32 %v2067, %v2190
        %v2193 = vmul.f32 %v2071, %v2190
        %v2194 = vadd.f32 %v2187, %v2191
        %v2195 = vadd.f32 %v2188, %v2192
        %v2196 = vadd.f32 %v2189, %v2193
        %v2197 = vstv %s1675
        %v2198 = vmul.f32 %v2074, %v2197
        %v2199 = vmul.f32 %v2076, %v2197
        %v2200 = vmul.f32 %v2080, %v2197
        %v2201 = vadd.f32 %v2194, %v2198
        %v2202 = vadd.f32 %v2195, %v2199
        %v2203 = vadd.f32 %v2196, %v2200
        %v2204 = vadd.f32 %v1928, %v2201
        %v2205 = vadd.f32 %v1929, %v2202
        %v2206 = vadd.f32 %v1930, %v2203
        %v2207 = vstv %s1694
        %v2208 = vmul.f32 %v2032, %v2207
        %v2209 = vmul.f32 %v2026, %v2207
        %v2210 = vmul.f32 %v2028, %v2207
        %v2211 = vstv %s1695
        %v2212 = vmul.f32 %v2041, %v2211
        %v2213 = vmul.f32 %v2035, %v2211
        %v2214 = vmul.f32 %v2037, %v2211
        %v2215 = vadd.f32 %v2208, %v2212
        %v2216 = vadd.f32 %v2209, %v2213
        %v2217 = vadd.f32 %v2210, %v2214
        %v2218 = vstv %s1696
        %v2219 = vmul.f32 %v2053, %v2218
        %v2220 = vmul.f32 %v2047, %v2218
        %v2221 = vmul.f32 %v2049, %v2218
        %v2222 = vadd.f32 %v2215, %v2219
        %v2223 = vadd.f32 %v2216, %v2220
        %v2224 = vadd.f32 %v2217, %v2221
        %v2225 = vstv %s1697
        %v2226 = vmul.f32 %v2006, %v2225
        %v2227 = vmul.f32 %v2007, %v2225
        %v2228 = vmul.f32 %v2008, %v2225
        %v2229 = vadd.f32 %v2222, %v2226
        %v2230 = vadd.f32 %v2223, %v2227
        %v2231 = vadd.f32 %v2224, %v2228
        %v2232 = vstv %s1698
        %v2233 = vmul.f32 %v1622, %v2232
        %v2234 = vmul.f32 %v1623, %v2232
        %v2235 = vmul.f32 %v1624, %v2232
        %v2236 = vadd.f32 %v2229, %v2233
        %v2237 = vadd.f32 %v2230, %v2234
        %v2238 = vadd.f32 %v2231, %v2235
        %v2239 = vstv %s1699
        %v2240 = vmul.f32 %v2018, %v2239
        %v2241 = vmul.f32 %v2019, %v2239
        %v2242 = vmul.f32 %v2020, %v2239
        %v2243 = vadd.f32 %v2236, %v2240
        %v2244 = vadd.f32 %v2237, %v2241
        %v2245 = vadd.f32 %v2238, %v2242
        %v2246 = vstv %s1700
        %v2247 = vmul.f32 %v2056, %v2246
        %v2248 = vmul.f32 %v2058, %v2246
        %v2249 = vmul.f32 %v2062, %v2246
        %v2250 = vadd.f32 %v2243, %v2247
        %v2251 = vadd.f32 %v2244, %v2248
        %v2252 = vadd.f32 %v2245, %v2249
        %v2253 = vstv %s1701
        %v2254 = vmul.f32 %v2065, %v2253
        %v2255 = vmul.f32 %v2067, %v2253
        %v2256 = vmul.f32 %v2071, %v2253
        %v2257 = vadd.f32 %v2250, %v2254
        %v2258 = vadd.f32 %v2251, %v2255
        %v2259 = vadd.f32 %v2252, %v2256
        %v2260 = vstv %s1702
        %v2261 = vmul.f32 %v2074, %v2260
        %v2262 = vmul.f32 %v2076, %v2260
        %v2263 = vmul.f32 %v2080, %v2260
        %v2264 = vadd.f32 %v2257, %v2261
        %v2265 = vadd.f32 %v2258, %v2262
        %v2266 = vadd.f32 %v2259, %v2263
        %v2267 = vadd.f32 %v1991, %v2264
        %v2268 = vadd.f32 %v1992, %v2265
        %v2269 = vadd.f32 %v1993, %v2266
        %2273 = vrot.lane.b32.xlu0 %v1628, 1
        %v2274 = vpop.permute.xlu0 %2273
        %2275 = vrot.lane.b32.xlu0 %v1629, 1
        %v2276 = vpop.permute.xlu0 %2275
        %2277 = vrot.lane.b32.xlu0 %v1630, 1
        %v2278 = vpop.permute.xlu0 %2277
        %v2282 = vsel %vm793, 0.0, %v2274
        %v2283 = vsel %vm793, 0.0, %v2276
        %v2284 = vsel %vm793, 0.0, %v2278
        %2285 = vrot.lane.b32.xlu0 %v1628, 127
        %v2286 = vpop.permute.xlu0 %2285
        %2287 = vrot.lane.b32.xlu0 %v1629, 127
        %v2288 = vpop.permute.xlu0 %2287
        %2289 = vrot.lane.b32.xlu0 %v1630, 127
        %v2290 = vpop.permute.xlu0 %2289
        %v2294 = vsel %vm806, %v2286, 0.0
        %v2295 = vsel %vm806, %v2288, 0.0
        %v2296 = vsel %vm806, %v2290, 0.0
        %v2300 = vrot.slane %v2282, 7
        %v2301 = vrot.slane %v2283, 7
        %v2302 = vsel %vm813, %v2300, %v2301
        %v2303 = vrot.slane %v2284, 7
        %v2304 = vsel %vm813, %v2301, %v2303
        %v2308 = vsel %vm813, 0.0, %v2300
        %v2309 = vrot.slane %v1628, 7
        %v2310 = vrot.slane %v1629, 7
        %v2311 = vsel %vm813, %v2309, %v2310
        %v2312 = vrot.slane %v1630, 7
        %v2313 = vsel %vm813, %v2310, %v2312
        %v2317 = vsel %vm813, 0.0, %v2309
        %v2321 = vrot.slane %v2294, 7
        %v2322 = vrot.slane %v2295, 7
        %v2323 = vsel %vm813, %v2321, %v2322
        %v2324 = vrot.slane %v2296, 7
        %v2325 = vsel %vm813, %v2322, %v2324
        %v2329 = vsel %vm813, 0.0, %v2321
        %v2330 = vrot.slane %v2282, 1
        %v2331 = vrot.slane %v2283, 1
        %v2332 = vsel %vm844, %v2330, %v2331
        %v2333 = vrot.slane %v2284, 1
        %v2334 = vsel %vm844, %v2331, %v2333
        %v2338 = vsel %vm844, %v2333, 0.0
        %v2339 = vrot.slane %v1628, 1
        %v2340 = vrot.slane %v1629, 1
        %v2341 = vsel %vm844, %v2339, %v2340
        %v2342 = vrot.slane %v1630, 1
        %v2343 = vsel %vm844, %v2340, %v2342
        %v2347 = vsel %vm844, %v2342, 0.0
        %v2348 = vrot.slane %v2294, 1
        %v2349 = vrot.slane %v2295, 1
        %v2350 = vsel %vm844, %v2348, %v2349
        %v2351 = vrot.slane %v2296, 1
        %v2352 = vsel %vm844, %v2349, %v2351
        %v2356 = vsel %vm844, %v2351, 0.0
        %v2357 = vstv %s1649
        %v2358 = vmul.f32 %v2308, %v2357
        %v2359 = vmul.f32 %v2302, %v2357
        %v2360 = vmul.f32 %v2304, %v2357
        %v2361 = vstv %s1650
        %v2362 = vmul.f32 %v2317, %v2361
        %v2363 = vmul.f32 %v2311, %v2361
        %v2364 = vmul.f32 %v2313, %v2361
        %v2365 = vadd.f32 %v2358, %v2362
        %v2366 = vadd.f32 %v2359, %v2363
        %v2367 = vadd.f32 %v2360, %v2364
        %v2368 = vstv %s1651
        %v2369 = vmul.f32 %v2329, %v2368
        %v2370 = vmul.f32 %v2323, %v2368
        %v2371 = vmul.f32 %v2325, %v2368
        %v2372 = vadd.f32 %v2365, %v2369
        %v2373 = vadd.f32 %v2366, %v2370
        %v2374 = vadd.f32 %v2367, %v2371
        %v2375 = vstv %s1652
        %v2376 = vmul.f32 %v2282, %v2375
        %v2377 = vmul.f32 %v2283, %v2375
        %v2378 = vmul.f32 %v2284, %v2375
        %v2379 = vadd.f32 %v2372, %v2376
        %v2380 = vadd.f32 %v2373, %v2377
        %v2381 = vadd.f32 %v2374, %v2378
        %v2382 = vstv %s1653
        %v2383 = vmul.f32 %v1628, %v2382
        %v2384 = vmul.f32 %v1629, %v2382
        %v2385 = vmul.f32 %v1630, %v2382
        %v2386 = vadd.f32 %v2379, %v2383
        %v2387 = vadd.f32 %v2380, %v2384
        %v2388 = vadd.f32 %v2381, %v2385
        %v2389 = vstv %s1654
        %v2390 = vmul.f32 %v2294, %v2389
        %v2391 = vmul.f32 %v2295, %v2389
        %v2392 = vmul.f32 %v2296, %v2389
        %v2393 = vadd.f32 %v2386, %v2390
        %v2394 = vadd.f32 %v2387, %v2391
        %v2395 = vadd.f32 %v2388, %v2392
        %v2396 = vstv %s1655
        %v2397 = vmul.f32 %v2332, %v2396
        %v2398 = vmul.f32 %v2334, %v2396
        %v2399 = vmul.f32 %v2338, %v2396
        %v2400 = vadd.f32 %v2393, %v2397
        %v2401 = vadd.f32 %v2394, %v2398
        %v2402 = vadd.f32 %v2395, %v2399
        %v2403 = vstv %s1656
        %v2404 = vmul.f32 %v2341, %v2403
        %v2405 = vmul.f32 %v2343, %v2403
        %v2406 = vmul.f32 %v2347, %v2403
        %v2407 = vadd.f32 %v2400, %v2404
        %v2408 = vadd.f32 %v2401, %v2405
        %v2409 = vadd.f32 %v2402, %v2406
        %v2410 = vstv %s1657
        %v2411 = vmul.f32 %v2350, %v2410
        %v2412 = vmul.f32 %v2352, %v2410
        %v2413 = vmul.f32 %v2356, %v2410
        %v2414 = vadd.f32 %v2407, %v2411
        %v2415 = vadd.f32 %v2408, %v2412
        %v2416 = vadd.f32 %v2409, %v2413
        %v2417 = vadd.f32 %v2141, %v2414
        %v2418 = vadd.f32 %v2142, %v2415
        %v2419 = vadd.f32 %v2143, %v2416
        %v2420 = vstv %s1676
        %v2421 = vmul.f32 %v2308, %v2420
        %v2422 = vmul.f32 %v2302, %v2420
        %v2423 = vmul.f32 %v2304, %v2420
        %v2424 = vstv %s1677
        %v2425 = vmul.f32 %v2317, %v2424
        %v2426 = vmul.f32 %v2311, %v2424
        %v2427 = vmul.f32 %v2313, %v2424
        %v2428 = vadd.f32 %v2421, %v2425
        %v2429 = vadd.f32 %v2422, %v2426
        %v2430 = vadd.f32 %v2423, %v2427
        %v2431 = vstv %s1678
        %v2432 = vmul.f32 %v2329, %v2431
        %v2433 = vmul.f32 %v2323, %v2431
        %v2434 = vmul.f32 %v2325, %v2431
        %v2435 = vadd.f32 %v2428, %v2432
        %v2436 = vadd.f32 %v2429, %v2433
        %v2437 = vadd.f32 %v2430, %v2434
        %v2438 = vstv %s1679
        %v2439 = vmul.f32 %v2282, %v2438
        %v2440 = vmul.f32 %v2283, %v2438
        %v2441 = vmul.f32 %v2284, %v2438
        %v2442 = vadd.f32 %v2435, %v2439
        %v2443 = vadd.f32 %v2436, %v2440
        %v2444 = vadd.f32 %v2437, %v2441
        %v2445 = vstv %s1680
        %v2446 = vmul.f32 %v1628, %v2445
        %v2447 = vmul.f32 %v1629, %v2445
        %v2448 = vmul.f32 %v1630, %v2445
        %v2449 = vadd.f32 %v2442, %v2446
        %v2450 = vadd.f32 %v2443, %v2447
        %v2451 = vadd.f32 %v2444, %v2448
        %v2452 = vstv %s1681
        %v2453 = vmul.f32 %v2294, %v2452
        %v2454 = vmul.f32 %v2295, %v2452
        %v2455 = vmul.f32 %v2296, %v2452
        %v2456 = vadd.f32 %v2449, %v2453
        %v2457 = vadd.f32 %v2450, %v2454
        %v2458 = vadd.f32 %v2451, %v2455
        %v2459 = vstv %s1682
        %v2460 = vmul.f32 %v2332, %v2459
        %v2461 = vmul.f32 %v2334, %v2459
        %v2462 = vmul.f32 %v2338, %v2459
        %v2463 = vadd.f32 %v2456, %v2460
        %v2464 = vadd.f32 %v2457, %v2461
        %v2465 = vadd.f32 %v2458, %v2462
        %v2466 = vstv %s1683
        %v2467 = vmul.f32 %v2341, %v2466
        %v2468 = vmul.f32 %v2343, %v2466
        %v2469 = vmul.f32 %v2347, %v2466
        %v2470 = vadd.f32 %v2463, %v2467
        %v2471 = vadd.f32 %v2464, %v2468
        %v2472 = vadd.f32 %v2465, %v2469
        %v2473 = vstv %s1684
        %v2474 = vmul.f32 %v2350, %v2473
        %v2475 = vmul.f32 %v2352, %v2473
        %v2476 = vmul.f32 %v2356, %v2473
        %v2477 = vadd.f32 %v2470, %v2474
        %v2478 = vadd.f32 %v2471, %v2475
        %v2479 = vadd.f32 %v2472, %v2476
        %v2480 = vadd.f32 %v2204, %v2477
        %v2481 = vadd.f32 %v2205, %v2478
        %v2482 = vadd.f32 %v2206, %v2479
        %v2483 = vstv %s1703
        %v2484 = vmul.f32 %v2308, %v2483
        %v2485 = vmul.f32 %v2302, %v2483
        %v2486 = vmul.f32 %v2304, %v2483
        %v2487 = vstv %s1704
        %v2488 = vmul.f32 %v2317, %v2487
        %v2489 = vmul.f32 %v2311, %v2487
        %v2490 = vmul.f32 %v2313, %v2487
        %v2491 = vadd.f32 %v2484, %v2488
        %v2492 = vadd.f32 %v2485, %v2489
        %v2493 = vadd.f32 %v2486, %v2490
        %v2494 = vstv %s1705
        %v2495 = vmul.f32 %v2329, %v2494
        %v2496 = vmul.f32 %v2323, %v2494
        %v2497 = vmul.f32 %v2325, %v2494
        %v2498 = vadd.f32 %v2491, %v2495
        %v2499 = vadd.f32 %v2492, %v2496
        %v2500 = vadd.f32 %v2493, %v2497
        %v2501 = vstv %s1706
        %v2502 = vmul.f32 %v2282, %v2501
        %v2503 = vmul.f32 %v2283, %v2501
        %v2504 = vmul.f32 %v2284, %v2501
        %v2505 = vadd.f32 %v2498, %v2502
        %v2506 = vadd.f32 %v2499, %v2503
        %v2507 = vadd.f32 %v2500, %v2504
        %v2508 = vstv %s1707
        %v2509 = vmul.f32 %v1628, %v2508
        %v2510 = vmul.f32 %v1629, %v2508
        %v2511 = vmul.f32 %v1630, %v2508
        %v2512 = vadd.f32 %v2505, %v2509
        %v2513 = vadd.f32 %v2506, %v2510
        %v2514 = vadd.f32 %v2507, %v2511
        %v2515 = vstv %s1708
        %v2516 = vmul.f32 %v2294, %v2515
        %v2517 = vmul.f32 %v2295, %v2515
        %v2518 = vmul.f32 %v2296, %v2515
        %v2519 = vadd.f32 %v2512, %v2516
        %v2520 = vadd.f32 %v2513, %v2517
        %v2521 = vadd.f32 %v2514, %v2518
        %v2522 = vstv %s1709
        %v2523 = vmul.f32 %v2332, %v2522
        %v2524 = vmul.f32 %v2334, %v2522
        %v2525 = vmul.f32 %v2338, %v2522
        %v2526 = vadd.f32 %v2519, %v2523
        %v2527 = vadd.f32 %v2520, %v2524
        %v2528 = vadd.f32 %v2521, %v2525
        %v2529 = vstv %s1710
        %v2530 = vmul.f32 %v2341, %v2529
        %v2531 = vmul.f32 %v2343, %v2529
        %v2532 = vmul.f32 %v2347, %v2529
        %v2533 = vadd.f32 %v2526, %v2530
        %v2534 = vadd.f32 %v2527, %v2531
        %v2535 = vadd.f32 %v2528, %v2532
        %v2536 = vstv %s1711
        %v2537 = vmul.f32 %v2350, %v2536
        %v2538 = vmul.f32 %v2352, %v2536
        %v2539 = vmul.f32 %v2356, %v2536
        %v2540 = vadd.f32 %v2533, %v2537
        %v2541 = vadd.f32 %v2534, %v2538
        %v2542 = vadd.f32 %v2535, %v2539
        %v2543 = vadd.f32 %v2267, %v2540
        %v2544 = vadd.f32 %v2268, %v2541
        %v2545 = vadd.f32 %v2269, %v2542
        %s2546 = sld [smem:[#allocation15]]
        %v2547 = vstv %s2546
        %v2548 = vmul.f32 %v2417, %v2547
        %v2549 = vmul.f32 %v2418, %v2547
        %v2550 = vmul.f32 %v2419, %v2547
        %s2551 = sld [smem:[#allocation16]]
        %v2552 = vstv %s2551
        %v2553 = vadd.f32 %v2548, %v2552
        %v2554 = vadd.f32 %v2549, %v2552
        %v2555 = vadd.f32 %v2550, %v2552
        %v2556 = vmax.f32 %v2553, 0.0
        %v2557 = vmax.f32 %v2554, 0.0
        %v2558 = vmax.f32 %v2555, 0.0
        %v2559 = vadd.f32 %v1616, %v2556
        %v2560 = vadd.f32 %v1617, %v2557
        %v2561 = vadd.f32 %v1618, %v2558
        %v2562 = vsel %vm667, %v2559, 0.0
        %v2563 = vsel %vm668, %v2560, 0.0
        %v2564 = vsel %vm669, %v2561, 0.0
        %s2565 = sld [smem:[#allocation15 + $0x1]]
        %v2566 = vstv %s2565
        %v2567 = vmul.f32 %v2480, %v2566
        %v2568 = vmul.f32 %v2481, %v2566
        %v2569 = vmul.f32 %v2482, %v2566
        %s2570 = sld [smem:[#allocation16 + $0x1]]
        %v2571 = vstv %s2570
        %v2572 = vadd.f32 %v2567, %v2571
        %v2573 = vadd.f32 %v2568, %v2571
        %v2574 = vadd.f32 %v2569, %v2571
        %v2575 = vmax.f32 %v2572, 0.0
        %v2576 = vmax.f32 %v2573, 0.0
        %v2577 = vmax.f32 %v2574, 0.0
        %v2578 = vadd.f32 %v1622, %v2575
        %v2579 = vadd.f32 %v1623, %v2576
        %v2580 = vadd.f32 %v1624, %v2577
        %v2581 = vsel %vm667, %v2578, 0.0
        %v2582 = vsel %vm668, %v2579, 0.0
        %v2583 = vsel %vm669, %v2580, 0.0
        %s2584 = sld [smem:[#allocation15 + $0x2]]
        %v2585 = vstv %s2584
        %v2586 = vmul.f32 %v2543, %v2585
        %v2587 = vmul.f32 %v2544, %v2585
        %v2588 = vmul.f32 %v2545, %v2585
        %s2589 = sld [smem:[#allocation16 + $0x2]]
        %v2590 = vstv %s2589
        %v2591 = vadd.f32 %v2586, %v2590
        %v2592 = vadd.f32 %v2587, %v2590
        %v2593 = vadd.f32 %v2588, %v2590
        %v2594 = vmax.f32 %v2591, 0.0
        %v2595 = vmax.f32 %v2592, 0.0
        %v2596 = vmax.f32 %v2593, 0.0
        %v2597 = vadd.f32 %v1628, %v2594
        %v2598 = vadd.f32 %v1629, %v2595
        %v2599 = vadd.f32 %v1630, %v2596
        %v2600 = vsel %vm667, %v2597, 0.0
        %v2601 = vsel %vm668, %v2598, 0.0
        %v2602 = vsel %vm669, %v2599, 0.0
        %s2603 = sld [smem:[#allocation18]]
        %s2604 = sld [smem:[#allocation18 + $0x1]]
        %s2605 = sld [smem:[#allocation18 + $0x2]]
        %s2606 = sld [smem:[#allocation18 + $0x3]]
        %s2607 = sld [smem:[#allocation18 + $0x4]]
        %s2608 = sld [smem:[#allocation18 + $0x5]]
        %s2609 = sld [smem:[#allocation18 + $0x6]]
        %s2610 = sld [smem:[#allocation18 + $0x7]]
        %s2611 = sld [smem:[#allocation18 + $0x8]]
        %s2612 = sld [smem:[#allocation18 + $0x9]]
        %s2613 = sld [smem:[#allocation18 + $0xa]]
        %s2614 = sld [smem:[#allocation18 + $0xb]]
        %s2615 = sld [smem:[#allocation18 + $0xc]]
        %s2616 = sld [smem:[#allocation18 + $0xd]]
        %s2617 = sld [smem:[#allocation18 + $0xe]]
        %s2618 = sld [smem:[#allocation18 + $0xf]]
        %s2619 = sld [smem:[#allocation18 + $0x10]]
        %s2620 = sld [smem:[#allocation18 + $0x11]]
        %s2621 = sld [smem:[#allocation18 + $0x12]]
        %s2622 = sld [smem:[#allocation18 + $0x13]]
        %s2623 = sld [smem:[#allocation18 + $0x14]]
        %s2624 = sld [smem:[#allocation18 + $0x15]]
        %s2625 = sld [smem:[#allocation18 + $0x16]]
        %s2626 = sld [smem:[#allocation18 + $0x17]]
        %s2627 = sld [smem:[#allocation18 + $0x18]]
        %s2628 = sld [smem:[#allocation18 + $0x19]]
        %s2629 = sld [smem:[#allocation18 + $0x1a]]
        %s2630 = sld [smem:[#allocation18 + $0x1b]]
        %s2631 = sld [smem:[#allocation18 + $0x1c]]
        %s2632 = sld [smem:[#allocation18 + $0x1d]]
        %s2633 = sld [smem:[#allocation18 + $0x1e]]
        %s2634 = sld [smem:[#allocation18 + $0x1f]]
        %s2635 = sld [smem:[#allocation18 + $0x20]]
        %s2636 = sld [smem:[#allocation18 + $0x21]]
        %s2637 = sld [smem:[#allocation18 + $0x22]]
        %s2638 = sld [smem:[#allocation18 + $0x23]]
        %s2639 = sld [smem:[#allocation18 + $0x24]]
        %s2640 = sld [smem:[#allocation18 + $0x25]]
        %s2641 = sld [smem:[#allocation18 + $0x26]]
        %s2642 = sld [smem:[#allocation18 + $0x27]]
        %s2643 = sld [smem:[#allocation18 + $0x28]]
        %s2644 = sld [smem:[#allocation18 + $0x29]]
        %s2645 = sld [smem:[#allocation18 + $0x2a]]
        %s2646 = sld [smem:[#allocation18 + $0x2b]]
        %s2647 = sld [smem:[#allocation18 + $0x2c]]
        %s2648 = sld [smem:[#allocation18 + $0x2d]]
        %s2649 = sld [smem:[#allocation18 + $0x2e]]
        %s2650 = sld [smem:[#allocation18 + $0x2f]]
        %s2651 = sld [smem:[#allocation18 + $0x30]]
        %s2652 = sld [smem:[#allocation18 + $0x31]]
        %s2653 = sld [smem:[#allocation18 + $0x32]]
        %s2654 = sld [smem:[#allocation18 + $0x33]]
        %s2655 = sld [smem:[#allocation18 + $0x34]]
        %s2656 = sld [smem:[#allocation18 + $0x35]]
        %s2657 = sld [smem:[#allocation18 + $0x36]]
        %s2658 = sld [smem:[#allocation18 + $0x37]]
        %s2659 = sld [smem:[#allocation18 + $0x38]]
        %s2660 = sld [smem:[#allocation18 + $0x39]]
        %s2661 = sld [smem:[#allocation18 + $0x3a]]
        %s2662 = sld [smem:[#allocation18 + $0x3b]]
        %s2663 = sld [smem:[#allocation18 + $0x3c]]
        %s2664 = sld [smem:[#allocation18 + $0x3d]]
        %s2665 = sld [smem:[#allocation18 + $0x3e]]
        %s2666 = sld [smem:[#allocation18 + $0x3f]]
        %s2667 = sld [smem:[#allocation18 + $0x40]]
        %s2668 = sld [smem:[#allocation18 + $0x41]]
        %s2669 = sld [smem:[#allocation18 + $0x42]]
        %s2670 = sld [smem:[#allocation18 + $0x43]]
        %s2671 = sld [smem:[#allocation18 + $0x44]]
        %s2672 = sld [smem:[#allocation18 + $0x45]]
        %s2673 = sld [smem:[#allocation18 + $0x46]]
        %s2674 = sld [smem:[#allocation18 + $0x47]]
        %s2675 = sld [smem:[#allocation18 + $0x48]]
        %s2676 = sld [smem:[#allocation18 + $0x49]]
        %s2677 = sld [smem:[#allocation18 + $0x4a]]
        %s2678 = sld [smem:[#allocation18 + $0x4b]]
        %s2679 = sld [smem:[#allocation18 + $0x4c]]
        %s2680 = sld [smem:[#allocation18 + $0x4d]]
        %s2681 = sld [smem:[#allocation18 + $0x4e]]
        %s2682 = sld [smem:[#allocation18 + $0x4f]]
        %s2683 = sld [smem:[#allocation18 + $0x50]]
        %s2684 = sld [smem:[#allocation19]]
        %v2685 = vstv %s2684
        %s2686 = sld [smem:[#allocation19 + $0x1]]
        %v2687 = vstv %s2686
        %s2688 = sld [smem:[#allocation19 + $0x2]]
        %v2689 = vstv %s2688
        %2693 = vrot.lane.b32.xlu0 %v2562, 1
        %v2694 = vpop.permute.xlu0 %2693
        %2695 = vrot.lane.b32.xlu0 %v2563, 1
        %v2696 = vpop.permute.xlu0 %2695
        %2697 = vrot.lane.b32.xlu0 %v2564, 1
        %v2698 = vpop.permute.xlu0 %2697
        %v2702 = vsel %vm793, 0.0, %v2694
        %v2703 = vsel %vm793, 0.0, %v2696
        %v2704 = vsel %vm793, 0.0, %v2698
        %2705 = vrot.lane.b32.xlu0 %v2562, 127
        %v2706 = vpop.permute.xlu0 %2705
        %2707 = vrot.lane.b32.xlu0 %v2563, 127
        %v2708 = vpop.permute.xlu0 %2707
        %2709 = vrot.lane.b32.xlu0 %v2564, 127
        %v2710 = vpop.permute.xlu0 %2709
        %v2714 = vsel %vm806, %v2706, 0.0
        %v2715 = vsel %vm806, %v2708, 0.0
        %v2716 = vsel %vm806, %v2710, 0.0
        %v2719 = vrot.slane %v2702, 7
        %v2720 = vrot.slane %v2703, 7
        %v2721 = vsel %vm813, %v2719, %v2720
        %v2723 = vrot.slane %v2562, 7
        %v2724 = vrot.slane %v2563, 7
        %v2725 = vsel %vm813, %v2723, %v2724
        %v2729 = vrot.slane %v2714, 7
        %v2730 = vrot.slane %v2715, 7
        %v2731 = vsel %vm813, %v2729, %v2730
        %v2734 = vrot.slane %v2703, 1
        %v2735 = vrot.slane %v2704, 1
        %v2736 = vsel %vm844, %v2734, %v2735
        %v2738 = vrot.slane %v2563, 1
        %v2739 = vrot.slane %v2564, 1
        %v2740 = vsel %vm844, %v2738, %v2739
        %v2743 = vrot.slane %v2715, 1
        %v2744 = vrot.slane %v2716, 1
        %v2745 = vsel %vm844, %v2743, %v2744
        %v2747 = vstv %s2603
        %v2748 = vmul.f32 %v2721, %v2747
        %v2749 = vstv %s2604
        %v2750 = vmul.f32 %v2725, %v2749
        %v2751 = vadd.f32 %v2748, %v2750
        %v2752 = vstv %s2605
        %v2753 = vmul.f32 %v2731, %v2752
        %v2754 = vadd.f32 %v2751, %v2753
        %v2755 = vstv %s2606
        %v2756 = vmul.f32 %v2703, %v2755
        %v2757 = vadd.f32 %v2754, %v2756
        %v2758 = vstv %s2607
        %v2759 = vmul.f32 %v2563, %v2758
        %v2760 = vadd.f32 %v2757, %v2759
        %v2761 = vstv %s2608
        %v2762 = vmul.f32 %v2715, %v2761
        %v2763 = vadd.f32 %v2760, %v2762
        %v2764 = vstv %s2609
        %v2765 = vmul.f32 %v2736, %v2764
        %v2766 = vadd.f32 %v2763, %v2765
        %v2767 = vstv %s2610
        %v2768 = vmul.f32 %v2740, %v2767
        %v2769 = vadd.f32 %v2766, %v2768
        %v2770 = vstv %s2611
        %v2771 = vmul.f32 %v2745, %v2770
        %v2772 = vadd.f32 %v2769, %v2771
        %v2773 = vadd.f32 %v2685, %v2772
        %v2774 = vstv %s2630
        %v2775 = vmul.f32 %v2721, %v2774
        %v2776 = vstv %s2631
        %v2777 = vmul.f32 %v2725, %v2776
        %v2778 = vadd.f32 %v2775, %v2777
        %v2779 = vstv %s2632
        %v2780 = vmul.f32 %v2731, %v2779
        %v2781 = vadd.f32 %v2778, %v2780
        %v2782 = vstv %s2633
        %v2783 = vmul.f32 %v2703, %v2782
        %v2784 = vadd.f32 %v2781, %v2783
        %v2785 = vstv %s2634
        %v2786 = vmul.f32 %v2563, %v2785
        %v2787 = vadd.f32 %v2784, %v2786
        %v2788 = vstv %s2635
        %v2789 = vmul.f32 %v2715, %v2788
        %v2790 = vadd.f32 %v2787, %v2789
        %v2791 = vstv %s2636
        %v2792 = vmul.f32 %v2736, %v2791
        %v2793 = vadd.f32 %v2790, %v2792
        %v2794 = vstv %s2637
        %v2795 = vmul.f32 %v2740, %v2794
        %v2796 = vadd.f32 %v2793, %v2795
        %v2797 = vstv %s2638
        %v2798 = vmul.f32 %v2745, %v2797
        %v2799 = vadd.f32 %v2796, %v2798
        %v2800 = vadd.f32 %v2687, %v2799
        %v2801 = vstv %s2657
        %v2802 = vmul.f32 %v2721, %v2801
        %v2803 = vstv %s2658
        %v2804 = vmul.f32 %v2725, %v2803
        %v2805 = vadd.f32 %v2802, %v2804
        %v2806 = vstv %s2659
        %v2807 = vmul.f32 %v2731, %v2806
        %v2808 = vadd.f32 %v2805, %v2807
        %v2809 = vstv %s2660
        %v2810 = vmul.f32 %v2703, %v2809
        %v2811 = vadd.f32 %v2808, %v2810
        %v2812 = vstv %s2661
        %v2813 = vmul.f32 %v2563, %v2812
        %v2814 = vadd.f32 %v2811, %v2813
        %v2815 = vstv %s2662
        %v2816 = vmul.f32 %v2715, %v2815
        %v2817 = vadd.f32 %v2814, %v2816
        %v2818 = vstv %s2663
        %v2819 = vmul.f32 %v2736, %v2818
        %v2820 = vadd.f32 %v2817, %v2819
        %v2821 = vstv %s2664
        %v2822 = vmul.f32 %v2740, %v2821
        %v2823 = vadd.f32 %v2820, %v2822
        %v2824 = vstv %s2665
        %v2825 = vmul.f32 %v2745, %v2824
        %v2826 = vadd.f32 %v2823, %v2825
        %v2827 = vadd.f32 %v2689, %v2826
        %2831 = vrot.lane.b32.xlu0 %v2581, 1
        %v2832 = vpop.permute.xlu0 %2831
        %2833 = vrot.lane.b32.xlu0 %v2582, 1
        %v2834 = vpop.permute.xlu0 %2833
        %2835 = vrot.lane.b32.xlu0 %v2583, 1
        %v2836 = vpop.permute.xlu0 %2835
        %v2840 = vsel %vm793, 0.0, %v2832
        %v2841 = vsel %vm793, 0.0, %v2834
        %v2842 = vsel %vm793, 0.0, %v2836
        %2843 = vrot.lane.b32.xlu0 %v2581, 127
        %v2844 = vpop.permute.xlu0 %2843
        %2845 = vrot.lane.b32.xlu0 %v2582, 127
        %v2846 = vpop.permute.xlu0 %2845
        %2847 = vrot.lane.b32.xlu0 %v2583, 127
        %v2848 = vpop.permute.xlu0 %2847
        %v2852 = vsel %vm806, %v2844, 0.0
        %v2853 = vsel %vm806, %v2846, 0.0
        %v2854 = vsel %vm806, %v2848, 0.0
        %v2857 = vrot.slane %v2840, 7
        %v2858 = vrot.slane %v2841, 7
        %v2859 = vsel %vm813, %v2857, %v2858
        %v2861 = vrot.slane %v2581, 7
        %v2862 = vrot.slane %v2582, 7
        %v2863 = vsel %vm813, %v2861, %v2862
        %v2867 = vrot.slane %v2852, 7
        %v2868 = vrot.slane %v2853, 7
        %v2869 = vsel %vm813, %v2867, %v2868
        %v2872 = vrot.slane %v2841, 1
        %v2873 = vrot.slane %v2842, 1
        %v2874 = vsel %vm844, %v2872, %v2873
        %v2876 = vrot.slane %v2582, 1
        %v2877 = vrot.slane %v2583, 1
        %v2878 = vsel %vm844, %v2876, %v2877
        %v2881 = vrot.slane %v2853, 1
        %v2882 = vrot.slane %v2854, 1
        %v2883 = vsel %vm844, %v2881, %v2882
        %v2885 = vstv %s2612
        %v2886 = vmul.f32 %v2859, %v2885
        %v2887 = vstv %s2613
        %v2888 = vmul.f32 %v2863, %v2887
        %v2889 = vadd.f32 %v2886, %v2888
        %v2890 = vstv %s2614
        %v2891 = vmul.f32 %v2869, %v2890
        %v2892 = vadd.f32 %v2889, %v2891
        %v2893 = vstv %s2615
        %v2894 = vmul.f32 %v2841, %v2893
        %v2895 = vadd.f32 %v2892, %v2894
        %v2896 = vstv %s2616
        %v2897 = vmul.f32 %v2582, %v2896
        %v2898 = vadd.f32 %v2895, %v2897
        %v2899 = vstv %s2617
        %v2900 = vmul.f32 %v2853, %v2899
        %v2901 = vadd.f32 %v2898, %v2900
        %v2902 = vstv %s2618
        %v2903 = vmul.f32 %v2874, %v2902
        %v2904 = vadd.f32 %v2901, %v2903
        %v2905 = vstv %s2619
        %v2906 = vmul.f32 %v2878, %v2905
        %v2907 = vadd.f32 %v2904, %v2906
        %v2908 = vstv %s2620
        %v2909 = vmul.f32 %v2883, %v2908
        %v2910 = vadd.f32 %v2907, %v2909
        %v2911 = vadd.f32 %v2773, %v2910
        %v2912 = vstv %s2639
        %v2913 = vmul.f32 %v2859, %v2912
        %v2914 = vstv %s2640
        %v2915 = vmul.f32 %v2863, %v2914
        %v2916 = vadd.f32 %v2913, %v2915
        %v2917 = vstv %s2641
        %v2918 = vmul.f32 %v2869, %v2917
        %v2919 = vadd.f32 %v2916, %v2918
        %v2920 = vstv %s2642
        %v2921 = vmul.f32 %v2841, %v2920
        %v2922 = vadd.f32 %v2919, %v2921
        %v2923 = vstv %s2643
        %v2924 = vmul.f32 %v2582, %v2923
        %v2925 = vadd.f32 %v2922, %v2924
        %v2926 = vstv %s2644
        %v2927 = vmul.f32 %v2853, %v2926
        %v2928 = vadd.f32 %v2925, %v2927
        %v2929 = vstv %s2645
        %v2930 = vmul.f32 %v2874, %v2929
        %v2931 = vadd.f32 %v2928, %v2930
        %v2932 = vstv %s2646
        %v2933 = vmul.f32 %v2878, %v2932
        %v2934 = vadd.f32 %v2931, %v2933
        %v2935 = vstv %s2647
        %v2936 = vmul.f32 %v2883, %v2935
        %v2937 = vadd.f32 %v2934, %v2936
        %v2938 = vadd.f32 %v2800, %v2937
        %v2939 = vstv %s2666
        %v2940 = vmul.f32 %v2859, %v2939
        %v2941 = vstv %s2667
        %v2942 = vmul.f32 %v2863, %v2941
        %v2943 = vadd.f32 %v2940, %v2942
        %v2944 = vstv %s2668
        %v2945 = vmul.f32 %v2869, %v2944
        %v2946 = vadd.f32 %v2943, %v2945
        %v2947 = vstv %s2669
        %v2948 = vmul.f32 %v2841, %v2947
        %v2949 = vadd.f32 %v2946, %v2948
        %v2950 = vstv %s2670
        %v2951 = vmul.f32 %v2582, %v2950
        %v2952 = vadd.f32 %v2949, %v2951
        %v2953 = vstv %s2671
        %v2954 = vmul.f32 %v2853, %v2953
        %v2955 = vadd.f32 %v2952, %v2954
        %v2956 = vstv %s2672
        %v2957 = vmul.f32 %v2874, %v2956
        %v2958 = vadd.f32 %v2955, %v2957
        %v2959 = vstv %s2673
        %v2960 = vmul.f32 %v2878, %v2959
        %v2961 = vadd.f32 %v2958, %v2960
        %v2962 = vstv %s2674
        %v2963 = vmul.f32 %v2883, %v2962
        %v2964 = vadd.f32 %v2961, %v2963
        %v2965 = vadd.f32 %v2827, %v2964
        %2969 = vrot.lane.b32.xlu0 %v2600, 1
        %v2970 = vpop.permute.xlu0 %2969
        %2971 = vrot.lane.b32.xlu0 %v2601, 1
        %v2972 = vpop.permute.xlu0 %2971
        %2973 = vrot.lane.b32.xlu0 %v2602, 1
        %v2974 = vpop.permute.xlu0 %2973
        %v2978 = vsel %vm793, 0.0, %v2970
        %v2979 = vsel %vm793, 0.0, %v2972
        %v2980 = vsel %vm793, 0.0, %v2974
        %2981 = vrot.lane.b32.xlu0 %v2600, 127
        %v2982 = vpop.permute.xlu0 %2981
        %2983 = vrot.lane.b32.xlu0 %v2601, 127
        %v2984 = vpop.permute.xlu0 %2983
        %2985 = vrot.lane.b32.xlu0 %v2602, 127
        %v2986 = vpop.permute.xlu0 %2985
        %v2990 = vsel %vm806, %v2982, 0.0
        %v2991 = vsel %vm806, %v2984, 0.0
        %v2992 = vsel %vm806, %v2986, 0.0
        %v2995 = vrot.slane %v2978, 7
        %v2996 = vrot.slane %v2979, 7
        %v2997 = vsel %vm813, %v2995, %v2996
        %v2999 = vrot.slane %v2600, 7
        %v3000 = vrot.slane %v2601, 7
        %v3001 = vsel %vm813, %v2999, %v3000
        %v3005 = vrot.slane %v2990, 7
        %v3006 = vrot.slane %v2991, 7
        %v3007 = vsel %vm813, %v3005, %v3006
        %v3010 = vrot.slane %v2979, 1
        %v3011 = vrot.slane %v2980, 1
        %v3012 = vsel %vm844, %v3010, %v3011
        %v3014 = vrot.slane %v2601, 1
        %v3015 = vrot.slane %v2602, 1
        %v3016 = vsel %vm844, %v3014, %v3015
        %v3019 = vrot.slane %v2991, 1
        %v3020 = vrot.slane %v2992, 1
        %v3021 = vsel %vm844, %v3019, %v3020
        %v3023 = vstv %s2621
        %v3024 = vmul.f32 %v2997, %v3023
        %v3025 = vstv %s2622
        %v3026 = vmul.f32 %v3001, %v3025
        %v3027 = vadd.f32 %v3024, %v3026
        %v3028 = vstv %s2623
        %v3029 = vmul.f32 %v3007, %v3028
        %v3030 = vadd.f32 %v3027, %v3029
        %v3031 = vstv %s2624
        %v3032 = vmul.f32 %v2979, %v3031
        %v3033 = vadd.f32 %v3030, %v3032
        %v3034 = vstv %s2625
        %v3035 = vmul.f32 %v2601, %v3034
        %v3036 = vadd.f32 %v3033, %v3035
        %v3037 = vstv %s2626
        %v3038 = vmul.f32 %v2991, %v3037
        %v3039 = vadd.f32 %v3036, %v3038
        %v3040 = vstv %s2627
        %v3041 = vmul.f32 %v3012, %v3040
        %v3042 = vadd.f32 %v3039, %v3041
        %v3043 = vstv %s2628
        %v3044 = vmul.f32 %v3016, %v3043
        %v3045 = vadd.f32 %v3042, %v3044
        %v3046 = vstv %s2629
        %v3047 = vmul.f32 %v3021, %v3046
        %v3048 = vadd.f32 %v3045, %v3047
        %v3049 = vadd.f32 %v2911, %v3048
        %v3050 = vstv %s2648
        %v3051 = vmul.f32 %v2997, %v3050
        %v3052 = vstv %s2649
        %v3053 = vmul.f32 %v3001, %v3052
        %v3054 = vadd.f32 %v3051, %v3053
        %v3055 = vstv %s2650
        %v3056 = vmul.f32 %v3007, %v3055
        %v3057 = vadd.f32 %v3054, %v3056
        %v3058 = vstv %s2651
        %v3059 = vmul.f32 %v2979, %v3058
        %v3060 = vadd.f32 %v3057, %v3059
        %v3061 = vstv %s2652
        %v3062 = vmul.f32 %v2601, %v3061
        %v3063 = vadd.f32 %v3060, %v3062
        %v3064 = vstv %s2653
        %v3065 = vmul.f32 %v2991, %v3064
        %v3066 = vadd.f32 %v3063, %v3065
        %v3067 = vstv %s2654
        %v3068 = vmul.f32 %v3012, %v3067
        %v3069 = vadd.f32 %v3066, %v3068
        %v3070 = vstv %s2655
        %v3071 = vmul.f32 %v3016, %v3070
        %v3072 = vadd.f32 %v3069, %v3071
        %v3073 = vstv %s2656
        %v3074 = vmul.f32 %v3021, %v3073
        %v3075 = vadd.f32 %v3072, %v3074
        %v3076 = vadd.f32 %v2938, %v3075
        %v3077 = vstv %s2675
        %v3078 = vmul.f32 %v2997, %v3077
        %v3079 = vstv %s2676
        %v3080 = vmul.f32 %v3001, %v3079
        %v3081 = vadd.f32 %v3078, %v3080
        %v3082 = vstv %s2677
        %v3083 = vmul.f32 %v3007, %v3082
        %v3084 = vadd.f32 %v3081, %v3083
        %v3085 = vstv %s2678
        %v3086 = vmul.f32 %v2979, %v3085
        %v3087 = vadd.f32 %v3084, %v3086
        %v3088 = vstv %s2679
        %v3089 = vmul.f32 %v2601, %v3088
        %v3090 = vadd.f32 %v3087, %v3089
        %v3091 = vstv %s2680
        %v3092 = vmul.f32 %v2991, %v3091
        %v3093 = vadd.f32 %v3090, %v3092
        %v3094 = vstv %s2681
        %v3095 = vmul.f32 %v3012, %v3094
        %v3096 = vadd.f32 %v3093, %v3095
        %v3097 = vstv %s2682
        %v3098 = vmul.f32 %v3016, %v3097
        %v3099 = vadd.f32 %v3096, %v3098
        %v3100 = vstv %s2683
        %v3101 = vmul.f32 %v3021, %v3100
        %v3102 = vadd.f32 %v3099, %v3101
        %v3103 = vadd.f32 %v2965, %v3102
        %v3104 = vsub.f32 0.0, %v3049
        %v3105 = vmul.f32 %v3104, 1.442695
        %v3106 = vpow.pop %v3105
        %v3107 = vadd.f32 %v3106, 1.0
        %v3108 = vrcp.pop %v3107
        %v3109 = vmul.f32 1.0, %v3108
        %v3110 = vadd.f32 %v3109, %v671
        %v3111 = vmax.f32 %v3110, 0.0001
        %v3112 = vmin.f32 %v3111, 1.0
        %3113 = vst [vmem:[%s629] sm:$0xff] %v3112
        %v3114 = vrcp.pop %v3112
        %v3115 = vmul.f32 %v671, %v3114
        %v3116 = vmax.f32 %v3115, 0.0
        %v3117 = vmin.f32 %v3116, 1.0
        %3118 = vst [vmem:[%s636] sm:$0xff] %v3117
        %v3119 = vsub.f32 0.0, %v3076
        %v3120 = vmul.f32 %v3119, 1.442695
        %v3121 = vpow.pop %v3120
        %v3122 = vadd.f32 %v3121, 1.0
        %v3123 = vrcp.pop %v3122
        %v3124 = vmul.f32 1.0, %v3123
        %v3125 = vld [vmem:[%s678] sm:$0xff]
        %v3126 = vadd.f32 %v3124, %v3125
        %v3127 = vmax.f32 %v3126, 0.0001
        %v3128 = vmin.f32 %v3127, 1.0
        %s3129 = scalar_lea.vmem %s629, 8 [#allocation21]
        %3130 = vst [vmem:[%s3129] sm:$0xff] %v3128
        %v3131 = vrcp.pop %v3128
        %v3132 = vmul.f32 %v3125, %v3131
        %v3133 = vmax.f32 %v3132, 0.0
        %v3134 = vmin.f32 %v3133, 1.0
        %s3135 = scalar_lea.vmem %s636, 8 [#allocation22]
        %3136 = vst [vmem:[%s3135] sm:$0xff] %v3134
        %v3137 = vsub.f32 0.0, %v3103
        %v3138 = vmul.f32 %v3137, 1.442695
        %v3139 = vpow.pop %v3138
        %v3140 = vadd.f32 %v3139, 1.0
        %v3141 = vrcp.pop %v3140
        %v3142 = vmul.f32 1.0, %v3141
        %v3143 = vld [vmem:[%s687] sm:$0xff]
        %v3144 = vadd.f32 %v3142, %v3143
        %v3145 = vmax.f32 %v3144, 0.0001
        %v3146 = vmin.f32 %v3145, 1.0
        %s3147 = scalar_lea.vmem %s629, 16 [#allocation21]
        %3148 = vst [vmem:[%s3147] sm:$0xff] %v3146
        %v3149 = vrcp.pop %v3146
        %v3150 = vmul.f32 %v3143, %v3149
        %v3151 = vmax.f32 %v3150, 0.0
        %v3152 = vmin.f32 %v3151, 1.0
        %s3153 = scalar_lea.vmem %s636, 16 [#allocation22]
        %3154 = vst [vmem:[%s3153] sm:$0xff] %v3152
        %s3155 = sand.u32 %s307, 1
        %s3156 = scalar_lea.sflag [#allocation4], %s3155
        %s3157 = sand.u32 %s307, 1
        %s3158 = smul.addr %s3157, 24
        %s3159 = scalar_lea.vmem [#allocation21], %s3158
        %s3160 = sand.u32 %s333, 1
        %s3161 = scalar_lea.sflag [#allocation23], %s3160
        %s3162 = sand.u32 %s333, 1
        %s3163 = smul.addr %s3162, 24
        %s3164 = scalar_lea.vmem [#allocation22], %s3163
        // Predicated region
        $region109: #{tpu_custom_call.1} parent=63 // pred_check
          %p3165 = pneg %p317
        $region110: #{tpu_custom_call.1} parent=63 // pred_check_branch
          %3167 = sbr.rel (%p3165) target = $region112
        $region111: #{tpu_custom_call.1} parent=63 // pred_region
          %s3169 = ssub.s32 384, 384
          %3170 = vsyncadd %s3156, %s3169
          %s3171 = smul.addr %s41, 128
          %s3172 = scalar_lea.hbm %s11, %s3171
          %s3173 = sshll.u32 %s3159, 4
          %s3174 = int_to_ptr.vmem [resolvable:$true] %s3173
          %3179 = dma.vmem_to_hbm [thread:$0]  %s3174, 384, %s3172, %s3156, 128, 256, 8
        $region112: #{tpu_custom_call.1} parent=63 // pred_fallthru
          _
        // Predicated region
        $region113: #{tpu_custom_call.1} parent=63 // pred_check
          %p3180 = pneg %p343
        $region114: #{tpu_custom_call.1} parent=63 // pred_check_branch
          %3182 = sbr.rel (%p3180) target = $region116
        $region115: #{tpu_custom_call.1} parent=63 // pred_region
          %s3184 = ssub.s32 384, 384
          %3185 = vsyncadd %s3161, %s3184
          %s3186 = smul.addr %s41, 128
          %s3187 = scalar_lea.hbm %s12, %s3186
          %s3188 = sshll.u32 %s3164, 4
          %s3189 = int_to_ptr.vmem [resolvable:$true] %s3188
          %3194 = dma.vmem_to_hbm [thread:$0]  %s3189, 384, %s3187, %s3161, 128, 256, 8
        $region116: #{tpu_custom_call.1} parent=63 // pred_fallthru
          _
      $region64: #{tpu_custom_call.1} parent=5 // pred_fallthru
        _
      %p3195 = scmp.le.s32.totalorder 2, %s36
      // Predicated region
      $region117: #{tpu_custom_call.1} parent=5 // pred_check
        %p3196 = pneg %p3195
      $region118: #{tpu_custom_call.1} parent=5 // pred_check_branch
        %3198 = sbr.rel (%p3196) target = $region120
      $region119: #{tpu_custom_call.1} parent=5 // pred_region
        %s3199 = ssub.s32 %s36, 2
        // Predicated region
        $region121: #{tpu_custom_call.1} parent=119 // pred_check
          %p3200 = pneg %p323
        $region122: #{tpu_custom_call.1} parent=119 // pred_check_branch
          %3202 = sbr.rel (%p3200) target = $region124
        $region123: #{tpu_custom_call.1} parent=119 // pred_region
          %s3203 = sand.u32 %s308, 1
          %s3204 = scalar_lea.sflag [#allocation4], %s3203
          %s3205 = sand.u32 %s308, 1
          %s3206 = smul.addr %s3205, 24
          %s3207 = scalar_lea.vmem [#allocation21], %s3206
          %3208 = dma.done %s3204, 384
        $region124: #{tpu_custom_call.1} parent=119 // pred_fallthru
          _
        // Predicated region
        $region125: #{tpu_custom_call.1} parent=119 // pred_check
          %p3209 = pneg %p349
        $region126: #{tpu_custom_call.1} parent=119 // pred_check_branch
          %3211 = sbr.rel (%p3209) target = $region128
        $region127: #{tpu_custom_call.1} parent=119 // pred_region
          %s3212 = sand.u32 %s334, 1
          %s3213 = scalar_lea.sflag [#allocation23], %s3212
          %s3214 = sand.u32 %s334, 1
          %s3215 = smul.addr %s3214, 24
          %s3216 = scalar_lea.vmem [#allocation22], %s3215
          %3217 = dma.done %s3213, 384
        $region128: #{tpu_custom_call.1} parent=119 // pred_fallthru
          _
      $region120: #{tpu_custom_call.1} parent=5 // pred_fallthru
        _
    $region6: #{tpu_custom_call.1} parent=1 // loop_footer
      %s40 = sadd.s32 1, %s36
    $region7: #{tpu_custom_call.1} parent=1 // loop_footer_branch
      %35 = sbr.rel target = $region3
    $region8: #{tpu_custom_call.1} parent=1 // loop_exit
      _
    %3218 = vsyncpa [#allocation3], 1
    %s3219 = scalar_lea.sflag [#allocation3], 1
    %3220 = vsyncpa %s3219, 1
    %3221 = vsyncpa [#allocation7], 1
    %s3222 = scalar_lea.sflag [#allocation7], 1
    %3223 = vsyncpa %s3222, 1
    %3224 = vsyncpa [#allocation4], 1
    %s3225 = scalar_lea.sflag [#allocation4], 1
    %3226 = vsyncpa %s3225, 1
    %3227 = vsyncpa [#allocation23], 1
    %s3228 = scalar_lea.sflag [#allocation23], 1
    %3229 = vsyncpa %s3228, 1
    %3230 = vsyncpa [#allocation5], 1
    %s3231 = scalar_lea.sflag [#allocation5], 1
    %3232 = vsyncpa %s3231, 1
    %3233 = vsyncpa [#allocation11], 1
    %3234 = vsyncpa [#allocation14], 1
    %3235 = vsyncpa [#allocation17], 1
    %3236 = vsyncpa [#allocation20], 1

</llo_original>
